<compile_context>
chip_gen: v6e
topology: v6e:2x2x1
jax: 0.10.0
libtpu: 0.0.40
codegen_flags: <defaults>
</compile_context>

<pallas_src>
import functools
from types import SimpleNamespace

import jax
import jax.numpy as jnp
from jax import lax
from jax.experimental import pallas as pl
from jax.experimental.pallas import tpu as pltpu


# ----------------------------------------------------------------------------
# In-kernel building blocks (operate on refs / values already resident in VMEM)
# ----------------------------------------------------------------------------
def _cnn_krnn_stage(xpad_ref, wk_ref, b_ref, whh_ref, bhh_ref, wts_ref,
                    gx_ref, hseq_ref, dst_ref, *, T, Nn, K, H, D, TC, unroll):
    """Folded conv1d('same') + fused K-dup GRU + dup-softmax weighting (one batch).

    xpad_ref : (T + 2*pad, Nn, Cin) time-padded input (zero halo, pad = K//2)
    wk_ref   : (K, Cin, 3*D*H) bf16   per-tap conv weight folded into W_ih
    b_ref    : (1, 3*D*H) f32         folded bias (conv_b @ W_ih + b_ih)
    whh_ref  : (D*H, 3*D*H) bf16      block-diagonal over the D duplicated GRUs
    bhh_ref  : (1, 3*D*H) f32
    wts_ref  : (Nn, D) f32            per-node softmax weights over the D dups
    gx_ref   : (TC, Nn, 3*D*H) f32    scratch: chunked hoisted input projection
    hseq_ref : (TC, Nn, D*H) f32      scratch: chunked per-step hidden states
    dst_ref  : (T, Nn, H)             dup-weighted per-timestep output
    """
    Cin = xpad_ref.shape[-1]
    DH = D * H
    G3 = 3 * DH
    nchunks = T // TC

    whh = whh_ref[...]                                       # (DH, G3) bf16
    bhh = jnp.broadcast_to(bhh_ref[...], (Nn, G3))           # hoisted broadcast
    bfold = b_ref[...]                                       # (1, G3) f32
    wts = wts_ref[...]                                       # (Nn, D) f32

    def chunk_body(c, h):
        t0 = c * TC

        # --- hoisted input projection for this time chunk (conv folded into W_ih):
        #     gx[t] = sum_k xpad[t + k] @ (conv_w[k] @ W_ih) + b'
        acc = jnp.dot(
            xpad_ref[pl.ds(t0, TC)].reshape(TC * Nn, Cin).astype(jnp.bfloat16),
            wk_ref[0], preferred_element_type=jnp.float32)
        for k in range(1, K):                                 # static unrolled taps
            acc = acc + jnp.dot(
                xpad_ref[pl.ds(t0 + k, TC)].reshape(TC * Nn, Cin).astype(jnp.bfloat16),
                wk_ref[k], preferred_element_type=jnp.float32)
        gx_ref[...] = (acc + bfold).reshape(TC, Nn, G3)

        # --- serial GRU recurrence over this chunk (all D dups fused in one matmul)
        def step(t, hh):
            gxt = gx_ref[t]                                   # (Nn, G3)
            gh = jnp.dot(hh.astype(jnp.bfloat16), whh,
                         preferred_element_type=jnp.float32) + bhh
            rz = jax.nn.sigmoid(gxt[:, :2 * DH] + gh[:, :2 * DH])   # one EUP slab
            r = rz[:, :DH]
            z = rz[:, DH:]
            n = jnp.tanh(gxt[:, 2 * DH:] + r * gh[:, 2 * DH:])      # PyTorch (r, z, n)
            h_new = (1.0 - z) * n + z * hh                          # (Nn, D*H)
            hseq_ref[t] = h_new
            return h_new

        h = lax.fori_loop(0, TC, step, h, unroll=unroll)

        # --- node-softmax weighting over the D dups, vectorized per chunk
        #     (off the recurrence critical path, one dense store per chunk)
        hs = hseq_ref[...]                                    # (TC, Nn, DH)
        out = wts[None, :, 0:1] * hs[:, :, :H]
        for d in range(1, D):
            out = out + wts[None, :, d:d + 1] * hs[:, :, d * H:(d + 1) * H]
        dst_ref[pl.ds(t0, TC)] = out.astype(dst_ref.dtype)
        return h

    lax.fori_loop(0, nchunks, chunk_body,
                  jnp.zeros((Nn, DH), jnp.float32), unroll=False)


def _gat_stage(x, w_ref, asrc_ref, adst_ref, mask_ref, bias_ref):
    """Dense single-head GAT + ReLU over nodes, per time step: (T, Nn, F) -> (T, Nn, Hd).

    With the batch grid, each grid step only sees one batch element, so the small
    (Nn, Nn) adjacency mask applies directly (no block-diagonal construction).
    """
    T, Nn, F = x.shape
    Hd = w_ref.shape[-1]
    h = jnp.dot(x.reshape(T * Nn, F).astype(jnp.bfloat16), w_ref[...],
                preferred_element_type=jnp.float32).reshape(T, Nn, Hd)
    # attention logits on the VPU (no 1-column matmuls)
    u = jnp.sum(h * asrc_ref[...][None, :, :], axis=-1, keepdims=True)   # (T, Nn, 1)
    v = jnp.sum(h * adst_ref[...][None, :, :], axis=-1)                  # (T, Nn)
    e = u + v[:, None, :]                                                # (T, Nn, Nn)
    e = jnp.where(e > 0, e, 0.2 * e)                     # LeakyReLU(0.2)
    e = e + mask_ref[...][None, :, :]                    # additive adjacency mask
    m = jnp.max(e, axis=-1, keepdims=True)
    p = jnp.exp(e - m)
    denom = jnp.sum(p, axis=-1, keepdims=True)
    alpha = p / denom                                    # exact (bf16 already drifts)
    out = jnp.einsum('tij,tjh->tih', alpha.astype(jnp.bfloat16),
                     h.astype(jnp.bfloat16), preferred_element_type=jnp.float32)
    out = out + bias_ref[...][None, :, :]
    return jnp.maximum(out, 0.0)                         # GCNBlock's F.relu


def _sandwich_kernel(x_ref, mask_ref,
                     wk1_ref, b1_ref, whh1_ref, bhh1_ref, wts1_ref,
                     gw_ref, gas_ref, gad_ref, gb_ref,
                     wk2_ref, b2_ref, whh2_ref, bhh2_ref, wts2_ref,
                     o_ref,
                     mid_ref, gpad_ref, gx_ref, hseq_ref,
                     *, T, Nn, K, H, D, TC, unroll):
    pad = K // 2
    Hd = gw_ref.shape[-1]

    # ---- first CNN + K-GRU encoder:  x (Tp, Nn, Cin) -> mid (T, Nn, H)
    _cnn_krnn_stage(x_ref, wk1_ref, b1_ref, whh1_ref, bhh1_ref, wts1_ref,
                    gx_ref, hseq_ref, mid_ref,
                    T=T, Nn=Nn, K=K, H=H, D=D, TC=TC, unroll=unroll)

    # ---- GAT across nodes per time step (this batch element only), fused ReLU;
    #      written into a pre-zeroed-halo scratch so stage 2 needs no concat/pad.
    gat = _gat_stage(mid_ref[...], gw_ref, gas_ref, gad_ref, mask_ref, gb_ref)
    if pad > 0:
        gpad_ref[pl.ds(0, pad)] = jnp.zeros((pad, Nn, Hd), jnp.float32)
        gpad_ref[pl.ds(pad + T, pad)] = jnp.zeros((pad, Nn, Hd), jnp.float32)
    gpad_ref[pl.ds(pad, T)] = gat

    # ---- second CNN + K-GRU encoder on the GAT output -> o (T, Nn, H)
    _cnn_krnn_stage(gpad_ref, wk2_ref, b2_ref, whh2_ref, bhh2_ref, wts2_ref,
                    gx_ref, hseq_ref, o_ref,
                    T=T, Nn=Nn, K=K, H=H, D=D, TC=TC, unroll=unroll)

    # ---- residual: encode_out = first_out + second_out (folded epilogue)
    o_ref[...] = o_ref[...] + mid_ref[...]


# ----------------------------------------------------------------------------
# Parameter packing (wrapper-side, tiny) and the model wrapper.
# ----------------------------------------------------------------------------
def _pack_gru(w_ih, w_hh, b_ih, b_hh):
    """Pack D duplicated PyTorch-style GRUs into one wide recurrence.

    Gate columns are reordered [r | z | n] (each D*H wide, dup-major inside a gate)
    and W_hh becomes block-diagonal over dups so one (Nn, D*H) hidden state advances
    with a single matmul per step.
    """
    D, C, H3 = w_ih.shape
    H = H3 // 3
    DH = D * H

    def regroup(a, rows):          # (D, rows, 3H) -> (rows, 3*D*H)
        parts = [jnp.transpose(a[:, :, g * H:(g + 1) * H], (1, 0, 2)).reshape(rows, DH)
                 for g in range(3)]
        return jnp.concatenate(parts, axis=1)

    wih_p = regroup(w_ih, C)                       # (C, 3*D*H)
    bih_p = regroup(b_ih, 1)                       # (1, 3*D*H)
    bhh_p = regroup(b_hh, 1)                       # (1, 3*D*H)
    whh_p = jnp.zeros((DH, 3 * DH), w_hh.dtype)    # block-diagonal over dups
    for g in range(3):
        for d in range(D):
            whh_p = whh_p.at[d * H:(d + 1) * H,
                             g * DH + d * H:g * DH + (d + 1) * H].set(
                                 w_hh[d, :, g * H:(g + 1) * H])
    return wih_p, whh_p, bih_p, bhh_p


def sandwich_encoder(x, g, params, *, t_chunk=None):
    """Functional forward pass of SandwichEncoder using one fused Pallas TPU kernel."""
    B, Nn, T, Cin = x.shape
    D, H, _ = params['first']['w_hh'].shape
    K = params['first']['conv_w'].shape[0]
    Hd = params['gcn']['w'].shape[1]
    pad = K // 2
    Tp = T + 2 * pad
    G3 = 3 * D * H
    DH = D * H

    # time-chunk size for the hoisted GRU input projection (bounds VMEM in T)
    if t_chunk is None:
        TC = max(d for d in range(1, min(T, 64) + 1) if T % d == 0)
    else:
        TC = t_chunk
    assert T % TC == 0, "t_chunk must divide the sequence length"
    unroll = min(TC, 8)

    if g['type'] == 'dataflow':
        n_id1 = g['graph_n_id']
    elif g['type'] == 'subgraph':
        n_id1 = g['cent_n_id']
    else:
        raise Exception('Unsupported graph type: {}'.format(g['type']))
    n_id2 = g['cent_n_id']

    # layout glue (tiny): (B, Nn, T, C) -> (B, T, Nn, C) + zero time halo
    # (no in-kernel concat / pad needed)
    x_btc = jnp.transpose(x, (0, 2, 1, 3))
    x_pad = jnp.pad(x_btc, ((0, 0), (pad, pad), (0, 0), (0, 0)))

    def encoder_args(p, n_id):
        wih, whh, bih, bhh = _pack_gru(p['w_ih'], p['w_hh'], p['b_ih'], p['b_hh'])
        # fold conv taps into the GRU input projection (both are linear)
        wk = jnp.einsum('kci,io->kco', p['conv_w'], wih).astype(jnp.bfloat16)
        bfold = (p['conv_b'] @ wih + bih).astype(jnp.float32)        # (1, 3*D*H)
        wts = jax.nn.softmax(p['node_emb'][n_id], axis=-1)           # (Nn, D)
        return (wk, bfold, whh.astype(jnp.bfloat16), bhh.astype(jnp.float32),
                wts.astype(jnp.float32))

    a1 = encoder_args(params['first'], n_id1)
    a2 = encoder_args(params['second'], n_id2)

    pg = params['gcn']
    gargs = (pg['w'].astype(jnp.bfloat16),
             pg['a_src'].reshape(1, -1).astype(jnp.float32),
             pg['a_dst'].reshape(1, -1).astype(jnp.float32),
             pg['bias'].astype(jnp.float32))

    mask = g['mask_bias'].astype(jnp.float32)                        # (Nn, Nn)

    def rep(shape):
        zeros = (0,) * len(shape)
        return pl.BlockSpec(shape, lambda b: zeros)

    in_specs = [
        pl.BlockSpec((pl.Squeezed(), Tp, Nn, Cin), lambda b: (b, 0, 0, 0)),  # x_pad
        rep((Nn, Nn)),                                                       # mask
        rep((K, Cin, G3)), rep((1, G3)), rep((DH, G3)), rep((1, G3)), rep((Nn, D)),
        rep((H, Hd)), rep((1, Hd)), rep((1, Hd)), rep((1, Hd)),
        rep((K, Hd, G3)), rep((1, G3)), rep((DH, G3)), rep((1, G3)), rep((Nn, D)),
    ]
    out_specs = pl.BlockSpec((pl.Squeezed(), T, Nn, H), lambda b: (b, 0, 0, 0))

    scratch_shapes = [
        pltpu.VMEM((T, Nn, H), jnp.float32),      # first_out (residual / GAT input)
        pltpu.VMEM((Tp, Nn, Hd), jnp.float32),    # GAT output with zero time halo
        pltpu.VMEM((TC, Nn, G3), jnp.float32),    # chunked hoisted input projection
        pltpu.VMEM((TC, Nn, DH), jnp.float32),    # chunked per-step hidden states
    ]

    # rough cost / VMEM budgeting (advisory)
    weight_bytes = int(sum(int(a.size) * a.dtype.itemsize
                           for a in (a1 + a2 + gargs + (mask,))))
    flops = int(B * (2 * K * T * Nn * Cin * G3 + 2 * K * T * Nn * Hd * G3
                     + 2 * (2 * T * Nn * DH * G3)
                     + 2 * T * Nn * H * Hd + 2 * T * Nn * Nn * Hd))
    transc = int(B * (2 * T * Nn * G3 + T * Nn * Nn))
    bytes_acc = int(x_pad.size * 4 + B * T * Nn * H * 4 + weight_bytes)

    scratch_bytes = 4 * (T * Nn * H + Tp * Nn * Hd + TC * Nn * G3 + TC * Nn * DH)
    io_block_bytes = 4 * (Tp * Nn * Cin + T * Nn * H)
    gat_tmp_bytes = 4 * (2 * T * Nn * Nn + 2 * T * Nn * Hd)
    est = scratch_bytes + 2 * io_block_bytes + 2 * weight_bytes + gat_tmp_bytes
    vmem_limit = int(min(max(2 * est, 32 * 1024 * 1024), 64 * 1024 * 1024))

    out_btnh = pl.pallas_call(
        functools.partial(_sandwich_kernel, T=T, Nn=Nn, K=K, H=H, D=D,
                          TC=TC, unroll=unroll),
        out_shape=jax.ShapeDtypeStruct((B, T, Nn, H), jnp.float32),
        grid_spec=pltpu.PrefetchScalarGridSpec(
            num_scalar_prefetch=0,
            grid=(B,),
            in_specs=in_specs,
            out_specs=out_specs,
            scratch_shapes=scratch_shapes),
        compiler_params=pltpu.CompilerParams(
            dimension_semantics=("parallel",),
            vmem_limit_bytes=vmem_limit),
        cost_estimate=pl.CostEstimate(flops=flops, transcendentals=transc,
                                      bytes_accessed=bytes_acc),
    )(x_pad, mask, *a1, *gargs, *a2)

    # back to the module's (batch, node, time, feature) layout
    return jnp.transpose(out_btnh, (0, 2, 1, 3))


# ----------------------------------------------------------------------------
# Pure-JAX reference with identical placeholder semantics (for self-validation).
# ----------------------------------------------------------------------------
def sandwich_reference(x, g, params):
    def encoder(xin, p, n_id):
        Bq, Nq, Tq, Ci = xin.shape
        M = Bq * Nq
        K = p['conv_w'].shape[0]
        pad = K // 2
        x2 = xin.reshape(M, Tq, Ci)
        xp = jnp.pad(x2, ((0, 0), (pad, pad), (0, 0)))
        conv = sum(jnp.einsum('mtc,co->mto', xp[:, k:k + Tq, :], p['conv_w'][k])
                   for k in range(K)) + p['conv_b'][0]
        D, _, H3 = p['w_ih'].shape
        H = H3 // 3
        xs = jnp.transpose(conv, (1, 0, 2))                       # (T, M, Cc)

        def run_dup(d):
            wih, whh = p['w_ih'][d], p['w_hh'][d]
            bih, bhh = p['b_ih'][d, 0], p['b_hh'][d, 0]

            def step(h, xt):
                gx = xt @ wih + bih
                gh = h @ whh + bhh
                r = jax.nn.sigmoid(gx[:, :H] + gh[:, :H])
                z = jax.nn.sigmoid(gx[:, H:2 * H] + gh[:, H:2 * H])
                n = jnp.tanh(gx[:, 2 * H:] + r * gh[:, 2 * H:])
                hn = (1.0 - z) * n + z * h
                return hn, hn

            _, hs = lax.scan(step, jnp.zeros((M, H), jnp.float32), xs)
            return hs                                              # (T, M, H)

        hseq = jnp.stack([run_dup(d) for d in range(D)], axis=0)   # (D, T, M, H)
        wts = jax.nn.softmax(p['node_emb'][n_id], axis=-1)         # (Nq, D)
        wts_m = jnp.tile(wts[None], (Bq, 1, 1)).reshape(M, D)
        out = jnp.einsum('md,dtmh->mth', wts_m, hseq)
        return out.reshape(Bq, Nq, Tq, H)

    def gcn_block(X, p, mb):
        Bq, Nq, Tq, F = X.shape
        xg = jnp.transpose(X, (0, 2, 1, 3)).reshape(Bq * Tq, Nq, F)
        h = jnp.einsum('bnf,fh->bnh', xg, p['w'])
        u = jnp.einsum('bnh,ho->bno', h, p['a_src'])
        v = jnp.einsum('bnh,ho->bno', h, p['a_dst'])
        e = u + jnp.swapaxes(v, 1, 2)
        e = jnp.where(e > 0, e, 0.2 * e) + mb[None]
        alpha = jax.nn.softmax(e, axis=-1)
        out = jnp.einsum('bij,bjh->bih', alpha, h) + p['bias']
        out = jnp.maximum(out, 0.0)
        return jnp.transpose(out.reshape(Bq, Tq, Nq, -1), (0, 2, 1, 3))

    n_id1 = g['graph_n_id'] if g['type'] == 'dataflow' else g['cent_n_id']
    first = encoder(x, params['first'], n_id1)
    gout = gcn_block(first, params['gcn'], g['mask_bias'])
    second = encoder(gout, params['second'], g['cent_n_id'])
    return first + second


# ----------------------------------------------------------------------------
# Deterministic parameter init (synthetic weights, not a checkpoint load).
# ----------------------------------------------------------------------------
def init_encoder_params(key, cin, cnn_dim, ksize, rnn_dim, nodes, dups):
    ks = jax.random.split(key, 7)
    s = 0.1
    return dict(
        conv_w=jax.random.normal(ks[0], (ksize, cin, cnn_dim), jnp.float32) * s,
        conv_b=jax.random.normal(ks[1], (1, cnn_dim), jnp.float32) * s,
        w_ih=jax.random.normal(ks[2], (dups, cnn_dim, 3 * rnn_dim), jnp.float32) * s,
        w_hh=jax.random.normal(ks[3], (dups, rnn_dim, 3 * rnn_dim), jnp.float32) * s,
        b_ih=jax.random.normal(ks[4], (dups, 1, 3 * rnn_dim), jnp.float32) * s,
        b_hh=jax.random.normal(ks[5], (dups, 1, 3 * rnn_dim), jnp.float32) * s,
        node_emb=jax.random.normal(ks[6], (nodes, dups), jnp.float32) * s,
    )


def init_gcn_params(key, cin, cout):
    ks = jax.random.split(key, 4)
    s = 0.1
    return dict(
        w=jax.random.normal(ks[0], (cin, cout), jnp.float32) * s,
        a_src=jax.random.normal(ks[1], (cout, 1), jnp.float32) * s,
        a_dst=jax.random.normal(ks[2], (cout, 1), jnp.float32) * s,
        bias=jax.random.normal(ks[3], (1, cout), jnp.float32) * s,
    )


if __name__ == "__main__":
    config = SimpleNamespace(
        cnn_dim=16, cnn_kernel_size=3, rnn_dim=16, num_nodes=4, rnn_dups=2,
        gcn_dim=16, edge_fea_dim=4, gcn_type='gat', gcn_aggr='add',
        gcn_norm=False)
    input_dim, batch, seq = 4, 2, 16

    key = jax.random.PRNGKey(0)
    k1, k2, k3, kx = jax.random.split(key, 4)
    params = {
        'first': init_encoder_params(k1, input_dim, config.cnn_dim,
                                     config.cnn_kernel_size, config.rnn_dim,
                                     config.num_nodes, config.rnn_dups),
        'gcn': init_gcn_params(k2, config.rnn_dim, config.gcn_dim),
        'second': init_encoder_params(k3, config.gcn_dim, config.cnn_dim,
                                      config.cnn_kernel_size, config.rnn_dim,
                                      config.num_nodes, config.rnn_dups),
    }

    x = jax.random.normal(kx, (batch, config.num_nodes, seq, input_dim),
                          jnp.float32)

    # ring graph with self-loops; additive softmax mask (0 = edge, -1e9 = none)
    N = config.num_nodes
    idx = jnp.arange(N)
    adj = jnp.eye(N, dtype=jnp.float32)
    adj = adj.at[idx, (idx + 1) % N].set(1.0).at[idx, (idx - 1) % N].set(1.0)
    mask_bias = jnp.where(adj > 0, 0.0, -1e9).astype(jnp.float32)

    g = {'type': 'dataflow',
         'graph_n_id': jnp.arange(N),
         'cent_n_id': jnp.arange(N),
         'mask_bias': mask_bias}

    # t_chunk=8 with seq=16 exercises the chunked (multi-chunk) recurrence path
    out = sandwich_encoder(x, g, params, t_chunk=8)
    out = jax.block_until_ready(out)
    assert out.shape == (batch, config.num_nodes, seq, config.rnn_dim)
    assert bool(jnp.all(jnp.isfinite(out)))

    ref = sandwich_reference(x, g, params)
    max_err = float(jnp.max(jnp.abs(out - ref)))
    assert max_err < 3e-2, f"mismatch vs pure-JAX reference: {max_err}"

    print("KERNEL_OK")
</pallas_src>

<mosaic_0001>
module attributes {stable_mosaic.version = 11 : i64} {
  func.func @_sandwich_kernel(%arg0: i32, %arg1: memref<1x18x4x4xf32, #tpu.memory_space<vmem>>, %arg2: memref<4x4xf32, #tpu.memory_space<vmem>>, %arg3: memref<3x4x96xbf16, #tpu.memory_space<vmem>>, %arg4: memref<1x96xf32, #tpu.memory_space<vmem>>, %arg5: memref<32x96xbf16, #tpu.memory_space<vmem>>, %arg6: memref<1x96xf32, #tpu.memory_space<vmem>>, %arg7: memref<4x2xf32, #tpu.memory_space<vmem>>, %arg8: memref<16x16xbf16, #tpu.memory_space<vmem>>, %arg9: memref<1x16xf32, #tpu.memory_space<vmem>>, %arg10: memref<1x16xf32, #tpu.memory_space<vmem>>, %arg11: memref<1x16xf32, #tpu.memory_space<vmem>>, %arg12: memref<3x16x96xbf16, #tpu.memory_space<vmem>>, %arg13: memref<1x96xf32, #tpu.memory_space<vmem>>, %arg14: memref<32x96xbf16, #tpu.memory_space<vmem>>, %arg15: memref<1x96xf32, #tpu.memory_space<vmem>>, %arg16: memref<4x2xf32, #tpu.memory_space<vmem>>, %arg17: memref<1x16x4x16xf32, #tpu.memory_space<vmem>>, %arg18: memref<16x4x16xf32, #tpu.memory_space<vmem>>, %arg19: memref<18x4x16xf32, #tpu.memory_space<vmem>>, %arg20: memref<8x4x96xf32, #tpu.memory_space<vmem>>, %arg21: memref<8x4x32xf32, #tpu.memory_space<vmem>>) attributes {dimension_semantics = [#tpu.dimension_semantics<parallel>], iteration_bounds = array<i64: 2>, scalar_prefetch = 0 : i64, scratch_operands = 4 : i64, tpu.core_type = #tpu.core_type<tc>, window_params = [{transform_indices = @transform_0, window_bounds = array<i64: 1, 18, 4, 4>}, {pipeline_mode = #tpu.pipeline_mode<synchronous>, transform_indices = @transform_1, window_bounds = array<i64: 4, 4>}, {pipeline_mode = #tpu.pipeline_mode<synchronous>, transform_indices = @transform_2, window_bounds = array<i64: 3, 4, 96>}, {pipeline_mode = #tpu.pipeline_mode<synchronous>, transform_indices = @transform_3, window_bounds = array<i64: 1, 96>}, {pipeline_mode = #tpu.pipeline_mode<synchronous>, transform_indices = @transform_4, window_bounds = array<i64: 32, 96>}, {pipeline_mode = #tpu.pipeline_mode<synchronous>, transform_indices = @transform_5, window_bounds = array<i64: 1, 96>}, {pipeline_mode = #tpu.pipeline_mode<synchronous>, transform_indices = @transform_6, window_bounds = array<i64: 4, 2>}, {pipeline_mode = #tpu.pipeline_mode<synchronous>, transform_indices = @transform_7, window_bounds = array<i64: 16, 16>}, {pipeline_mode = #tpu.pipeline_mode<synchronous>, transform_indices = @transform_8, window_bounds = array<i64: 1, 16>}, {pipeline_mode = #tpu.pipeline_mode<synchronous>, transform_indices = @transform_9, window_bounds = array<i64: 1, 16>}, {pipeline_mode = #tpu.pipeline_mode<synchronous>, transform_indices = @transform_10, window_bounds = array<i64: 1, 16>}, {pipeline_mode = #tpu.pipeline_mode<synchronous>, transform_indices = @transform_11, window_bounds = array<i64: 3, 16, 96>}, {pipeline_mode = #tpu.pipeline_mode<synchronous>, transform_indices = @transform_12, window_bounds = array<i64: 1, 96>}, {pipeline_mode = #tpu.pipeline_mode<synchronous>, transform_indices = @transform_13, window_bounds = array<i64: 32, 96>}, {pipeline_mode = #tpu.pipeline_mode<synchronous>, transform_indices = @transform_14, window_bounds = array<i64: 1, 96>}, {pipeline_mode = #tpu.pipeline_mode<synchronous>, transform_indices = @transform_15, window_bounds = array<i64: 4, 2>}, {transform_indices = @transform_16, window_bounds = array<i64: 1, 16, 4, 16>}]} {
    %c0 = arith.constant 0 : index
    %c0_0 = arith.constant 0 : index
    %0 = vector.load %arg5[%c0, %c0_0] : memref<32x96xbf16, #tpu.memory_space<vmem>>, vector<32x96xbf16>
    %c0_1 = arith.constant 0 : index
    %c0_2 = arith.constant 0 : index
    %1 = vector.load %arg6[%c0_1, %c0_2] : memref<1x96xf32, #tpu.memory_space<vmem>>, vector<1x96xf32>
    %2 = vector.shape_cast %1 : vector<1x96xf32> to vector<1x96xf32>
    %3 = vector.broadcast %2 : vector<1x96xf32> to vector<4x96xf32>
    %c0_3 = arith.constant 0 : index
    %c0_4 = arith.constant 0 : index
    %4 = vector.load %arg4[%c0_3, %c0_4] : memref<1x96xf32, #tpu.memory_space<vmem>>, vector<1x96xf32>
    %c0_5 = arith.constant 0 : index
    %c0_6 = arith.constant 0 : index
    %5 = vector.load %arg7[%c0_5, %c0_6] : memref<4x2xf32, #tpu.memory_space<vmem>>, vector<4x2xf32>
    %cst = arith.constant 0.000000e+00 : f32
    %6 = vector.broadcast %cst : f32 to vector<4x32xf32>
    %c0_i32 = arith.constant 0 : i32
    %c2_i32 = arith.constant 2 : i32
    %7 = arith.addi %c0_i32, %c2_i32 : i32
    %c1_i32 = arith.constant 1 : i32
    %8 = scf.for %arg22 = %c0_i32 to %7 step %c1_i32 iter_args(%arg23 = %6) -> (vector<4x32xf32>)  : i32 {
      %c8_i32 = arith.constant 8 : i32
      %78 = arith.muli %arg22, %c8_i32 : i32
      %c0_63 = arith.constant 0 : index
      %79 = arith.index_cast %78 : i32 to index
      %c0_64 = arith.constant 0 : index
      %c0_65 = arith.constant 0 : index
      %80 = vector.load %arg1[%c0_63, %79, %c0_64, %c0_65] : memref<1x18x4x4xf32, #tpu.memory_space<vmem>>, vector<1x8x4x4xf32>
      %81 = vector.shape_cast %80 : vector<1x8x4x4xf32> to vector<8x4x4xf32>
      %82 = vector.shape_cast %81 : vector<8x4x4xf32> to vector<32x4xf32>
      %83 = arith.truncf %82 : vector<32x4xf32> to vector<32x4xbf16>
      %c0_66 = arith.constant 0 : index
      %c0_67 = arith.constant 0 : index
      %c0_68 = arith.constant 0 : index
      %84 = vector.load %arg3[%c0_66, %c0_67, %c0_68] : memref<3x4x96xbf16, #tpu.memory_space<vmem>>, vector<1x4x96xbf16>
      %85 = vector.shape_cast %84 : vector<1x4x96xbf16> to vector<4x96xbf16>
      %cst_69 = arith.constant dense<0.000000e+00> : vector<32x96xf32>
      %86 = tpu.matmul %83, %85, %cst_69 {dimension_numbers = #tpu.dot_dimension_numbers<[1], [0], [0], [1], [0, 0, 1, 1], [], []>} : vector<32x4xbf16>, vector<4x96xbf16>, vector<32x96xf32> -> vector<32x96xf32>
      %c1_i32_70 = arith.constant 1 : i32
      %87 = arith.addi %78, %c1_i32_70 : i32
      %c0_71 = arith.constant 0 : index
      %88 = arith.index_cast %87 : i32 to index
      %c0_72 = arith.constant 0 : index
      %c0_73 = arith.constant 0 : index
      %89 = vector.load %arg1[%c0_71, %88, %c0_72, %c0_73] : memref<1x18x4x4xf32, #tpu.memory_space<vmem>>, vector<1x8x4x4xf32>
      %90 = vector.shape_cast %89 : vector<1x8x4x4xf32> to vector<8x4x4xf32>
      %91 = vector.shape_cast %90 : vector<8x4x4xf32> to vector<32x4xf32>
      %92 = arith.truncf %91 : vector<32x4xf32> to vector<32x4xbf16>
      %c1_74 = arith.constant 1 : index
      %c0_75 = arith.constant 0 : index
      %c0_76 = arith.constant 0 : index
      %93 = vector.load %arg3[%c1_74, %c0_75, %c0_76] : memref<3x4x96xbf16, #tpu.memory_space<vmem>>, vector<1x4x96xbf16>
      %94 = vector.shape_cast %93 : vector<1x4x96xbf16> to vector<4x96xbf16>
      %cst_77 = arith.constant dense<0.000000e+00> : vector<32x96xf32>
      %95 = tpu.matmul %92, %94, %cst_77 {dimension_numbers = #tpu.dot_dimension_numbers<[1], [0], [0], [1], [0, 0, 1, 1], [], []>} : vector<32x4xbf16>, vector<4x96xbf16>, vector<32x96xf32> -> vector<32x96xf32>
      %96 = arith.addf %86, %95 : vector<32x96xf32>
      %c2_i32_78 = arith.constant 2 : i32
      %97 = arith.addi %78, %c2_i32_78 : i32
      %c0_79 = arith.constant 0 : index
      %98 = arith.index_cast %97 : i32 to index
      %c0_80 = arith.constant 0 : index
      %c0_81 = arith.constant 0 : index
      %99 = vector.load %arg1[%c0_79, %98, %c0_80, %c0_81] : memref<1x18x4x4xf32, #tpu.memory_space<vmem>>, vector<1x8x4x4xf32>
      %100 = vector.shape_cast %99 : vector<1x8x4x4xf32> to vector<8x4x4xf32>
      %101 = vector.shape_cast %100 : vector<8x4x4xf32> to vector<32x4xf32>
      %102 = arith.truncf %101 : vector<32x4xf32> to vector<32x4xbf16>
      %c2 = arith.constant 2 : index
      %c0_82 = arith.constant 0 : index
      %c0_83 = arith.constant 0 : index
      %103 = vector.load %arg3[%c2, %c0_82, %c0_83] : memref<3x4x96xbf16, #tpu.memory_space<vmem>>, vector<1x4x96xbf16>
      %104 = vector.shape_cast %103 : vector<1x4x96xbf16> to vector<4x96xbf16>
      %cst_84 = arith.constant dense<0.000000e+00> : vector<32x96xf32>
      %105 = tpu.matmul %102, %104, %cst_84 {dimension_numbers = #tpu.dot_dimension_numbers<[1], [0], [0], [1], [0, 0, 1, 1], [], []>} : vector<32x4xbf16>, vector<4x96xbf16>, vector<32x96xf32> -> vector<32x96xf32>
      %106 = arith.addf %96, %105 : vector<32x96xf32>
      %107 = vector.broadcast %4 : vector<1x96xf32> to vector<32x96xf32>
      %108 = arith.addf %106, %107 : vector<32x96xf32>
      %109 = vector.shape_cast %108 : vector<32x96xf32> to vector<8x4x96xf32>
      %c0_85 = arith.constant 0 : index
      %c0_86 = arith.constant 0 : index
      %c0_87 = arith.constant 0 : index
      %110 = vector.load %arg20[%c0_85, %c0_86, %c0_87] : memref<8x4x96xf32, #tpu.memory_space<vmem>>, vector<8x4x96xf32>
      tpu.vector_store %arg20[%c0_85, %c0_86, %c0_87], %109 {strides = array<i32>} : memref<8x4x96xf32, #tpu.memory_space<vmem>>, vector<8x4x96xf32>,
      %c0_i32_88 = arith.constant 0 : i32
      %111 = arith.index_cast %c0_i32_88 : i32 to index
      %c0_89 = arith.constant 0 : index
      %c0_90 = arith.constant 0 : index
      %112 = vector.load %arg20[%111, %c0_89, %c0_90] : memref<8x4x96xf32, #tpu.memory_space<vmem>>, vector<1x4x96xf32>
      %113 = vector.shape_cast %112 : vector<1x4x96xf32> to vector<4x96xf32>
      %114 = arith.truncf %arg23 : vector<4x32xf32> to vector<4x32xbf16>
      %cst_91 = arith.constant dense<0.000000e+00> : vector<4x96xf32>
      %115 = tpu.matmul %114, %0, %cst_91 {dimension_numbers = #tpu.dot_dimension_numbers<[1], [0], [0], [1], [0, 0, 1, 1], [], []>} : vector<4x32xbf16>, vector<32x96xbf16>, vector<4x96xf32> -> vector<4x96xf32>
      %116 = arith.addf %115, %3 : vector<4x96xf32>
      %117 = vector.extract_strided_slice %113 {offsets = [0, 0], sizes = [4, 64], strides = [1, 1]} : vector<4x96xf32> to vector<4x64xf32>
      %118 = vector.extract_strided_slice %116 {offsets = [0, 0], sizes = [4, 64], strides = [1, 1]} : vector<4x96xf32> to vector<4x64xf32>
      %119 = arith.addf %117, %118 : vector<4x64xf32>
      %120 = arith.negf %119 : vector<4x64xf32>
      %121 = math.exp %120 : vector<4x64xf32>
      %cst_92 = arith.constant 1.000000e+00 : f32
      %122 = vector.broadcast %cst_92 : f32 to vector<4x64xf32>
      %123 = arith.addf %122, %121 : vector<4x64xf32>
      %124 = arith.divf %122, %123 : vector<4x64xf32>
      %125 = vector.extract_strided_slice %124 {offsets = [0, 0], sizes = [4, 32], strides = [1, 1]} : vector<4x64xf32> to vector<4x32xf32>
      %126 = vector.extract_strided_slice %124 {offsets = [0, 32], sizes = [4, 32], strides = [1, 1]} : vector<4x64xf32> to vector<4x32xf32>
      %127 = vector.extract_strided_slice %113 {offsets = [0, 64], sizes = [4, 32], strides = [1, 1]} : vector<4x96xf32> to vector<4x32xf32>
      %128 = vector.extract_strided_slice %116 {offsets = [0, 64], sizes = [4, 32], strides = [1, 1]} : vector<4x96xf32> to vector<4x32xf32>
      %129 = arith.mulf %125, %128 : vector<4x32xf32>
      %130 = arith.addf %127, %129 : vector<4x32xf32>
      %131 = math.tanh %130 : vector<4x32xf32>
      %cst_93 = arith.constant 1.000000e+00 : f32
      %132 = vector.broadcast %cst_93 : f32 to vector<4x32xf32>
      %133 = arith.subf %132, %126 : vector<4x32xf32>
      %134 = arith.mulf %133, %131 : vector<4x32xf32>
      %135 = arith.mulf %126, %arg23 : vector<4x32xf32>
      %136 = arith.addf %134, %135 : vector<4x32xf32>
      %137 = arith.index_cast %c0_i32_88 : i32 to index
      %c0_94 = arith.constant 0 : index
      %c0_95 = arith.constant 0 : index
      %138 = vector.load %arg21[%137, %c0_94, %c0_95] : memref<8x4x32xf32, #tpu.memory_space<vmem>>, vector<1x4x32xf32>
      %139 = vector.shape_cast %138 : vector<1x4x32xf32> to vector<4x32xf32>
      %140 = vector.shape_cast %136 : vector<4x32xf32> to vector<1x4x32xf32>
      tpu.vector_store %arg21[%137, %c0_94, %c0_95], %140 {strides = array<i32>} : memref<8x4x32xf32, #tpu.memory_space<vmem>>, vector<1x4x32xf32>,
      %c1_i32_96 = arith.constant 1 : i32
      %141 = arith.index_cast %c1_i32_96 : i32 to index
      %c0_97 = arith.constant 0 : index
      %c0_98 = arith.constant 0 : index
      %142 = vector.load %arg20[%141, %c0_97, %c0_98] : memref<8x4x96xf32, #tpu.memory_space<vmem>>, vector<1x4x96xf32>
      %143 = vector.shape_cast %142 : vector<1x4x96xf32> to vector<4x96xf32>
      %144 = arith.truncf %136 : vector<4x32xf32> to vector<4x32xbf16>
      %cst_99 = arith.constant dense<0.000000e+00> : vector<4x96xf32>
      %145 = tpu.matmul %144, %0, %cst_99 {dimension_numbers = #tpu.dot_dimension_numbers<[1], [0], [0], [1], [0, 0, 1, 1], [], []>} : vector<4x32xbf16>, vector<32x96xbf16>, vector<4x96xf32> -> vector<4x96xf32>
      %146 = arith.addf %145, %3 : vector<4x96xf32>
      %147 = vector.extract_strided_slice %143 {offsets = [0, 0], sizes = [4, 64], strides = [1, 1]} : vector<4x96xf32> to vector<4x64xf32>
      %148 = vector.extract_strided_slice %146 {offsets = [0, 0], sizes = [4, 64], strides = [1, 1]} : vector<4x96xf32> to vector<4x64xf32>
      %149 = arith.addf %147, %148 : vector<4x64xf32>
      %150 = arith.negf %149 : vector<4x64xf32>
      %151 = math.exp %150 : vector<4x64xf32>
      %cst_100 = arith.constant 1.000000e+00 : f32
      %152 = vector.broadcast %cst_100 : f32 to vector<4x64xf32>
      %153 = arith.addf %152, %151 : vector<4x64xf32>
      %154 = arith.divf %152, %153 : vector<4x64xf32>
      %155 = vector.extract_strided_slice %154 {offsets = [0, 0], sizes = [4, 32], strides = [1, 1]} : vector<4x64xf32> to vector<4x32xf32>
      %156 = vector.extract_strided_slice %154 {offsets = [0, 32], sizes = [4, 32], strides = [1, 1]} : vector<4x64xf32> to vector<4x32xf32>
      %157 = vector.extract_strided_slice %143 {offsets = [0, 64], sizes = [4, 32], strides = [1, 1]} : vector<4x96xf32> to vector<4x32xf32>
      %158 = vector.extract_strided_slice %146 {offsets = [0, 64], sizes = [4, 32], strides = [1, 1]} : vector<4x96xf32> to vector<4x32xf32>
      %159 = arith.mulf %155, %158 : vector<4x32xf32>
      %160 = arith.addf %157, %159 : vector<4x32xf32>
      %161 = math.tanh %160 : vector<4x32xf32>
      %cst_101 = arith.constant 1.000000e+00 : f32
      %162 = vector.broadcast %cst_101 : f32 to vector<4x32xf32>
      %163 = arith.subf %162, %156 : vector<4x32xf32>
      %164 = arith.mulf %163, %161 : vector<4x32xf32>
      %165 = arith.mulf %156, %136 : vector<4x32xf32>
      %166 = arith.addf %164, %165 : vector<4x32xf32>
      %167 = arith.index_cast %c1_i32_96 : i32 to index
      %c0_102 = arith.constant 0 : index
      %c0_103 = arith.constant 0 : index
      %168 = vector.load %arg21[%167, %c0_102, %c0_103] : memref<8x4x32xf32, #tpu.memory_space<vmem>>, vector<1x4x32xf32>
      %169 = vector.shape_cast %168 : vector<1x4x32xf32> to vector<4x32xf32>
      %170 = vector.shape_cast %166 : vector<4x32xf32> to vector<1x4x32xf32>
      tpu.vector_store %arg21[%167, %c0_102, %c0_103], %170 {strides = array<i32>} : memref<8x4x32xf32, #tpu.memory_space<vmem>>, vector<1x4x32xf32>,
      %c2_i32_104 = arith.constant 2 : i32
      %171 = arith.index_cast %c2_i32_104 : i32 to index
      %c0_105 = arith.constant 0 : index
      %c0_106 = arith.constant 0 : index
      %172 = vector.load %arg20[%171, %c0_105, %c0_106] : memref<8x4x96xf32, #tpu.memory_space<vmem>>, vector<1x4x96xf32>
      %173 = vector.shape_cast %172 : vector<1x4x96xf32> to vector<4x96xf32>
      %174 = arith.truncf %166 : vector<4x32xf32> to vector<4x32xbf16>
      %cst_107 = arith.constant dense<0.000000e+00> : vector<4x96xf32>
      %175 = tpu.matmul %174, %0, %cst_107 {dimension_numbers = #tpu.dot_dimension_numbers<[1], [0], [0], [1], [0, 0, 1, 1], [], []>} : vector<4x32xbf16>, vector<32x96xbf16>, vector<4x96xf32> -> vector<4x96xf32>
      %176 = arith.addf %175, %3 : vector<4x96xf32>
      %177 = vector.extract_strided_slice %173 {offsets = [0, 0], sizes = [4, 64], strides = [1, 1]} : vector<4x96xf32> to vector<4x64xf32>
      %178 = vector.extract_strided_slice %176 {offsets = [0, 0], sizes = [4, 64], strides = [1, 1]} : vector<4x96xf32> to vector<4x64xf32>
      %179 = arith.addf %177, %178 : vector<4x64xf32>
      %180 = arith.negf %179 : vector<4x64xf32>
      %181 = math.exp %180 : vector<4x64xf32>
      %cst_108 = arith.constant 1.000000e+00 : f32
      %182 = vector.broadcast %cst_108 : f32 to vector<4x64xf32>
      %183 = arith.addf %182, %181 : vector<4x64xf32>
      %184 = arith.divf %182, %183 : vector<4x64xf32>
      %185 = vector.extract_strided_slice %184 {offsets = [0, 0], sizes = [4, 32], strides = [1, 1]} : vector<4x64xf32> to vector<4x32xf32>
      %186 = vector.extract_strided_slice %184 {offsets = [0, 32], sizes = [4, 32], strides = [1, 1]} : vector<4x64xf32> to vector<4x32xf32>
      %187 = vector.extract_strided_slice %173 {offsets = [0, 64], sizes = [4, 32], strides = [1, 1]} : vector<4x96xf32> to vector<4x32xf32>
      %188 = vector.extract_strided_slice %176 {offsets = [0, 64], sizes = [4, 32], strides = [1, 1]} : vector<4x96xf32> to vector<4x32xf32>
      %189 = arith.mulf %185, %188 : vector<4x32xf32>
      %190 = arith.addf %187, %189 : vector<4x32xf32>
      %191 = math.tanh %190 : vector<4x32xf32>
      %cst_109 = arith.constant 1.000000e+00 : f32
      %192 = vector.broadcast %cst_109 : f32 to vector<4x32xf32>
      %193 = arith.subf %192, %186 : vector<4x32xf32>
      %194 = arith.mulf %193, %191 : vector<4x32xf32>
      %195 = arith.mulf %186, %166 : vector<4x32xf32>
      %196 = arith.addf %194, %195 : vector<4x32xf32>
      %197 = arith.index_cast %c2_i32_104 : i32 to index
      %c0_110 = arith.constant 0 : index
      %c0_111 = arith.constant 0 : index
      %198 = vector.load %arg21[%197, %c0_110, %c0_111] : memref<8x4x32xf32, #tpu.memory_space<vmem>>, vector<1x4x32xf32>
      %199 = vector.shape_cast %198 : vector<1x4x32xf32> to vector<4x32xf32>
      %200 = vector.shape_cast %196 : vector<4x32xf32> to vector<1x4x32xf32>
      tpu.vector_store %arg21[%197, %c0_110, %c0_111], %200 {strides = array<i32>} : memref<8x4x32xf32, #tpu.memory_space<vmem>>, vector<1x4x32xf32>,
      %c3_i32 = arith.constant 3 : i32
      %201 = arith.index_cast %c3_i32 : i32 to index
      %c0_112 = arith.constant 0 : index
      %c0_113 = arith.constant 0 : index
      %202 = vector.load %arg20[%201, %c0_112, %c0_113] : memref<8x4x96xf32, #tpu.memory_space<vmem>>, vector<1x4x96xf32>
      %203 = vector.shape_cast %202 : vector<1x4x96xf32> to vector<4x96xf32>
      %204 = arith.truncf %196 : vector<4x32xf32> to vector<4x32xbf16>
      %cst_114 = arith.constant dense<0.000000e+00> : vector<4x96xf32>
      %205 = tpu.matmul %204, %0, %cst_114 {dimension_numbers = #tpu.dot_dimension_numbers<[1], [0], [0], [1], [0, 0, 1, 1], [], []>} : vector<4x32xbf16>, vector<32x96xbf16>, vector<4x96xf32> -> vector<4x96xf32>
      %206 = arith.addf %205, %3 : vector<4x96xf32>
      %207 = vector.extract_strided_slice %203 {offsets = [0, 0], sizes = [4, 64], strides = [1, 1]} : vector<4x96xf32> to vector<4x64xf32>
      %208 = vector.extract_strided_slice %206 {offsets = [0, 0], sizes = [4, 64], strides = [1, 1]} : vector<4x96xf32> to vector<4x64xf32>
      %209 = arith.addf %207, %208 : vector<4x64xf32>
      %210 = arith.negf %209 : vector<4x64xf32>
      %211 = math.exp %210 : vector<4x64xf32>
      %cst_115 = arith.constant 1.000000e+00 : f32
      %212 = vector.broadcast %cst_115 : f32 to vector<4x64xf32>
      %213 = arith.addf %212, %211 : vector<4x64xf32>
      %214 = arith.divf %212, %213 : vector<4x64xf32>
      %215 = vector.extract_strided_slice %214 {offsets = [0, 0], sizes = [4, 32], strides = [1, 1]} : vector<4x64xf32> to vector<4x32xf32>
      %216 = vector.extract_strided_slice %214 {offsets = [0, 32], sizes = [4, 32], strides = [1, 1]} : vector<4x64xf32> to vector<4x32xf32>
      %217 = vector.extract_strided_slice %203 {offsets = [0, 64], sizes = [4, 32], strides = [1, 1]} : vector<4x96xf32> to vector<4x32xf32>
      %218 = vector.extract_strided_slice %206 {offsets = [0, 64], sizes = [4, 32], strides = [1, 1]} : vector<4x96xf32> to vector<4x32xf32>
      %219 = arith.mulf %215, %218 : vector<4x32xf32>
      %220 = arith.addf %217, %219 : vector<4x32xf32>
      %221 = math.tanh %220 : vector<4x32xf32>
      %cst_116 = arith.constant 1.000000e+00 : f32
      %222 = vector.broadcast %cst_116 : f32 to vector<4x32xf32>
      %223 = arith.subf %222, %216 : vector<4x32xf32>
      %224 = arith.mulf %223, %221 : vector<4x32xf32>
      %225 = arith.mulf %216, %196 : vector<4x32xf32>
      %226 = arith.addf %224, %225 : vector<4x32xf32>
      %227 = arith.index_cast %c3_i32 : i32 to index
      %c0_117 = arith.constant 0 : index
      %c0_118 = arith.constant 0 : index
      %228 = vector.load %arg21[%227, %c0_117, %c0_118] : memref<8x4x32xf32, #tpu.memory_space<vmem>>, vector<1x4x32xf32>
      %229 = vector.shape_cast %228 : vector<1x4x32xf32> to vector<4x32xf32>
      %230 = vector.shape_cast %226 : vector<4x32xf32> to vector<1x4x32xf32>
      tpu.vector_store %arg21[%227, %c0_117, %c0_118], %230 {strides = array<i32>} : memref<8x4x32xf32, #tpu.memory_space<vmem>>, vector<1x4x32xf32>,
      %c4_i32 = arith.constant 4 : i32
      %231 = arith.index_cast %c4_i32 : i32 to index
      %c0_119 = arith.constant 0 : index
      %c0_120 = arith.constant 0 : index
      %232 = vector.load %arg20[%231, %c0_119, %c0_120] : memref<8x4x96xf32, #tpu.memory_space<vmem>>, vector<1x4x96xf32>
      %233 = vector.shape_cast %232 : vector<1x4x96xf32> to vector<4x96xf32>
      %234 = arith.truncf %226 : vector<4x32xf32> to vector<4x32xbf16>
      %cst_121 = arith.constant dense<0.000000e+00> : vector<4x96xf32>
      %235 = tpu.matmul %234, %0, %cst_121 {dimension_numbers = #tpu.dot_dimension_numbers<[1], [0], [0], [1], [0, 0, 1, 1], [], []>} : vector<4x32xbf16>, vector<32x96xbf16>, vector<4x96xf32> -> vector<4x96xf32>
      %236 = arith.addf %235, %3 : vector<4x96xf32>
      %237 = vector.extract_strided_slice %233 {offsets = [0, 0], sizes = [4, 64], strides = [1, 1]} : vector<4x96xf32> to vector<4x64xf32>
      %238 = vector.extract_strided_slice %236 {offsets = [0, 0], sizes = [4, 64], strides = [1, 1]} : vector<4x96xf32> to vector<4x64xf32>
      %239 = arith.addf %237, %238 : vector<4x64xf32>
      %240 = arith.negf %239 : vector<4x64xf32>
      %241 = math.exp %240 : vector<4x64xf32>
      %cst_122 = arith.constant 1.000000e+00 : f32
      %242 = vector.broadcast %cst_122 : f32 to vector<4x64xf32>
      %243 = arith.addf %242, %241 : vector<4x64xf32>
      %244 = arith.divf %242, %243 : vector<4x64xf32>
      %245 = vector.extract_strided_slice %244 {offsets = [0, 0], sizes = [4, 32], strides = [1, 1]} : vector<4x64xf32> to vector<4x32xf32>
      %246 = vector.extract_strided_slice %244 {offsets = [0, 32], sizes = [4, 32], strides = [1, 1]} : vector<4x64xf32> to vector<4x32xf32>
      %247 = vector.extract_strided_slice %233 {offsets = [0, 64], sizes = [4, 32], strides = [1, 1]} : vector<4x96xf32> to vector<4x32xf32>
      %248 = vector.extract_strided_slice %236 {offsets = [0, 64], sizes = [4, 32], strides = [1, 1]} : vector<4x96xf32> to vector<4x32xf32>
      %249 = arith.mulf %245, %248 : vector<4x32xf32>
      %250 = arith.addf %247, %249 : vector<4x32xf32>
      %251 = math.tanh %250 : vector<4x32xf32>
      %cst_123 = arith.constant 1.000000e+00 : f32
      %252 = vector.broadcast %cst_123 : f32 to vector<4x32xf32>
      %253 = arith.subf %252, %246 : vector<4x32xf32>
      %254 = arith.mulf %253, %251 : vector<4x32xf32>
      %255 = arith.mulf %246, %226 : vector<4x32xf32>
      %256 = arith.addf %254, %255 : vector<4x32xf32>
      %257 = arith.index_cast %c4_i32 : i32 to index
      %c0_124 = arith.constant 0 : index
      %c0_125 = arith.constant 0 : index
      %258 = vector.load %arg21[%257, %c0_124, %c0_125] : memref<8x4x32xf32, #tpu.memory_space<vmem>>, vector<1x4x32xf32>
      %259 = vector.shape_cast %258 : vector<1x4x32xf32> to vector<4x32xf32>
      %260 = vector.shape_cast %256 : vector<4x32xf32> to vector<1x4x32xf32>
      tpu.vector_store %arg21[%257, %c0_124, %c0_125], %260 {strides = array<i32>} : memref<8x4x32xf32, #tpu.memory_space<vmem>>, vector<1x4x32xf32>,
      %c5_i32 = arith.constant 5 : i32
      %261 = arith.index_cast %c5_i32 : i32 to index
      %c0_126 = arith.constant 0 : index
      %c0_127 = arith.constant 0 : index
      %262 = vector.load %arg20[%261, %c0_126, %c0_127] : memref<8x4x96xf32, #tpu.memory_space<vmem>>, vector<1x4x96xf32>
      %263 = vector.shape_cast %262 : vector<1x4x96xf32> to vector<4x96xf32>
      %264 = arith.truncf %256 : vector<4x32xf32> to vector<4x32xbf16>
      %cst_128 = arith.constant dense<0.000000e+00> : vector<4x96xf32>
      %265 = tpu.matmul %264, %0, %cst_128 {dimension_numbers = #tpu.dot_dimension_numbers<[1], [0], [0], [1], [0, 0, 1, 1], [], []>} : vector<4x32xbf16>, vector<32x96xbf16>, vector<4x96xf32> -> vector<4x96xf32>
      %266 = arith.addf %265, %3 : vector<4x96xf32>
      %267 = vector.extract_strided_slice %263 {offsets = [0, 0], sizes = [4, 64], strides = [1, 1]} : vector<4x96xf32> to vector<4x64xf32>
      %268 = vector.extract_strided_slice %266 {offsets = [0, 0], sizes = [4, 64], strides = [1, 1]} : vector<4x96xf32> to vector<4x64xf32>
      %269 = arith.addf %267, %268 : vector<4x64xf32>
      %270 = arith.negf %269 : vector<4x64xf32>
      %271 = math.exp %270 : vector<4x64xf32>
      %cst_129 = arith.constant 1.000000e+00 : f32
      %272 = vector.broadcast %cst_129 : f32 to vector<4x64xf32>
      %273 = arith.addf %272, %271 : vector<4x64xf32>
      %274 = arith.divf %272, %273 : vector<4x64xf32>
      %275 = vector.extract_strided_slice %274 {offsets = [0, 0], sizes = [4, 32], strides = [1, 1]} : vector<4x64xf32> to vector<4x32xf32>
      %276 = vector.extract_strided_slice %274 {offsets = [0, 32], sizes = [4, 32], strides = [1, 1]} : vector<4x64xf32> to vector<4x32xf32>
      %277 = vector.extract_strided_slice %263 {offsets = [0, 64], sizes = [4, 32], strides = [1, 1]} : vector<4x96xf32> to vector<4x32xf32>
      %278 = vector.extract_strided_slice %266 {offsets = [0, 64], sizes = [4, 32], strides = [1, 1]} : vector<4x96xf32> to vector<4x32xf32>
      %279 = arith.mulf %275, %278 : vector<4x32xf32>
      %280 = arith.addf %277, %279 : vector<4x32xf32>
      %281 = math.tanh %280 : vector<4x32xf32>
      %cst_130 = arith.constant 1.000000e+00 : f32
      %282 = vector.broadcast %cst_130 : f32 to vector<4x32xf32>
      %283 = arith.subf %282, %276 : vector<4x32xf32>
      %284 = arith.mulf %283, %281 : vector<4x32xf32>
      %285 = arith.mulf %276, %256 : vector<4x32xf32>
      %286 = arith.addf %284, %285 : vector<4x32xf32>
      %287 = arith.index_cast %c5_i32 : i32 to index
      %c0_131 = arith.constant 0 : index
      %c0_132 = arith.constant 0 : index
      %288 = vector.load %arg21[%287, %c0_131, %c0_132] : memref<8x4x32xf32, #tpu.memory_space<vmem>>, vector<1x4x32xf32>
      %289 = vector.shape_cast %288 : vector<1x4x32xf32> to vector<4x32xf32>
      %290 = vector.shape_cast %286 : vector<4x32xf32> to vector<1x4x32xf32>
      tpu.vector_store %arg21[%287, %c0_131, %c0_132], %290 {strides = array<i32>} : memref<8x4x32xf32, #tpu.memory_space<vmem>>, vector<1x4x32xf32>,
      %c6_i32 = arith.constant 6 : i32
      %291 = arith.index_cast %c6_i32 : i32 to index
      %c0_133 = arith.constant 0 : index
      %c0_134 = arith.constant 0 : index
      %292 = vector.load %arg20[%291, %c0_133, %c0_134] : memref<8x4x96xf32, #tpu.memory_space<vmem>>, vector<1x4x96xf32>
      %293 = vector.shape_cast %292 : vector<1x4x96xf32> to vector<4x96xf32>
      %294 = arith.truncf %286 : vector<4x32xf32> to vector<4x32xbf16>
      %cst_135 = arith.constant dense<0.000000e+00> : vector<4x96xf32>
      %295 = tpu.matmul %294, %0, %cst_135 {dimension_numbers = #tpu.dot_dimension_numbers<[1], [0], [0], [1], [0, 0, 1, 1], [], []>} : vector<4x32xbf16>, vector<32x96xbf16>, vector<4x96xf32> -> vector<4x96xf32>
      %296 = arith.addf %295, %3 : vector<4x96xf32>
      %297 = vector.extract_strided_slice %293 {offsets = [0, 0], sizes = [4, 64], strides = [1, 1]} : vector<4x96xf32> to vector<4x64xf32>
      %298 = vector.extract_strided_slice %296 {offsets = [0, 0], sizes = [4, 64], strides = [1, 1]} : vector<4x96xf32> to vector<4x64xf32>
      %299 = arith.addf %297, %298 : vector<4x64xf32>
      %300 = arith.negf %299 : vector<4x64xf32>
      %301 = math.exp %300 : vector<4x64xf32>
      %cst_136 = arith.constant 1.000000e+00 : f32
      %302 = vector.broadcast %cst_136 : f32 to vector<4x64xf32>
      %303 = arith.addf %302, %301 : vector<4x64xf32>
      %304 = arith.divf %302, %303 : vector<4x64xf32>
      %305 = vector.extract_strided_slice %304 {offsets = [0, 0], sizes = [4, 32], strides = [1, 1]} : vector<4x64xf32> to vector<4x32xf32>
      %306 = vector.extract_strided_slice %304 {offsets = [0, 32], sizes = [4, 32], strides = [1, 1]} : vector<4x64xf32> to vector<4x32xf32>
      %307 = vector.extract_strided_slice %293 {offsets = [0, 64], sizes = [4, 32], strides = [1, 1]} : vector<4x96xf32> to vector<4x32xf32>
      %308 = vector.extract_strided_slice %296 {offsets = [0, 64], sizes = [4, 32], strides = [1, 1]} : vector<4x96xf32> to vector<4x32xf32>
      %309 = arith.mulf %305, %308 : vector<4x32xf32>
      %310 = arith.addf %307, %309 : vector<4x32xf32>
      %311 = math.tanh %310 : vector<4x32xf32>
      %cst_137 = arith.constant 1.000000e+00 : f32
      %312 = vector.broadcast %cst_137 : f32 to vector<4x32xf32>
      %313 = arith.subf %312, %306 : vector<4x32xf32>
      %314 = arith.mulf %313, %311 : vector<4x32xf32>
      %315 = arith.mulf %306, %286 : vector<4x32xf32>
      %316 = arith.addf %314, %315 : vector<4x32xf32>
      %317 = arith.index_cast %c6_i32 : i32 to index
      %c0_138 = arith.constant 0 : index
      %c0_139 = arith.constant 0 : index
      %318 = vector.load %arg21[%317, %c0_138, %c0_139] : memref<8x4x32xf32, #tpu.memory_space<vmem>>, vector<1x4x32xf32>
      %319 = vector.shape_cast %318 : vector<1x4x32xf32> to vector<4x32xf32>
      %320 = vector.shape_cast %316 : vector<4x32xf32> to vector<1x4x32xf32>
      tpu.vector_store %arg21[%317, %c0_138, %c0_139], %320 {strides = array<i32>} : memref<8x4x32xf32, #tpu.memory_space<vmem>>, vector<1x4x32xf32>,
      %c7_i32 = arith.constant 7 : i32
      %321 = arith.index_cast %c7_i32 : i32 to index
      %c0_140 = arith.constant 0 : index
      %c0_141 = arith.constant 0 : index
      %322 = vector.load %arg20[%321, %c0_140, %c0_141] : memref<8x4x96xf32, #tpu.memory_space<vmem>>, vector<1x4x96xf32>
      %323 = vector.shape_cast %322 : vector<1x4x96xf32> to vector<4x96xf32>
      %324 = arith.truncf %316 : vector<4x32xf32> to vector<4x32xbf16>
      %cst_142 = arith.constant dense<0.000000e+00> : vector<4x96xf32>
      %325 = tpu.matmul %324, %0, %cst_142 {dimension_numbers = #tpu.dot_dimension_numbers<[1], [0], [0], [1], [0, 0, 1, 1], [], []>} : vector<4x32xbf16>, vector<32x96xbf16>, vector<4x96xf32> -> vector<4x96xf32>
      %326 = arith.addf %325, %3 : vector<4x96xf32>
      %327 = vector.extract_strided_slice %323 {offsets = [0, 0], sizes = [4, 64], strides = [1, 1]} : vector<4x96xf32> to vector<4x64xf32>
      %328 = vector.extract_strided_slice %326 {offsets = [0, 0], sizes = [4, 64], strides = [1, 1]} : vector<4x96xf32> to vector<4x64xf32>
      %329 = arith.addf %327, %328 : vector<4x64xf32>
      %330 = arith.negf %329 : vector<4x64xf32>
      %331 = math.exp %330 : vector<4x64xf32>
      %cst_143 = arith.constant 1.000000e+00 : f32
      %332 = vector.broadcast %cst_143 : f32 to vector<4x64xf32>
      %333 = arith.addf %332, %331 : vector<4x64xf32>
      %334 = arith.divf %332, %333 : vector<4x64xf32>
      %335 = vector.extract_strided_slice %334 {offsets = [0, 0], sizes = [4, 32], strides = [1, 1]} : vector<4x64xf32> to vector<4x32xf32>
      %336 = vector.extract_strided_slice %334 {offsets = [0, 32], sizes = [4, 32], strides = [1, 1]} : vector<4x64xf32> to vector<4x32xf32>
      %337 = vector.extract_strided_slice %323 {offsets = [0, 64], sizes = [4, 32], strides = [1, 1]} : vector<4x96xf32> to vector<4x32xf32>
      %338 = vector.extract_strided_slice %326 {offsets = [0, 64], sizes = [4, 32], strides = [1, 1]} : vector<4x96xf32> to vector<4x32xf32>
      %339 = arith.mulf %335, %338 : vector<4x32xf32>
      %340 = arith.addf %337, %339 : vector<4x32xf32>
      %341 = math.tanh %340 : vector<4x32xf32>
      %cst_144 = arith.constant 1.000000e+00 : f32
      %342 = vector.broadcast %cst_144 : f32 to vector<4x32xf32>
      %343 = arith.subf %342, %336 : vector<4x32xf32>
      %344 = arith.mulf %343, %341 : vector<4x32xf32>
      %345 = arith.mulf %336, %316 : vector<4x32xf32>
      %346 = arith.addf %344, %345 : vector<4x32xf32>
      %347 = arith.index_cast %c7_i32 : i32 to index
      %c0_145 = arith.constant 0 : index
      %c0_146 = arith.constant 0 : index
      %348 = vector.load %arg21[%347, %c0_145, %c0_146] : memref<8x4x32xf32, #tpu.memory_space<vmem>>, vector<1x4x32xf32>
      %349 = vector.shape_cast %348 : vector<1x4x32xf32> to vector<4x32xf32>
      %350 = vector.shape_cast %346 : vector<4x32xf32> to vector<1x4x32xf32>
      tpu.vector_store %arg21[%347, %c0_145, %c0_146], %350 {strides = array<i32>} : memref<8x4x32xf32, #tpu.memory_space<vmem>>, vector<1x4x32xf32>,
      %c8_i32_147 = arith.constant 8 : i32
      %c0_148 = arith.constant 0 : index
      %c0_149 = arith.constant 0 : index
      %c0_150 = arith.constant 0 : index
      %351 = vector.load %arg21[%c0_148, %c0_149, %c0_150] : memref<8x4x32xf32, #tpu.memory_space<vmem>>, vector<8x4x32xf32>
      %352 = vector.extract_strided_slice %5 {offsets = [0, 0], sizes = [4, 1], strides = [1, 1]} : vector<4x2xf32> to vector<4x1xf32>
      %353 = vector.shape_cast %352 : vector<4x1xf32> to vector<1x4x1xf32>
      %354 = vector.extract_strided_slice %351 {offsets = [0, 0, 0], sizes = [8, 4, 16], strides = [1, 1, 1]} : vector<8x4x32xf32> to vector<8x4x16xf32>
      %355 = vector.broadcast %353 : vector<1x4x1xf32> to vector<8x4x16xf32>
      %356 = arith.mulf %355, %354 : vector<8x4x16xf32>
      %357 = vector.extract_strided_slice %5 {offsets = [0, 1], sizes = [4, 1], strides = [1, 1]} : vector<4x2xf32> to vector<4x1xf32>
      %358 = vector.shape_cast %357 : vector<4x1xf32> to vector<1x4x1xf32>
      %359 = vector.extract_strided_slice %351 {offsets = [0, 0, 16], sizes = [8, 4, 16], strides = [1, 1, 1]} : vector<8x4x32xf32> to vector<8x4x16xf32>
      %360 = vector.broadcast %358 : vector<1x4x1xf32> to vector<8x4x16xf32>
      %361 = arith.mulf %360, %359 : vector<8x4x16xf32>
      %362 = arith.addf %356, %361 : vector<8x4x16xf32>
      %363 = arith.index_cast %78 : i32 to index
      %c0_151 = arith.constant 0 : index
      %c0_152 = arith.constant 0 : index
      %364 = vector.load %arg18[%363, %c0_151, %c0_152] : memref<16x4x16xf32, #tpu.memory_space<vmem>>, vector<8x4x16xf32>
      tpu.vector_store %arg18[%363, %c0_151, %c0_152], %362 {strides = array<i32>} : memref<16x4x16xf32, #tpu.memory_space<vmem>>, vector<8x4x16xf32>,
      scf.yield %346 : vector<4x32xf32>
    }
    %c2_i32_7 = arith.constant 2 : i32
    %c0_8 = arith.constant 0 : index
    %c0_9 = arith.constant 0 : index
    %c0_10 = arith.constant 0 : index
    %9 = vector.load %arg18[%c0_8, %c0_9, %c0_10] : memref<16x4x16xf32, #tpu.memory_space<vmem>>, vector<16x4x16xf32>
    %10 = vector.shape_cast %9 : vector<16x4x16xf32> to vector<64x16xf32>
    %11 = arith.truncf %10 : vector<64x16xf32> to vector<64x16xbf16>
    %c0_11 = arith.constant 0 : index
    %c0_12 = arith.constant 0 : index
    %12 = vector.load %arg8[%c0_11, %c0_12] : memref<16x16xbf16, #tpu.memory_space<vmem>>, vector<16x16xbf16>
    %cst_13 = arith.constant dense<0.000000e+00> : vector<64x16xf32>
    %13 = tpu.matmul %11, %12, %cst_13 {dimension_numbers = #tpu.dot_dimension_numbers<[1], [0], [0], [1], [0, 0, 1, 1], [], []>} : vector<64x16xbf16>, vector<16x16xbf16>, vector<64x16xf32> -> vector<64x16xf32>
    %14 = vector.shape_cast %13 : vector<64x16xf32> to vector<16x4x16xf32>
    %c0_14 = arith.constant 0 : index
    %c0_15 = arith.constant 0 : index
    %15 = vector.load %arg9[%c0_14, %c0_15] : memref<1x16xf32, #tpu.memory_space<vmem>>, vector<1x16xf32>
    %16 = vector.shape_cast %15 : vector<1x16xf32> to vector<1x1x16xf32>
    %17 = vector.broadcast %16 : vector<1x1x16xf32> to vector<16x4x16xf32>
    %18 = arith.mulf %14, %17 : vector<16x4x16xf32>
    %cst_16 = arith.constant dense<0.000000e+00> : vector<16x4xf32>
    %19 = vector.multi_reduction <add>, %18, %cst_16 [2] : vector<16x4x16xf32> to vector<16x4xf32>
    %20 = vector.shape_cast %19 : vector<16x4xf32> to vector<16x4x1xf32>
    %c0_17 = arith.constant 0 : index
    %c0_18 = arith.constant 0 : index
    %21 = vector.load %arg10[%c0_17, %c0_18] : memref<1x16xf32, #tpu.memory_space<vmem>>, vector<1x16xf32>
    %22 = vector.shape_cast %21 : vector<1x16xf32> to vector<1x1x16xf32>
    %23 = vector.broadcast %22 : vector<1x1x16xf32> to vector<16x4x16xf32>
    %24 = arith.mulf %14, %23 : vector<16x4x16xf32>
    %cst_19 = arith.constant dense<0.000000e+00> : vector<16x4xf32>
    %25 = vector.multi_reduction <add>, %24, %cst_19 [2] : vector<16x4x16xf32> to vector<16x4xf32>
    %26 = vector.shape_cast %25 : vector<16x4xf32> to vector<16x1x4xf32>
    %27 = vector.broadcast %20 : vector<16x4x1xf32> to vector<16x4x4xf32>
    %28 = vector.broadcast %26 : vector<16x1x4xf32> to vector<16x4x4xf32>
    %29 = arith.addf %27, %28 : vector<16x4x4xf32>
    %cst_20 = arith.constant 0.000000e+00 : f32
    %30 = vector.broadcast %cst_20 : f32 to vector<16x4x4xf32>
    %31 = arith.cmpf ogt, %29, %30 : vector<16x4x4xf32>
    %cst_21 = arith.constant 2.000000e-01 : f32
    %32 = vector.broadcast %cst_21 : f32 to vector<16x4x4xf32>
    %33 = arith.mulf %32, %29 : vector<16x4x4xf32>
    %34 = arith.select %31, %29, %33 : vector<16x4x4xi1>, vector<16x4x4xf32>
    %c0_22 = arith.constant 0 : index
    %c0_23 = arith.constant 0 : index
    %35 = vector.load %arg2[%c0_22, %c0_23] : memref<4x4xf32, #tpu.memory_space<vmem>>, vector<4x4xf32>
    %36 = vector.shape_cast %35 : vector<4x4xf32> to vector<1x4x4xf32>
    %37 = vector.broadcast %36 : vector<1x4x4xf32> to vector<16x4x4xf32>
    %38 = arith.addf %34, %37 : vector<16x4x4xf32>
    %cst_24 = arith.constant dense<0xFF800000> : vector<16x4xf32>
    %39 = vector.multi_reduction <maximumf>, %38, %cst_24 [2] : vector<16x4x4xf32> to vector<16x4xf32>
    %40 = vector.shape_cast %39 : vector<16x4xf32> to vector<16x4x1xf32>
    %41 = vector.broadcast %40 : vector<16x4x1xf32> to vector<16x4x4xf32>
    %42 = arith.subf %38, %41 : vector<16x4x4xf32>
    %43 = math.exp %42 : vector<16x4x4xf32>
    %cst_25 = arith.constant dense<0.000000e+00> : vector<16x4xf32>
    %44 = vector.multi_reduction <add>, %43, %cst_25 [2] : vector<16x4x4xf32> to vector<16x4xf32>
    %45 = vector.shape_cast %44 : vector<16x4xf32> to vector<16x4x1xf32>
    %46 = vector.broadcast %45 : vector<16x4x1xf32> to vector<16x4x4xf32>
    %47 = arith.divf %43, %46 : vector<16x4x4xf32>
    %48 = arith.truncf %47 : vector<16x4x4xf32> to vector<16x4x4xbf16>
    %49 = arith.truncf %14 : vector<16x4x16xf32> to vector<16x4x16xbf16>
    "tpu.trace_start"() <{level = 10 : i32, message = "tij,tjh->tih"}> : () -> ()
    %cst_26 = arith.constant dense<0.000000e+00> : vector<16x4x16xf32>
    %50 = tpu.matmul %48, %49, %cst_26 {dimension_numbers = #tpu.dot_dimension_numbers<[2], [1], [1], [2], [0, 0, 0, 1, 1, 2], [0], [0]>} : vector<16x4x4xbf16>, vector<16x4x16xbf16>, vector<16x4x16xf32> -> vector<16x4x16xf32>
    "tpu.trace_stop"() : () -> ()
    %c0_27 = arith.constant 0 : index
    %c0_28 = arith.constant 0 : index
    %51 = vector.load %arg11[%c0_27, %c0_28] : memref<1x16xf32, #tpu.memory_space<vmem>>, vector<1x16xf32>
    %52 = vector.shape_cast %51 : vector<1x16xf32> to vector<1x1x16xf32>
    %53 = vector.broadcast %52 : vector<1x1x16xf32> to vector<16x4x16xf32>
    %54 = arith.addf %50, %53 : vector<16x4x16xf32>
    %cst_29 = arith.constant 0.000000e+00 : f32
    %55 = vector.broadcast %cst_29 : f32 to vector<16x4x16xf32>
    %56 = arith.maximumf %54, %55 : vector<16x4x16xf32>
    %cst_30 = arith.constant 0.000000e+00 : f32
    %57 = vector.broadcast %cst_30 : f32 to vector<1x4x16xf32>
    %c0_31 = arith.constant 0 : index
    %c0_32 = arith.constant 0 : index
    %c0_33 = arith.constant 0 : index
    %58 = vector.load %arg19[%c0_31, %c0_32, %c0_33] : memref<18x4x16xf32, #tpu.memory_space<vmem>>, vector<1x4x16xf32>
    tpu.vector_store %arg19[%c0_31, %c0_32, %c0_33], %57 {strides = array<i32>} : memref<18x4x16xf32, #tpu.memory_space<vmem>>, vector<1x4x16xf32>,
    %cst_34 = arith.constant 0.000000e+00 : f32
    %59 = vector.broadcast %cst_34 : f32 to vector<1x4x16xf32>
    %c17 = arith.constant 17 : index
    %c0_35 = arith.constant 0 : index
    %c0_36 = arith.constant 0 : index
    %60 = vector.load %arg19[%c17, %c0_35, %c0_36] : memref<18x4x16xf32, #tpu.memory_space<vmem>>, vector<1x4x16xf32>
    tpu.vector_store %arg19[%c17, %c0_35, %c0_36], %59 {strides = array<i32>} : memref<18x4x16xf32, #tpu.memory_space<vmem>>, vector<1x4x16xf32>,
    %c1 = arith.constant 1 : index
    %c0_37 = arith.constant 0 : index
    %c0_38 = arith.constant 0 : index
    %61 = vector.load %arg19[%c1, %c0_37, %c0_38] : memref<18x4x16xf32, #tpu.memory_space<vmem>>, vector<16x4x16xf32>
    tpu.vector_store %arg19[%c1, %c0_37, %c0_38], %56 {strides = array<i32>} : memref<18x4x16xf32, #tpu.memory_space<vmem>>, vector<16x4x16xf32>,
    %c0_39 = arith.constant 0 : index
    %c0_40 = arith.constant 0 : index
    %62 = vector.load %arg14[%c0_39, %c0_40] : memref<32x96xbf16, #tpu.memory_space<vmem>>, vector<32x96xbf16>
    %c0_41 = arith.constant 0 : index
    %c0_42 = arith.constant 0 : index
    %63 = vector.load %arg15[%c0_41, %c0_42] : memref<1x96xf32, #tpu.memory_space<vmem>>, vector<1x96xf32>
    %64 = vector.shape_cast %63 : vector<1x96xf32> to vector<1x96xf32>
    %65 = vector.broadcast %64 : vector<1x96xf32> to vector<4x96xf32>
    %c0_43 = arith.constant 0 : index
    %c0_44 = arith.constant 0 : index
    %66 = vector.load %arg13[%c0_43, %c0_44] : memref<1x96xf32, #tpu.memory_space<vmem>>, vector<1x96xf32>
    %c0_45 = arith.constant 0 : index
    %c0_46 = arith.constant 0 : index
    %67 = vector.load %arg16[%c0_45, %c0_46] : memref<4x2xf32, #tpu.memory_space<vmem>>, vector<4x2xf32>
    %cst_47 = arith.constant 0.000000e+00 : f32
    %68 = vector.broadcast %cst_47 : f32 to vector<4x32xf32>
    %c0_i32_48 = arith.constant 0 : i32
    %c2_i32_49 = arith.constant 2 : i32
    %69 = arith.addi %c0_i32_48, %c2_i32_49 : i32
    %c1_i32_50 = arith.constant 1 : i32
    %70 = scf.for %arg22 = %c0_i32_48 to %69 step %c1_i32_50 iter_args(%arg23 = %68) -> (vector<4x32xf32>)  : i32 {
      %c8_i32 = arith.constant 8 : i32
      %78 = arith.muli %arg22, %c8_i32 : i32
      %79 = arith.index_cast %78 : i32 to index
      %c0_63 = arith.constant 0 : index
      %c0_64 = arith.constant 0 : index
      %80 = vector.load %arg19[%79, %c0_63, %c0_64] : memref<18x4x16xf32, #tpu.memory_space<vmem>>, vector<8x4x16xf32>
      %81 = vector.shape_cast %80 : vector<8x4x16xf32> to vector<32x16xf32>
      %82 = arith.truncf %81 : vector<32x16xf32> to vector<32x16xbf16>
      %c0_65 = arith.constant 0 : index
      %c0_66 = arith.constant 0 : index
      %c0_67 = arith.constant 0 : index
      %83 = vector.load %arg12[%c0_65, %c0_66, %c0_67] : memref<3x16x96xbf16, #tpu.memory_space<vmem>>, vector<1x16x96xbf16>
      %84 = vector.shape_cast %83 : vector<1x16x96xbf16> to vector<16x96xbf16>
      %cst_68 = arith.constant dense<0.000000e+00> : vector<32x96xf32>
      %85 = tpu.matmul %82, %84, %cst_68 {dimension_numbers = #tpu.dot_dimension_numbers<[1], [0], [0], [1], [0, 0, 1, 1], [], []>} : vector<32x16xbf16>, vector<16x96xbf16>, vector<32x96xf32> -> vector<32x96xf32>
      %c1_i32_69 = arith.constant 1 : i32
      %86 = arith.addi %78, %c1_i32_69 : i32
      %87 = arith.index_cast %86 : i32 to index
      %c0_70 = arith.constant 0 : index
      %c0_71 = arith.constant 0 : index
      %88 = vector.load %arg19[%87, %c0_70, %c0_71] : memref<18x4x16xf32, #tpu.memory_space<vmem>>, vector<8x4x16xf32>
      %89 = vector.shape_cast %88 : vector<8x4x16xf32> to vector<32x16xf32>
      %90 = arith.truncf %89 : vector<32x16xf32> to vector<32x16xbf16>
      %c1_72 = arith.constant 1 : index
      %c0_73 = arith.constant 0 : index
      %c0_74 = arith.constant 0 : index
      %91 = vector.load %arg12[%c1_72, %c0_73, %c0_74] : memref<3x16x96xbf16, #tpu.memory_space<vmem>>, vector<1x16x96xbf16>
      %92 = vector.shape_cast %91 : vector<1x16x96xbf16> to vector<16x96xbf16>
      %cst_75 = arith.constant dense<0.000000e+00> : vector<32x96xf32>
      %93 = tpu.matmul %90, %92, %cst_75 {dimension_numbers = #tpu.dot_dimension_numbers<[1], [0], [0], [1], [0, 0, 1, 1], [], []>} : vector<32x16xbf16>, vector<16x96xbf16>, vector<32x96xf32> -> vector<32x96xf32>
      %94 = arith.addf %85, %93 : vector<32x96xf32>
      %c2_i32_76 = arith.constant 2 : i32
      %95 = arith.addi %78, %c2_i32_76 : i32
      %96 = arith.index_cast %95 : i32 to index
      %c0_77 = arith.constant 0 : index
      %c0_78 = arith.constant 0 : index
      %97 = vector.load %arg19[%96, %c0_77, %c0_78] : memref<18x4x16xf32, #tpu.memory_space<vmem>>, vector<8x4x16xf32>
      %98 = vector.shape_cast %97 : vector<8x4x16xf32> to vector<32x16xf32>
      %99 = arith.truncf %98 : vector<32x16xf32> to vector<32x16xbf16>
      %c2 = arith.constant 2 : index
      %c0_79 = arith.constant 0 : index
      %c0_80 = arith.constant 0 : index
      %100 = vector.load %arg12[%c2, %c0_79, %c0_80] : memref<3x16x96xbf16, #tpu.memory_space<vmem>>, vector<1x16x96xbf16>
      %101 = vector.shape_cast %100 : vector<1x16x96xbf16> to vector<16x96xbf16>
      %cst_81 = arith.constant dense<0.000000e+00> : vector<32x96xf32>
      %102 = tpu.matmul %99, %101, %cst_81 {dimension_numbers = #tpu.dot_dimension_numbers<[1], [0], [0], [1], [0, 0, 1, 1], [], []>} : vector<32x16xbf16>, vector<16x96xbf16>, vector<32x96xf32> -> vector<32x96xf32>
      %103 = arith.addf %94, %102 : vector<32x96xf32>
      %104 = vector.broadcast %66 : vector<1x96xf32> to vector<32x96xf32>
      %105 = arith.addf %103, %104 : vector<32x96xf32>
      %106 = vector.shape_cast %105 : vector<32x96xf32> to vector<8x4x96xf32>
      %c0_82 = arith.constant 0 : index
      %c0_83 = arith.constant 0 : index
      %c0_84 = arith.constant 0 : index
      %107 = vector.load %arg20[%c0_82, %c0_83, %c0_84] : memref<8x4x96xf32, #tpu.memory_space<vmem>>, vector<8x4x96xf32>
      tpu.vector_store %arg20[%c0_82, %c0_83, %c0_84], %106 {strides = array<i32>} : memref<8x4x96xf32, #tpu.memory_space<vmem>>, vector<8x4x96xf32>,
      %c0_i32_85 = arith.constant 0 : i32
      %108 = arith.index_cast %c0_i32_85 : i32 to index
      %c0_86 = arith.constant 0 : index
      %c0_87 = arith.constant 0 : index
      %109 = vector.load %arg20[%108, %c0_86, %c0_87] : memref<8x4x96xf32, #tpu.memory_space<vmem>>, vector<1x4x96xf32>
      %110 = vector.shape_cast %109 : vector<1x4x96xf32> to vector<4x96xf32>
      %111 = arith.truncf %arg23 : vector<4x32xf32> to vector<4x32xbf16>
      %cst_88 = arith.constant dense<0.000000e+00> : vector<4x96xf32>
      %112 = tpu.matmul %111, %62, %cst_88 {dimension_numbers = #tpu.dot_dimension_numbers<[1], [0], [0], [1], [0, 0, 1, 1], [], []>} : vector<4x32xbf16>, vector<32x96xbf16>, vector<4x96xf32> -> vector<4x96xf32>
      %113 = arith.addf %112, %65 : vector<4x96xf32>
      %114 = vector.extract_strided_slice %110 {offsets = [0, 0], sizes = [4, 64], strides = [1, 1]} : vector<4x96xf32> to vector<4x64xf32>
      %115 = vector.extract_strided_slice %113 {offsets = [0, 0], sizes = [4, 64], strides = [1, 1]} : vector<4x96xf32> to vector<4x64xf32>
      %116 = arith.addf %114, %115 : vector<4x64xf32>
      %117 = arith.negf %116 : vector<4x64xf32>
      %118 = math.exp %117 : vector<4x64xf32>
      %cst_89 = arith.constant 1.000000e+00 : f32
      %119 = vector.broadcast %cst_89 : f32 to vector<4x64xf32>
      %120 = arith.addf %119, %118 : vector<4x64xf32>
      %121 = arith.divf %119, %120 : vector<4x64xf32>
      %122 = vector.extract_strided_slice %121 {offsets = [0, 0], sizes = [4, 32], strides = [1, 1]} : vector<4x64xf32> to vector<4x32xf32>
      %123 = vector.extract_strided_slice %121 {offsets = [0, 32], sizes = [4, 32], strides = [1, 1]} : vector<4x64xf32> to vector<4x32xf32>
      %124 = vector.extract_strided_slice %110 {offsets = [0, 64], sizes = [4, 32], strides = [1, 1]} : vector<4x96xf32> to vector<4x32xf32>
      %125 = vector.extract_strided_slice %113 {offsets = [0, 64], sizes = [4, 32], strides = [1, 1]} : vector<4x96xf32> to vector<4x32xf32>
      %126 = arith.mulf %122, %125 : vector<4x32xf32>
      %127 = arith.addf %124, %126 : vector<4x32xf32>
      %128 = math.tanh %127 : vector<4x32xf32>
      %cst_90 = arith.constant 1.000000e+00 : f32
      %129 = vector.broadcast %cst_90 : f32 to vector<4x32xf32>
      %130 = arith.subf %129, %123 : vector<4x32xf32>
      %131 = arith.mulf %130, %128 : vector<4x32xf32>
      %132 = arith.mulf %123, %arg23 : vector<4x32xf32>
      %133 = arith.addf %131, %132 : vector<4x32xf32>
      %134 = arith.index_cast %c0_i32_85 : i32 to index
      %c0_91 = arith.constant 0 : index
      %c0_92 = arith.constant 0 : index
      %135 = vector.load %arg21[%134, %c0_91, %c0_92] : memref<8x4x32xf32, #tpu.memory_space<vmem>>, vector<1x4x32xf32>
      %136 = vector.shape_cast %135 : vector<1x4x32xf32> to vector<4x32xf32>
      %137 = vector.shape_cast %133 : vector<4x32xf32> to vector<1x4x32xf32>
      tpu.vector_store %arg21[%134, %c0_91, %c0_92], %137 {strides = array<i32>} : memref<8x4x32xf32, #tpu.memory_space<vmem>>, vector<1x4x32xf32>,
      %c1_i32_93 = arith.constant 1 : i32
      %138 = arith.index_cast %c1_i32_93 : i32 to index
      %c0_94 = arith.constant 0 : index
      %c0_95 = arith.constant 0 : index
      %139 = vector.load %arg20[%138, %c0_94, %c0_95] : memref<8x4x96xf32, #tpu.memory_space<vmem>>, vector<1x4x96xf32>
      %140 = vector.shape_cast %139 : vector<1x4x96xf32> to vector<4x96xf32>
      %141 = arith.truncf %133 : vector<4x32xf32> to vector<4x32xbf16>
      %cst_96 = arith.constant dense<0.000000e+00> : vector<4x96xf32>
      %142 = tpu.matmul %141, %62, %cst_96 {dimension_numbers = #tpu.dot_dimension_numbers<[1], [0], [0], [1], [0, 0, 1, 1], [], []>} : vector<4x32xbf16>, vector<32x96xbf16>, vector<4x96xf32> -> vector<4x96xf32>
      %143 = arith.addf %142, %65 : vector<4x96xf32>
      %144 = vector.extract_strided_slice %140 {offsets = [0, 0], sizes = [4, 64], strides = [1, 1]} : vector<4x96xf32> to vector<4x64xf32>
      %145 = vector.extract_strided_slice %143 {offsets = [0, 0], sizes = [4, 64], strides = [1, 1]} : vector<4x96xf32> to vector<4x64xf32>
      %146 = arith.addf %144, %145 : vector<4x64xf32>
      %147 = arith.negf %146 : vector<4x64xf32>
      %148 = math.exp %147 : vector<4x64xf32>
      %cst_97 = arith.constant 1.000000e+00 : f32
      %149 = vector.broadcast %cst_97 : f32 to vector<4x64xf32>
      %150 = arith.addf %149, %148 : vector<4x64xf32>
      %151 = arith.divf %149, %150 : vector<4x64xf32>
      %152 = vector.extract_strided_slice %151 {offsets = [0, 0], sizes = [4, 32], strides = [1, 1]} : vector<4x64xf32> to vector<4x32xf32>
      %153 = vector.extract_strided_slice %151 {offsets = [0, 32], sizes = [4, 32], strides = [1, 1]} : vector<4x64xf32> to vector<4x32xf32>
      %154 = vector.extract_strided_slice %140 {offsets = [0, 64], sizes = [4, 32], strides = [1, 1]} : vector<4x96xf32> to vector<4x32xf32>
      %155 = vector.extract_strided_slice %143 {offsets = [0, 64], sizes = [4, 32], strides = [1, 1]} : vector<4x96xf32> to vector<4x32xf32>
      %156 = arith.mulf %152, %155 : vector<4x32xf32>
      %157 = arith.addf %154, %156 : vector<4x32xf32>
      %158 = math.tanh %157 : vector<4x32xf32>
      %cst_98 = arith.constant 1.000000e+00 : f32
      %159 = vector.broadcast %cst_98 : f32 to vector<4x32xf32>
      %160 = arith.subf %159, %153 : vector<4x32xf32>
      %161 = arith.mulf %160, %158 : vector<4x32xf32>
      %162 = arith.mulf %153, %133 : vector<4x32xf32>
      %163 = arith.addf %161, %162 : vector<4x32xf32>
      %164 = arith.index_cast %c1_i32_93 : i32 to index
      %c0_99 = arith.constant 0 : index
      %c0_100 = arith.constant 0 : index
      %165 = vector.load %arg21[%164, %c0_99, %c0_100] : memref<8x4x32xf32, #tpu.memory_space<vmem>>, vector<1x4x32xf32>
      %166 = vector.shape_cast %165 : vector<1x4x32xf32> to vector<4x32xf32>
      %167 = vector.shape_cast %163 : vector<4x32xf32> to vector<1x4x32xf32>
      tpu.vector_store %arg21[%164, %c0_99, %c0_100], %167 {strides = array<i32>} : memref<8x4x32xf32, #tpu.memory_space<vmem>>, vector<1x4x32xf32>,
      %c2_i32_101 = arith.constant 2 : i32
      %168 = arith.index_cast %c2_i32_101 : i32 to index
      %c0_102 = arith.constant 0 : index
      %c0_103 = arith.constant 0 : index
      %169 = vector.load %arg20[%168, %c0_102, %c0_103] : memref<8x4x96xf32, #tpu.memory_space<vmem>>, vector<1x4x96xf32>
      %170 = vector.shape_cast %169 : vector<1x4x96xf32> to vector<4x96xf32>
      %171 = arith.truncf %163 : vector<4x32xf32> to vector<4x32xbf16>
      %cst_104 = arith.constant dense<0.000000e+00> : vector<4x96xf32>
      %172 = tpu.matmul %171, %62, %cst_104 {dimension_numbers = #tpu.dot_dimension_numbers<[1], [0], [0], [1], [0, 0, 1, 1], [], []>} : vector<4x32xbf16>, vector<32x96xbf16>, vector<4x96xf32> -> vector<4x96xf32>
      %173 = arith.addf %172, %65 : vector<4x96xf32>
      %174 = vector.extract_strided_slice %170 {offsets = [0, 0], sizes = [4, 64], strides = [1, 1]} : vector<4x96xf32> to vector<4x64xf32>
      %175 = vector.extract_strided_slice %173 {offsets = [0, 0], sizes = [4, 64], strides = [1, 1]} : vector<4x96xf32> to vector<4x64xf32>
      %176 = arith.addf %174, %175 : vector<4x64xf32>
      %177 = arith.negf %176 : vector<4x64xf32>
      %178 = math.exp %177 : vector<4x64xf32>
      %cst_105 = arith.constant 1.000000e+00 : f32
      %179 = vector.broadcast %cst_105 : f32 to vector<4x64xf32>
      %180 = arith.addf %179, %178 : vector<4x64xf32>
      %181 = arith.divf %179, %180 : vector<4x64xf32>
      %182 = vector.extract_strided_slice %181 {offsets = [0, 0], sizes = [4, 32], strides = [1, 1]} : vector<4x64xf32> to vector<4x32xf32>
      %183 = vector.extract_strided_slice %181 {offsets = [0, 32], sizes = [4, 32], strides = [1, 1]} : vector<4x64xf32> to vector<4x32xf32>
      %184 = vector.extract_strided_slice %170 {offsets = [0, 64], sizes = [4, 32], strides = [1, 1]} : vector<4x96xf32> to vector<4x32xf32>
      %185 = vector.extract_strided_slice %173 {offsets = [0, 64], sizes = [4, 32], strides = [1, 1]} : vector<4x96xf32> to vector<4x32xf32>
      %186 = arith.mulf %182, %185 : vector<4x32xf32>
      %187 = arith.addf %184, %186 : vector<4x32xf32>
      %188 = math.tanh %187 : vector<4x32xf32>
      %cst_106 = arith.constant 1.000000e+00 : f32
      %189 = vector.broadcast %cst_106 : f32 to vector<4x32xf32>
      %190 = arith.subf %189, %183 : vector<4x32xf32>
      %191 = arith.mulf %190, %188 : vector<4x32xf32>
      %192 = arith.mulf %183, %163 : vector<4x32xf32>
      %193 = arith.addf %191, %192 : vector<4x32xf32>
      %194 = arith.index_cast %c2_i32_101 : i32 to index
      %c0_107 = arith.constant 0 : index
      %c0_108 = arith.constant 0 : index
      %195 = vector.load %arg21[%194, %c0_107, %c0_108] : memref<8x4x32xf32, #tpu.memory_space<vmem>>, vector<1x4x32xf32>
      %196 = vector.shape_cast %195 : vector<1x4x32xf32> to vector<4x32xf32>
      %197 = vector.shape_cast %193 : vector<4x32xf32> to vector<1x4x32xf32>
      tpu.vector_store %arg21[%194, %c0_107, %c0_108], %197 {strides = array<i32>} : memref<8x4x32xf32, #tpu.memory_space<vmem>>, vector<1x4x32xf32>,
      %c3_i32 = arith.constant 3 : i32
      %198 = arith.index_cast %c3_i32 : i32 to index
      %c0_109 = arith.constant 0 : index
      %c0_110 = arith.constant 0 : index
      %199 = vector.load %arg20[%198, %c0_109, %c0_110] : memref<8x4x96xf32, #tpu.memory_space<vmem>>, vector<1x4x96xf32>
      %200 = vector.shape_cast %199 : vector<1x4x96xf32> to vector<4x96xf32>
      %201 = arith.truncf %193 : vector<4x32xf32> to vector<4x32xbf16>
      %cst_111 = arith.constant dense<0.000000e+00> : vector<4x96xf32>
      %202 = tpu.matmul %201, %62, %cst_111 {dimension_numbers = #tpu.dot_dimension_numbers<[1], [0], [0], [1], [0, 0, 1, 1], [], []>} : vector<4x32xbf16>, vector<32x96xbf16>, vector<4x96xf32> -> vector<4x96xf32>
      %203 = arith.addf %202, %65 : vector<4x96xf32>
      %204 = vector.extract_strided_slice %200 {offsets = [0, 0], sizes = [4, 64], strides = [1, 1]} : vector<4x96xf32> to vector<4x64xf32>
      %205 = vector.extract_strided_slice %203 {offsets = [0, 0], sizes = [4, 64], strides = [1, 1]} : vector<4x96xf32> to vector<4x64xf32>
      %206 = arith.addf %204, %205 : vector<4x64xf32>
      %207 = arith.negf %206 : vector<4x64xf32>
      %208 = math.exp %207 : vector<4x64xf32>
      %cst_112 = arith.constant 1.000000e+00 : f32
      %209 = vector.broadcast %cst_112 : f32 to vector<4x64xf32>
      %210 = arith.addf %209, %208 : vector<4x64xf32>
      %211 = arith.divf %209, %210 : vector<4x64xf32>
      %212 = vector.extract_strided_slice %211 {offsets = [0, 0], sizes = [4, 32], strides = [1, 1]} : vector<4x64xf32> to vector<4x32xf32>
      %213 = vector.extract_strided_slice %211 {offsets = [0, 32], sizes = [4, 32], strides = [1, 1]} : vector<4x64xf32> to vector<4x32xf32>
      %214 = vector.extract_strided_slice %200 {offsets = [0, 64], sizes = [4, 32], strides = [1, 1]} : vector<4x96xf32> to vector<4x32xf32>
      %215 = vector.extract_strided_slice %203 {offsets = [0, 64], sizes = [4, 32], strides = [1, 1]} : vector<4x96xf32> to vector<4x32xf32>
      %216 = arith.mulf %212, %215 : vector<4x32xf32>
      %217 = arith.addf %214, %216 : vector<4x32xf32>
      %218 = math.tanh %217 : vector<4x32xf32>
      %cst_113 = arith.constant 1.000000e+00 : f32
      %219 = vector.broadcast %cst_113 : f32 to vector<4x32xf32>
      %220 = arith.subf %219, %213 : vector<4x32xf32>
      %221 = arith.mulf %220, %218 : vector<4x32xf32>
      %222 = arith.mulf %213, %193 : vector<4x32xf32>
      %223 = arith.addf %221, %222 : vector<4x32xf32>
      %224 = arith.index_cast %c3_i32 : i32 to index
      %c0_114 = arith.constant 0 : index
      %c0_115 = arith.constant 0 : index
      %225 = vector.load %arg21[%224, %c0_114, %c0_115] : memref<8x4x32xf32, #tpu.memory_space<vmem>>, vector<1x4x32xf32>
      %226 = vector.shape_cast %225 : vector<1x4x32xf32> to vector<4x32xf32>
      %227 = vector.shape_cast %223 : vector<4x32xf32> to vector<1x4x32xf32>
      tpu.vector_store %arg21[%224, %c0_114, %c0_115], %227 {strides = array<i32>} : memref<8x4x32xf32, #tpu.memory_space<vmem>>, vector<1x4x32xf32>,
      %c4_i32 = arith.constant 4 : i32
      %228 = arith.index_cast %c4_i32 : i32 to index
      %c0_116 = arith.constant 0 : index
      %c0_117 = arith.constant 0 : index
      %229 = vector.load %arg20[%228, %c0_116, %c0_117] : memref<8x4x96xf32, #tpu.memory_space<vmem>>, vector<1x4x96xf32>
      %230 = vector.shape_cast %229 : vector<1x4x96xf32> to vector<4x96xf32>
      %231 = arith.truncf %223 : vector<4x32xf32> to vector<4x32xbf16>
      %cst_118 = arith.constant dense<0.000000e+00> : vector<4x96xf32>
      %232 = tpu.matmul %231, %62, %cst_118 {dimension_numbers = #tpu.dot_dimension_numbers<[1], [0], [0], [1], [0, 0, 1, 1], [], []>} : vector<4x32xbf16>, vector<32x96xbf16>, vector<4x96xf32> -> vector<4x96xf32>
      %233 = arith.addf %232, %65 : vector<4x96xf32>
      %234 = vector.extract_strided_slice %230 {offsets = [0, 0], sizes = [4, 64], strides = [1, 1]} : vector<4x96xf32> to vector<4x64xf32>
      %235 = vector.extract_strided_slice %233 {offsets = [0, 0], sizes = [4, 64], strides = [1, 1]} : vector<4x96xf32> to vector<4x64xf32>
      %236 = arith.addf %234, %235 : vector<4x64xf32>
      %237 = arith.negf %236 : vector<4x64xf32>
      %238 = math.exp %237 : vector<4x64xf32>
      %cst_119 = arith.constant 1.000000e+00 : f32
      %239 = vector.broadcast %cst_119 : f32 to vector<4x64xf32>
      %240 = arith.addf %239, %238 : vector<4x64xf32>
      %241 = arith.divf %239, %240 : vector<4x64xf32>
      %242 = vector.extract_strided_slice %241 {offsets = [0, 0], sizes = [4, 32], strides = [1, 1]} : vector<4x64xf32> to vector<4x32xf32>
      %243 = vector.extract_strided_slice %241 {offsets = [0, 32], sizes = [4, 32], strides = [1, 1]} : vector<4x64xf32> to vector<4x32xf32>
      %244 = vector.extract_strided_slice %230 {offsets = [0, 64], sizes = [4, 32], strides = [1, 1]} : vector<4x96xf32> to vector<4x32xf32>
      %245 = vector.extract_strided_slice %233 {offsets = [0, 64], sizes = [4, 32], strides = [1, 1]} : vector<4x96xf32> to vector<4x32xf32>
      %246 = arith.mulf %242, %245 : vector<4x32xf32>
      %247 = arith.addf %244, %246 : vector<4x32xf32>
      %248 = math.tanh %247 : vector<4x32xf32>
      %cst_120 = arith.constant 1.000000e+00 : f32
      %249 = vector.broadcast %cst_120 : f32 to vector<4x32xf32>
      %250 = arith.subf %249, %243 : vector<4x32xf32>
      %251 = arith.mulf %250, %248 : vector<4x32xf32>
      %252 = arith.mulf %243, %223 : vector<4x32xf32>
      %253 = arith.addf %251, %252 : vector<4x32xf32>
      %254 = arith.index_cast %c4_i32 : i32 to index
      %c0_121 = arith.constant 0 : index
      %c0_122 = arith.constant 0 : index
      %255 = vector.load %arg21[%254, %c0_121, %c0_122] : memref<8x4x32xf32, #tpu.memory_space<vmem>>, vector<1x4x32xf32>
      %256 = vector.shape_cast %255 : vector<1x4x32xf32> to vector<4x32xf32>
      %257 = vector.shape_cast %253 : vector<4x32xf32> to vector<1x4x32xf32>
      tpu.vector_store %arg21[%254, %c0_121, %c0_122], %257 {strides = array<i32>} : memref<8x4x32xf32, #tpu.memory_space<vmem>>, vector<1x4x32xf32>,
      %c5_i32 = arith.constant 5 : i32
      %258 = arith.index_cast %c5_i32 : i32 to index
      %c0_123 = arith.constant 0 : index
      %c0_124 = arith.constant 0 : index
      %259 = vector.load %arg20[%258, %c0_123, %c0_124] : memref<8x4x96xf32, #tpu.memory_space<vmem>>, vector<1x4x96xf32>
      %260 = vector.shape_cast %259 : vector<1x4x96xf32> to vector<4x96xf32>
      %261 = arith.truncf %253 : vector<4x32xf32> to vector<4x32xbf16>
      %cst_125 = arith.constant dense<0.000000e+00> : vector<4x96xf32>
      %262 = tpu.matmul %261, %62, %cst_125 {dimension_numbers = #tpu.dot_dimension_numbers<[1], [0], [0], [1], [0, 0, 1, 1], [], []>} : vector<4x32xbf16>, vector<32x96xbf16>, vector<4x96xf32> -> vector<4x96xf32>
      %263 = arith.addf %262, %65 : vector<4x96xf32>
      %264 = vector.extract_strided_slice %260 {offsets = [0, 0], sizes = [4, 64], strides = [1, 1]} : vector<4x96xf32> to vector<4x64xf32>
      %265 = vector.extract_strided_slice %263 {offsets = [0, 0], sizes = [4, 64], strides = [1, 1]} : vector<4x96xf32> to vector<4x64xf32>
      %266 = arith.addf %264, %265 : vector<4x64xf32>
      %267 = arith.negf %266 : vector<4x64xf32>
      %268 = math.exp %267 : vector<4x64xf32>
      %cst_126 = arith.constant 1.000000e+00 : f32
      %269 = vector.broadcast %cst_126 : f32 to vector<4x64xf32>
      %270 = arith.addf %269, %268 : vector<4x64xf32>
      %271 = arith.divf %269, %270 : vector<4x64xf32>
      %272 = vector.extract_strided_slice %271 {offsets = [0, 0], sizes = [4, 32], strides = [1, 1]} : vector<4x64xf32> to vector<4x32xf32>
      %273 = vector.extract_strided_slice %271 {offsets = [0, 32], sizes = [4, 32], strides = [1, 1]} : vector<4x64xf32> to vector<4x32xf32>
      %274 = vector.extract_strided_slice %260 {offsets = [0, 64], sizes = [4, 32], strides = [1, 1]} : vector<4x96xf32> to vector<4x32xf32>
      %275 = vector.extract_strided_slice %263 {offsets = [0, 64], sizes = [4, 32], strides = [1, 1]} : vector<4x96xf32> to vector<4x32xf32>
      %276 = arith.mulf %272, %275 : vector<4x32xf32>
      %277 = arith.addf %274, %276 : vector<4x32xf32>
      %278 = math.tanh %277 : vector<4x32xf32>
      %cst_127 = arith.constant 1.000000e+00 : f32
      %279 = vector.broadcast %cst_127 : f32 to vector<4x32xf32>
      %280 = arith.subf %279, %273 : vector<4x32xf32>
      %281 = arith.mulf %280, %278 : vector<4x32xf32>
      %282 = arith.mulf %273, %253 : vector<4x32xf32>
      %283 = arith.addf %281, %282 : vector<4x32xf32>
      %284 = arith.index_cast %c5_i32 : i32 to index
      %c0_128 = arith.constant 0 : index
      %c0_129 = arith.constant 0 : index
      %285 = vector.load %arg21[%284, %c0_128, %c0_129] : memref<8x4x32xf32, #tpu.memory_space<vmem>>, vector<1x4x32xf32>
      %286 = vector.shape_cast %285 : vector<1x4x32xf32> to vector<4x32xf32>
      %287 = vector.shape_cast %283 : vector<4x32xf32> to vector<1x4x32xf32>
      tpu.vector_store %arg21[%284, %c0_128, %c0_129], %287 {strides = array<i32>} : memref<8x4x32xf32, #tpu.memory_space<vmem>>, vector<1x4x32xf32>,
      %c6_i32 = arith.constant 6 : i32
      %288 = arith.index_cast %c6_i32 : i32 to index
      %c0_130 = arith.constant 0 : index
      %c0_131 = arith.constant 0 : index
      %289 = vector.load %arg20[%288, %c0_130, %c0_131] : memref<8x4x96xf32, #tpu.memory_space<vmem>>, vector<1x4x96xf32>
      %290 = vector.shape_cast %289 : vector<1x4x96xf32> to vector<4x96xf32>
      %291 = arith.truncf %283 : vector<4x32xf32> to vector<4x32xbf16>
      %cst_132 = arith.constant dense<0.000000e+00> : vector<4x96xf32>
      %292 = tpu.matmul %291, %62, %cst_132 {dimension_numbers = #tpu.dot_dimension_numbers<[1], [0], [0], [1], [0, 0, 1, 1], [], []>} : vector<4x32xbf16>, vector<32x96xbf16>, vector<4x96xf32> -> vector<4x96xf32>
      %293 = arith.addf %292, %65 : vector<4x96xf32>
      %294 = vector.extract_strided_slice %290 {offsets = [0, 0], sizes = [4, 64], strides = [1, 1]} : vector<4x96xf32> to vector<4x64xf32>
      %295 = vector.extract_strided_slice %293 {offsets = [0, 0], sizes = [4, 64], strides = [1, 1]} : vector<4x96xf32> to vector<4x64xf32>
      %296 = arith.addf %294, %295 : vector<4x64xf32>
      %297 = arith.negf %296 : vector<4x64xf32>
      %298 = math.exp %297 : vector<4x64xf32>
      %cst_133 = arith.constant 1.000000e+00 : f32
      %299 = vector.broadcast %cst_133 : f32 to vector<4x64xf32>
      %300 = arith.addf %299, %298 : vector<4x64xf32>
      %301 = arith.divf %299, %300 : vector<4x64xf32>
      %302 = vector.extract_strided_slice %301 {offsets = [0, 0], sizes = [4, 32], strides = [1, 1]} : vector<4x64xf32> to vector<4x32xf32>
      %303 = vector.extract_strided_slice %301 {offsets = [0, 32], sizes = [4, 32], strides = [1, 1]} : vector<4x64xf32> to vector<4x32xf32>
      %304 = vector.extract_strided_slice %290 {offsets = [0, 64], sizes = [4, 32], strides = [1, 1]} : vector<4x96xf32> to vector<4x32xf32>
      %305 = vector.extract_strided_slice %293 {offsets = [0, 64], sizes = [4, 32], strides = [1, 1]} : vector<4x96xf32> to vector<4x32xf32>
      %306 = arith.mulf %302, %305 : vector<4x32xf32>
      %307 = arith.addf %304, %306 : vector<4x32xf32>
      %308 = math.tanh %307 : vector<4x32xf32>
      %cst_134 = arith.constant 1.000000e+00 : f32
      %309 = vector.broadcast %cst_134 : f32 to vector<4x32xf32>
      %310 = arith.subf %309, %303 : vector<4x32xf32>
      %311 = arith.mulf %310, %308 : vector<4x32xf32>
      %312 = arith.mulf %303, %283 : vector<4x32xf32>
      %313 = arith.addf %311, %312 : vector<4x32xf32>
      %314 = arith.index_cast %c6_i32 : i32 to index
      %c0_135 = arith.constant 0 : index
      %c0_136 = arith.constant 0 : index
      %315 = vector.load %arg21[%314, %c0_135, %c0_136] : memref<8x4x32xf32, #tpu.memory_space<vmem>>, vector<1x4x32xf32>
      %316 = vector.shape_cast %315 : vector<1x4x32xf32> to vector<4x32xf32>
      %317 = vector.shape_cast %313 : vector<4x32xf32> to vector<1x4x32xf32>
      tpu.vector_store %arg21[%314, %c0_135, %c0_136], %317 {strides = array<i32>} : memref<8x4x32xf32, #tpu.memory_space<vmem>>, vector<1x4x32xf32>,
      %c7_i32 = arith.constant 7 : i32
      %318 = arith.index_cast %c7_i32 : i32 to index
      %c0_137 = arith.constant 0 : index
      %c0_138 = arith.constant 0 : index
      %319 = vector.load %arg20[%318, %c0_137, %c0_138] : memref<8x4x96xf32, #tpu.memory_space<vmem>>, vector<1x4x96xf32>
      %320 = vector.shape_cast %319 : vector<1x4x96xf32> to vector<4x96xf32>
      %321 = arith.truncf %313 : vector<4x32xf32> to vector<4x32xbf16>
      %cst_139 = arith.constant dense<0.000000e+00> : vector<4x96xf32>
      %322 = tpu.matmul %321, %62, %cst_139 {dimension_numbers = #tpu.dot_dimension_numbers<[1], [0], [0], [1], [0, 0, 1, 1], [], []>} : vector<4x32xbf16>, vector<32x96xbf16>, vector<4x96xf32> -> vector<4x96xf32>
      %323 = arith.addf %322, %65 : vector<4x96xf32>
      %324 = vector.extract_strided_slice %320 {offsets = [0, 0], sizes = [4, 64], strides = [1, 1]} : vector<4x96xf32> to vector<4x64xf32>
      %325 = vector.extract_strided_slice %323 {offsets = [0, 0], sizes = [4, 64], strides = [1, 1]} : vector<4x96xf32> to vector<4x64xf32>
      %326 = arith.addf %324, %325 : vector<4x64xf32>
      %327 = arith.negf %326 : vector<4x64xf32>
      %328 = math.exp %327 : vector<4x64xf32>
      %cst_140 = arith.constant 1.000000e+00 : f32
      %329 = vector.broadcast %cst_140 : f32 to vector<4x64xf32>
      %330 = arith.addf %329, %328 : vector<4x64xf32>
      %331 = arith.divf %329, %330 : vector<4x64xf32>
      %332 = vector.extract_strided_slice %331 {offsets = [0, 0], sizes = [4, 32], strides = [1, 1]} : vector<4x64xf32> to vector<4x32xf32>
      %333 = vector.extract_strided_slice %331 {offsets = [0, 32], sizes = [4, 32], strides = [1, 1]} : vector<4x64xf32> to vector<4x32xf32>
      %334 = vector.extract_strided_slice %320 {offsets = [0, 64], sizes = [4, 32], strides = [1, 1]} : vector<4x96xf32> to vector<4x32xf32>
      %335 = vector.extract_strided_slice %323 {offsets = [0, 64], sizes = [4, 32], strides = [1, 1]} : vector<4x96xf32> to vector<4x32xf32>
      %336 = arith.mulf %332, %335 : vector<4x32xf32>
      %337 = arith.addf %334, %336 : vector<4x32xf32>
      %338 = math.tanh %337 : vector<4x32xf32>
      %cst_141 = arith.constant 1.000000e+00 : f32
      %339 = vector.broadcast %cst_141 : f32 to vector<4x32xf32>
      %340 = arith.subf %339, %333 : vector<4x32xf32>
      %341 = arith.mulf %340, %338 : vector<4x32xf32>
      %342 = arith.mulf %333, %313 : vector<4x32xf32>
      %343 = arith.addf %341, %342 : vector<4x32xf32>
      %344 = arith.index_cast %c7_i32 : i32 to index
      %c0_142 = arith.constant 0 : index
      %c0_143 = arith.constant 0 : index
      %345 = vector.load %arg21[%344, %c0_142, %c0_143] : memref<8x4x32xf32, #tpu.memory_space<vmem>>, vector<1x4x32xf32>
      %346 = vector.shape_cast %345 : vector<1x4x32xf32> to vector<4x32xf32>
      %347 = vector.shape_cast %343 : vector<4x32xf32> to vector<1x4x32xf32>
      tpu.vector_store %arg21[%344, %c0_142, %c0_143], %347 {strides = array<i32>} : memref<8x4x32xf32, #tpu.memory_space<vmem>>, vector<1x4x32xf32>,
      %c8_i32_144 = arith.constant 8 : i32
      %c0_145 = arith.constant 0 : index
      %c0_146 = arith.constant 0 : index
      %c0_147 = arith.constant 0 : index
      %348 = vector.load %arg21[%c0_145, %c0_146, %c0_147] : memref<8x4x32xf32, #tpu.memory_space<vmem>>, vector<8x4x32xf32>
      %349 = vector.extract_strided_slice %67 {offsets = [0, 0], sizes = [4, 1], strides = [1, 1]} : vector<4x2xf32> to vector<4x1xf32>
      %350 = vector.shape_cast %349 : vector<4x1xf32> to vector<1x4x1xf32>
      %351 = vector.extract_strided_slice %348 {offsets = [0, 0, 0], sizes = [8, 4, 16], strides = [1, 1, 1]} : vector<8x4x32xf32> to vector<8x4x16xf32>
      %352 = vector.broadcast %350 : vector<1x4x1xf32> to vector<8x4x16xf32>
      %353 = arith.mulf %352, %351 : vector<8x4x16xf32>
      %354 = vector.extract_strided_slice %67 {offsets = [0, 1], sizes = [4, 1], strides = [1, 1]} : vector<4x2xf32> to vector<4x1xf32>
      %355 = vector.shape_cast %354 : vector<4x1xf32> to vector<1x4x1xf32>
      %356 = vector.extract_strided_slice %348 {offsets = [0, 0, 16], sizes = [8, 4, 16], strides = [1, 1, 1]} : vector<8x4x32xf32> to vector<8x4x16xf32>
      %357 = vector.broadcast %355 : vector<1x4x1xf32> to vector<8x4x16xf32>
      %358 = arith.mulf %357, %356 : vector<8x4x16xf32>
      %359 = arith.addf %353, %358 : vector<8x4x16xf32>
      %c0_148 = arith.constant 0 : index
      %360 = arith.index_cast %78 : i32 to index
      %c0_149 = arith.constant 0 : index
      %c0_150 = arith.constant 0 : index
      %361 = vector.load %arg17[%c0_148, %360, %c0_149, %c0_150] : memref<1x16x4x16xf32, #tpu.memory_space<vmem>>, vector<1x8x4x16xf32>
      %362 = vector.shape_cast %361 : vector<1x8x4x16xf32> to vector<8x4x16xf32>
      %363 = vector.shape_cast %359 : vector<8x4x16xf32> to vector<1x8x4x16xf32>
      tpu.vector_store %arg17[%c0_148, %360, %c0_149, %c0_150], %363 {strides = array<i32>} : memref<1x16x4x16xf32, #tpu.memory_space<vmem>>, vector<1x8x4x16xf32>,
      scf.yield %343 : vector<4x32xf32>
    }
    %c2_i32_51 = arith.constant 2 : i32
    %c0_52 = arith.constant 0 : index
    %c0_53 = arith.constant 0 : index
    %c0_54 = arith.constant 0 : index
    %c0_55 = arith.constant 0 : index
    %71 = vector.load %arg17[%c0_52, %c0_53, %c0_54, %c0_55] : memref<1x16x4x16xf32, #tpu.memory_space<vmem>>, vector<1x16x4x16xf32>
    %72 = vector.shape_cast %71 : vector<1x16x4x16xf32> to vector<16x4x16xf32>
    %c0_56 = arith.constant 0 : index
    %c0_57 = arith.constant 0 : index
    %c0_58 = arith.constant 0 : index
    %73 = vector.load %arg18[%c0_56, %c0_57, %c0_58] : memref<16x4x16xf32, #tpu.memory_space<vmem>>, vector<16x4x16xf32>
    %74 = arith.addf %72, %73 : vector<16x4x16xf32>
    %c0_59 = arith.constant 0 : index
    %c0_60 = arith.constant 0 : index
    %c0_61 = arith.constant 0 : index
    %c0_62 = arith.constant 0 : index
    %75 = vector.load %arg17[%c0_59, %c0_60, %c0_61, %c0_62] : memref<1x16x4x16xf32, #tpu.memory_space<vmem>>, vector<1x16x4x16xf32>
    %76 = vector.shape_cast %75 : vector<1x16x4x16xf32> to vector<16x4x16xf32>
    %77 = vector.shape_cast %74 : vector<16x4x16xf32> to vector<1x16x4x16xf32>
    tpu.vector_store %arg17[%c0_59, %c0_60, %c0_61, %c0_62], %77 {strides = array<i32>} : memref<1x16x4x16xf32, #tpu.memory_space<vmem>>, vector<1x16x4x16xf32>,
    return
  }
  func.func @transform_0(%arg0: i32) -> (i32, i32, i32, i32) {
    %c0_i32 = arith.constant 0 : i32
    %c0_i32_0 = arith.constant 0 : i32
    %c0_i32_1 = arith.constant 0 : i32
    %c0_i32_2 = arith.constant 0 : i32
    return %arg0, %c0_i32, %c0_i32_0, %c0_i32_1 : i32, i32, i32, i32
  }
  func.func @transform_1(%arg0: i32) -> (i32, i32) {
    %c0_i32 = arith.constant 0 : i32
    %c0_i32_0 = arith.constant 0 : i32
    %c0_i32_1 = arith.constant 0 : i32
    return %c0_i32, %c0_i32_0 : i32, i32
  }
  func.func @transform_2(%arg0: i32) -> (i32, i32, i32) {
    %c0_i32 = arith.constant 0 : i32
    %c0_i32_0 = arith.constant 0 : i32
    %c0_i32_1 = arith.constant 0 : i32
    %c0_i32_2 = arith.constant 0 : i32
    return %c0_i32, %c0_i32_0, %c0_i32_1 : i32, i32, i32
  }
  func.func @transform_3(%arg0: i32) -> (i32, i32) {
    %c0_i32 = arith.constant 0 : i32
    %c0_i32_0 = arith.constant 0 : i32
    %c0_i32_1 = arith.constant 0 : i32
    return %c0_i32, %c0_i32_0 : i32, i32
  }
  func.func @transform_4(%arg0: i32) -> (i32, i32) {
    %c0_i32 = arith.constant 0 : i32
    %c0_i32_0 = arith.constant 0 : i32
    %c0_i32_1 = arith.constant 0 : i32
    return %c0_i32, %c0_i32_0 : i32, i32
  }
  func.func @transform_5(%arg0: i32) -> (i32, i32) {
    %c0_i32 = arith.constant 0 : i32
    %c0_i32_0 = arith.constant 0 : i32
    %c0_i32_1 = arith.constant 0 : i32
    return %c0_i32, %c0_i32_0 : i32, i32
  }
  func.func @transform_6(%arg0: i32) -> (i32, i32) {
    %c0_i32 = arith.constant 0 : i32
    %c0_i32_0 = arith.constant 0 : i32
    %c0_i32_1 = arith.constant 0 : i32
    return %c0_i32, %c0_i32_0 : i32, i32
  }
  func.func @transform_7(%arg0: i32) -> (i32, i32) {
    %c0_i32 = arith.constant 0 : i32
    %c0_i32_0 = arith.constant 0 : i32
    %c0_i32_1 = arith.constant 0 : i32
    return %c0_i32, %c0_i32_0 : i32, i32
  }
  func.func @transform_8(%arg0: i32) -> (i32, i32) {
    %c0_i32 = arith.constant 0 : i32
    %c0_i32_0 = arith.constant 0 : i32
    %c0_i32_1 = arith.constant 0 : i32
    return %c0_i32, %c0_i32_0 : i32, i32
  }
  func.func @transform_9(%arg0: i32) -> (i32, i32) {
    %c0_i32 = arith.constant 0 : i32
    %c0_i32_0 = arith.constant 0 : i32
    %c0_i32_1 = arith.constant 0 : i32
    return %c0_i32, %c0_i32_0 : i32, i32
  }
  func.func @transform_10(%arg0: i32) -> (i32, i32) {
    %c0_i32 = arith.constant 0 : i32
    %c0_i32_0 = arith.constant 0 : i32
    %c0_i32_1 = arith.constant 0 : i32
    return %c0_i32, %c0_i32_0 : i32, i32
  }
  func.func @transform_11(%arg0: i32) -> (i32, i32, i32) {
    %c0_i32 = arith.constant 0 : i32
    %c0_i32_0 = arith.constant 0 : i32
    %c0_i32_1 = arith.constant 0 : i32
    %c0_i32_2 = arith.constant 0 : i32
    return %c0_i32, %c0_i32_0, %c0_i32_1 : i32, i32, i32
  }
  func.func @transform_12(%arg0: i32) -> (i32, i32) {
    %c0_i32 = arith.constant 0 : i32
    %c0_i32_0 = arith.constant 0 : i32
    %c0_i32_1 = arith.constant 0 : i32
    return %c0_i32, %c0_i32_0 : i32, i32
  }
  func.func @transform_13(%arg0: i32) -> (i32, i32) {
    %c0_i32 = arith.constant 0 : i32
    %c0_i32_0 = arith.constant 0 : i32
    %c0_i32_1 = arith.constant 0 : i32
    return %c0_i32, %c0_i32_0 : i32, i32
  }
  func.func @transform_14(%arg0: i32) -> (i32, i32) {
    %c0_i32 = arith.constant 0 : i32
    %c0_i32_0 = arith.constant 0 : i32
    %c0_i32_1 = arith.constant 0 : i32
    return %c0_i32, %c0_i32_0 : i32, i32
  }
  func.func @transform_15(%arg0: i32) -> (i32, i32) {
    %c0_i32 = arith.constant 0 : i32
    %c0_i32_0 = arith.constant 0 : i32
    %c0_i32_1 = arith.constant 0 : i32
    return %c0_i32, %c0_i32_0 : i32, i32
  }
  func.func @transform_16(%arg0: i32) -> (i32, i32, i32, i32) {
    %c0_i32 = arith.constant 0 : i32
    %c0_i32_0 = arith.constant 0 : i32
    %c0_i32_1 = arith.constant 0 : i32
    %c0_i32_2 = arith.constant 0 : i32
    return %arg0, %c0_i32, %c0_i32_0, %c0_i32_1 : i32, i32, i32, i32
  }
}

</mosaic_0001>

<llo_original>
// kernel: tpu_custom_call.1
$region0: #{tpu_custom_call.1}
  #allocation0 [shape = 'u32[]', space=smem, size = 0x4, offset = 0x4, fixed_abs, tag = 'smem constant byte address 0x4 - core index']
  #allocation1 [shape = 'u32[144,128]{1,0:T(1,128)}', space=vmem, size = 0x12000, scoped, tag = 'internal scratch']
  #allocation2 [shape = 'f32[16,4,16]{2,1,0:T(4,128)}', space=vmem, size = 0x8000, scoped, tag = 'scratch operand']
  #allocation3 [shape = 'f32[18,4,16]{2,1,0:T(4,128)}', space=vmem, size = 0x9000, scoped, tag = 'scratch operand']
  #allocation4 [shape = 'f32[8,4,96]{2,1,0:T(4,128)}', space=vmem, size = 0x4000, scoped, tag = 'scratch operand']
  #allocation5 [shape = 'f32[8,4,32]{2,1,0:T(4,128)}', space=vmem, size = 0x4000, scoped, tag = 'scratch operand']
  %s0 = inlined_call_operand.vmem [shape: f32[2,18,4,4], index: 0, kind: input, shape index: {}]
  %s1 = inlined_call_operand.vmem [shape: f32[4,4], index: 1, kind: input, shape index: {}]
  %s2 = inlined_call_operand.vmem [shape: bf16[3,4,96], index: 2, kind: input, shape index: {}]
  %s3 = inlined_call_operand.vmem [shape: f32[1,96], index: 3, kind: input, shape index: {}]
  %s4 = inlined_call_operand.vmem [shape: bf16[32,96], index: 4, kind: input, shape index: {}]
  %s5 = inlined_call_operand.vmem [shape: f32[1,96], index: 5, kind: input, shape index: {}]
  %s6 = inlined_call_operand.vmem [shape: f32[4,2], index: 6, kind: input, shape index: {}]
  %s7 = inlined_call_operand.vmem [shape: bf16[16,16], index: 7, kind: input, shape index: {}]
  %s8 = inlined_call_operand.vmem [shape: f32[1,16], index: 8, kind: input, shape index: {}]
  %s9 = inlined_call_operand.vmem [shape: f32[1,16], index: 9, kind: input, shape index: {}]
  %s10 = inlined_call_operand.vmem [shape: f32[1,16], index: 10, kind: input, shape index: {}]
  %s11 = inlined_call_operand.vmem [shape: bf16[3,16,96], index: 11, kind: input, shape index: {}]
  %s12 = inlined_call_operand.vmem [shape: f32[1,96], index: 12, kind: input, shape index: {}]
  %s13 = inlined_call_operand.vmem [shape: bf16[32,96], index: 13, kind: input, shape index: {}]
  %s14 = inlined_call_operand.vmem [shape: f32[1,96], index: 14, kind: input, shape index: {}]
  %s15 = inlined_call_operand.vmem [shape: f32[4,2], index: 15, kind: input, shape index: {}]
  %s16 = inlined_call_operand.hbm [shape: f32[2,16,4,16], index: 16, kind: output, shape index: {}]
  %s17 = sld [smem:[#allocation0]]
  $region111: #{tpu_custom_call.1} parent=0
    _
  %s19 = ssub.s32 1, %s17
  %s20 = scalar_select 0, %s19, %s17
  $region1: #{tpu_custom_call.1} parent=0
    #allocation6 [shape = 'u8[65536]{0}', space=vmem, size = 0x10000, scoped, tag = 'output window, operand 0']
    #allocation7 [shape = 's32[2]{0}', space=sflag, size = 0x8, scoped, tag = 'scoped memory for tpu_custom_call.1']
    %21 = vsyncpa [#allocation7], 0
    %s22 = scalar_lea.sflag [#allocation7], 1
    %23 = vsyncpa %s22, 0
    loop: start=0, step=1, limit=4
    $region2: #{tpu_custom_call.1} parent=1 // loop_pre_header
      _
    $region3: #{tpu_custom_call.1} parent=1 // loop_header
      %s25 = sphi 0, %s29
      %p26 = scmp.ge.s32.totalorder %s25, 4
      %s35 = sphi 0, %s37
      %s38 = sphi 0, %s35
      %s39 = sphi 0, %s38
      %s55 = sphi 0, %s39
      %s59 = sphi 0, %s59
      %s61 = sphi 0, %s59
      %s62 = sphi 0, %s61
      %s76 = sphi 0, %s62
      %s80 = sphi 0, %s80
      %s82 = sphi 0, %s80
      %s83 = sphi 0, %s82
      %s97 = sphi 0, %s83
      %s101 = sphi 0, %s101
      %s103 = sphi 0, %s101
      %s104 = sphi 0, %s103
      %s118 = sphi 0, %s104
      %s122 = sphi 0, %s122
      %s124 = sphi 0, %s122
      %s125 = sphi 0, %s124
      %s139 = sphi 0, %s125
      %s143 = sphi 0, %s143
      %s145 = sphi 0, %s143
      %s146 = sphi 0, %s145
      %s160 = sphi 0, %s146
      %s164 = sphi 0, %s164
      %s166 = sphi 0, %s164
      %s167 = sphi 0, %s166
      %s181 = sphi 0, %s167
      %s185 = sphi 0, %s185
      %s187 = sphi 0, %s185
      %s188 = sphi 0, %s187
      %s202 = sphi 0, %s188
      %s206 = sphi 0, %s206
      %s208 = sphi 0, %s206
      %s209 = sphi 0, %s208
      %s223 = sphi 0, %s209
      %s227 = sphi 0, %s227
      %s229 = sphi 0, %s227
      %s230 = sphi 0, %s229
      %s244 = sphi 0, %s230
      %s248 = sphi 0, %s248
      %s250 = sphi 0, %s248
      %s251 = sphi 0, %s250
      %s265 = sphi 0, %s251
      %s269 = sphi 0, %s269
      %s271 = sphi 0, %s269
      %s272 = sphi 0, %s271
      %s286 = sphi 0, %s272
      %s290 = sphi 0, %s290
      %s292 = sphi 0, %s290
      %s293 = sphi 0, %s292
      %s307 = sphi 0, %s293
      %s311 = sphi 0, %s311
      %s313 = sphi 0, %s311
      %s314 = sphi 0, %s313
      %s328 = sphi 0, %s314
      %s332 = sphi 0, %s332
      %s334 = sphi 0, %s332
      %s335 = sphi 0, %s334
      %s349 = sphi 0, %s335
      %s353 = sphi 0, %s353
      %s355 = sphi 0, %s353
      %s356 = sphi 0, %s355
      %s370 = sphi 0, %s356
      %s376 = sphi 0, %s378
      %s379 = sphi 0, %s376
      %s380 = sphi 0, %s379
      %s396 = sphi 0, %s380
    $region4: #{tpu_custom_call.1} parent=1 // loop_header_branch
      %28 = sbr.rel (%p26) target = $region8
    $region5: #{tpu_custom_call.1} parent=1 // loop_body
      %s30 = ssub.s32 %s25, 1
      %s31 = ssub.s32 %s25, 2
      %s32 = sadd.s32 %s25, 1
      %s33 = ssub.s32 %s25, %s32
      %p34 = scmp.eq.s32.totalorder %s33, 0
      %s36 = sadd.s32 %s35, 1
      %s37 = scalar_select %p34, %s35, %s36
      %p40 = pneg %p34
      %p41 = scmp.eq.s32.totalorder %s25, 1
      %p42 = por %p40, %p41
      %p43 = scmp.ne.s32.totalorder %s35, %s38
      %p44 = scmp.eq.s32.totalorder %s25, 0
      %p45 = por %p43, %p44
      %p46 = scmp.ne.s32.totalorder %s35, %s38
      %p47 = scmp.eq.s32.totalorder %s30, 1
      %p48 = por %p46, %p47
      %p49 = scmp.ne.s32.totalorder %s38, %s39
      %p50 = scmp.eq.s32.totalorder %s30, 0
      %p51 = por %p49, %p50
      %p52 = scmp.ne.s32.totalorder %s38, %s39
      %p53 = scmp.eq.s32.totalorder %s31, 1
      %p54 = por %p52, %p53
      %p56 = scmp.ne.s32.totalorder %s39, %s55
      %p57 = scmp.eq.s32.totalorder %s31, 0
      %p58 = por %p56, %p57
      %s60 = sadd.s32 %s59, 1
      %p63 = scmp.eq.s32.totalorder %s25, 1
      %p64 = scmp.ne.s32.totalorder %s59, %s61
      %p65 = scmp.eq.s32.totalorder %s25, 0
      %p66 = por %p64, %p65
      %p67 = scmp.ne.s32.totalorder %s59, %s61
      %p68 = scmp.eq.s32.totalorder %s30, 1
      %p69 = por %p67, %p68
      %p70 = scmp.ne.s32.totalorder %s61, %s62
      %p71 = scmp.eq.s32.totalorder %s30, 0
      %p72 = por %p70, %p71
      %p73 = scmp.ne.s32.totalorder %s61, %s62
      %p74 = scmp.eq.s32.totalorder %s31, 1
      %p75 = por %p73, %p74
      %p77 = scmp.ne.s32.totalorder %s62, %s76
      %p78 = scmp.eq.s32.totalorder %s31, 0
      %p79 = por %p77, %p78
      %s81 = sadd.s32 %s80, 1
      %p84 = scmp.eq.s32.totalorder %s25, 1
      %p85 = scmp.ne.s32.totalorder %s80, %s82
      %p86 = scmp.eq.s32.totalorder %s25, 0
      %p87 = por %p85, %p86
      %p88 = scmp.ne.s32.totalorder %s80, %s82
      %p89 = scmp.eq.s32.totalorder %s30, 1
      %p90 = por %p88, %p89
      %p91 = scmp.ne.s32.totalorder %s82, %s83
      %p92 = scmp.eq.s32.totalorder %s30, 0
      %p93 = por %p91, %p92
      %p94 = scmp.ne.s32.totalorder %s82, %s83
      %p95 = scmp.eq.s32.totalorder %s31, 1
      %p96 = por %p94, %p95
      %p98 = scmp.ne.s32.totalorder %s83, %s97
      %p99 = scmp.eq.s32.totalorder %s31, 0
      %p100 = por %p98, %p99
      %s102 = sadd.s32 %s101, 1
      %p105 = scmp.eq.s32.totalorder %s25, 1
      %p106 = scmp.ne.s32.totalorder %s101, %s103
      %p107 = scmp.eq.s32.totalorder %s25, 0
      %p108 = por %p106, %p107
      %p109 = scmp.ne.s32.totalorder %s101, %s103
      %p110 = scmp.eq.s32.totalorder %s30, 1
      %p111 = por %p109, %p110
      %p112 = scmp.ne.s32.totalorder %s103, %s104
      %p113 = scmp.eq.s32.totalorder %s30, 0
      %p114 = por %p112, %p113
      %p115 = scmp.ne.s32.totalorder %s103, %s104
      %p116 = scmp.eq.s32.totalorder %s31, 1
      %p117 = por %p115, %p116
      %p119 = scmp.ne.s32.totalorder %s104, %s118
      %p120 = scmp.eq.s32.totalorder %s31, 0
      %p121 = por %p119, %p120
      %s123 = sadd.s32 %s122, 1
      %p126 = scmp.eq.s32.totalorder %s25, 1
      %p127 = scmp.ne.s32.totalorder %s122, %s124
      %p128 = scmp.eq.s32.totalorder %s25, 0
      %p129 = por %p127, %p128
      %p130 = scmp.ne.s32.totalorder %s122, %s124
      %p131 = scmp.eq.s32.totalorder %s30, 1
      %p132 = por %p130, %p131
      %p133 = scmp.ne.s32.totalorder %s124, %s125
      %p134 = scmp.eq.s32.totalorder %s30, 0
      %p135 = por %p133, %p134
      %p136 = scmp.ne.s32.totalorder %s124, %s125
      %p137 = scmp.eq.s32.totalorder %s31, 1
      %p138 = por %p136, %p137
      %p140 = scmp.ne.s32.totalorder %s125, %s139
      %p141 = scmp.eq.s32.totalorder %s31, 0
      %p142 = por %p140, %p141
      %s144 = sadd.s32 %s143, 1
      %p147 = scmp.eq.s32.totalorder %s25, 1
      %p148 = scmp.ne.s32.totalorder %s143, %s145
      %p149 = scmp.eq.s32.totalorder %s25, 0
      %p150 = por %p148, %p149
      %p151 = scmp.ne.s32.totalorder %s143, %s145
      %p152 = scmp.eq.s32.totalorder %s30, 1
      %p153 = por %p151, %p152
      %p154 = scmp.ne.s32.totalorder %s145, %s146
      %p155 = scmp.eq.s32.totalorder %s30, 0
      %p156 = por %p154, %p155
      %p157 = scmp.ne.s32.totalorder %s145, %s146
      %p158 = scmp.eq.s32.totalorder %s31, 1
      %p159 = por %p157, %p158
      %p161 = scmp.ne.s32.totalorder %s146, %s160
      %p162 = scmp.eq.s32.totalorder %s31, 0
      %p163 = por %p161, %p162
      %s165 = sadd.s32 %s164, 1
      %p168 = scmp.eq.s32.totalorder %s25, 1
      %p169 = scmp.ne.s32.totalorder %s164, %s166
      %p170 = scmp.eq.s32.totalorder %s25, 0
      %p171 = por %p169, %p170
      %p172 = scmp.ne.s32.totalorder %s164, %s166
      %p173 = scmp.eq.s32.totalorder %s30, 1
      %p174 = por %p172, %p173
      %p175 = scmp.ne.s32.totalorder %s166, %s167
      %p176 = scmp.eq.s32.totalorder %s30, 0
      %p177 = por %p175, %p176
      %p178 = scmp.ne.s32.totalorder %s166, %s167
      %p179 = scmp.eq.s32.totalorder %s31, 1
      %p180 = por %p178, %p179
      %p182 = scmp.ne.s32.totalorder %s167, %s181
      %p183 = scmp.eq.s32.totalorder %s31, 0
      %p184 = por %p182, %p183
      %s186 = sadd.s32 %s185, 1
      %p189 = scmp.eq.s32.totalorder %s25, 1
      %p190 = scmp.ne.s32.totalorder %s185, %s187
      %p191 = scmp.eq.s32.totalorder %s25, 0
      %p192 = por %p190, %p191
      %p193 = scmp.ne.s32.totalorder %s185, %s187
      %p194 = scmp.eq.s32.totalorder %s30, 1
      %p195 = por %p193, %p194
      %p196 = scmp.ne.s32.totalorder %s187, %s188
      %p197 = scmp.eq.s32.totalorder %s30, 0
      %p198 = por %p196, %p197
      %p199 = scmp.ne.s32.totalorder %s187, %s188
      %p200 = scmp.eq.s32.totalorder %s31, 1
      %p201 = por %p199, %p200
      %p203 = scmp.ne.s32.totalorder %s188, %s202
      %p204 = scmp.eq.s32.totalorder %s31, 0
      %p205 = por %p203, %p204
      %s207 = sadd.s32 %s206, 1
      %p210 = scmp.eq.s32.totalorder %s25, 1
      %p211 = scmp.ne.s32.totalorder %s206, %s208
      %p212 = scmp.eq.s32.totalorder %s25, 0
      %p213 = por %p211, %p212
      %p214 = scmp.ne.s32.totalorder %s206, %s208
      %p215 = scmp.eq.s32.totalorder %s30, 1
      %p216 = por %p214, %p215
      %p217 = scmp.ne.s32.totalorder %s208, %s209
      %p218 = scmp.eq.s32.totalorder %s30, 0
      %p219 = por %p217, %p218
      %p220 = scmp.ne.s32.totalorder %s208, %s209
      %p221 = scmp.eq.s32.totalorder %s31, 1
      %p222 = por %p220, %p221
      %p224 = scmp.ne.s32.totalorder %s209, %s223
      %p225 = scmp.eq.s32.totalorder %s31, 0
      %p226 = por %p224, %p225
      %s228 = sadd.s32 %s227, 1
      %p231 = scmp.eq.s32.totalorder %s25, 1
      %p232 = scmp.ne.s32.totalorder %s227, %s229
      %p233 = scmp.eq.s32.totalorder %s25, 0
      %p234 = por %p232, %p233
      %p235 = scmp.ne.s32.totalorder %s227, %s229
      %p236 = scmp.eq.s32.totalorder %s30, 1
      %p237 = por %p235, %p236
      %p238 = scmp.ne.s32.totalorder %s229, %s230
      %p239 = scmp.eq.s32.totalorder %s30, 0
      %p240 = por %p238, %p239
      %p241 = scmp.ne.s32.totalorder %s229, %s230
      %p242 = scmp.eq.s32.totalorder %s31, 1
      %p243 = por %p241, %p242
      %p245 = scmp.ne.s32.totalorder %s230, %s244
      %p246 = scmp.eq.s32.totalorder %s31, 0
      %p247 = por %p245, %p246
      %s249 = sadd.s32 %s248, 1
      %p252 = scmp.eq.s32.totalorder %s25, 1
      %p253 = scmp.ne.s32.totalorder %s248, %s250
      %p254 = scmp.eq.s32.totalorder %s25, 0
      %p255 = por %p253, %p254
      %p256 = scmp.ne.s32.totalorder %s248, %s250
      %p257 = scmp.eq.s32.totalorder %s30, 1
      %p258 = por %p256, %p257
      %p259 = scmp.ne.s32.totalorder %s250, %s251
      %p260 = scmp.eq.s32.totalorder %s30, 0
      %p261 = por %p259, %p260
      %p262 = scmp.ne.s32.totalorder %s250, %s251
      %p263 = scmp.eq.s32.totalorder %s31, 1
      %p264 = por %p262, %p263
      %p266 = scmp.ne.s32.totalorder %s251, %s265
      %p267 = scmp.eq.s32.totalorder %s31, 0
      %p268 = por %p266, %p267
      %s270 = sadd.s32 %s269, 1
      %p273 = scmp.eq.s32.totalorder %s25, 1
      %p274 = scmp.ne.s32.totalorder %s269, %s271
      %p275 = scmp.eq.s32.totalorder %s25, 0
      %p276 = por %p274, %p275
      %p277 = scmp.ne.s32.totalorder %s269, %s271
      %p278 = scmp.eq.s32.totalorder %s30, 1
      %p279 = por %p277, %p278
      %p280 = scmp.ne.s32.totalorder %s271, %s272
      %p281 = scmp.eq.s32.totalorder %s30, 0
      %p282 = por %p280, %p281
      %p283 = scmp.ne.s32.totalorder %s271, %s272
      %p284 = scmp.eq.s32.totalorder %s31, 1
      %p285 = por %p283, %p284
      %p287 = scmp.ne.s32.totalorder %s272, %s286
      %p288 = scmp.eq.s32.totalorder %s31, 0
      %p289 = por %p287, %p288
      %s291 = sadd.s32 %s290, 1
      %p294 = scmp.eq.s32.totalorder %s25, 1
      %p295 = scmp.ne.s32.totalorder %s290, %s292
      %p296 = scmp.eq.s32.totalorder %s25, 0
      %p297 = por %p295, %p296
      %p298 = scmp.ne.s32.totalorder %s290, %s292
      %p299 = scmp.eq.s32.totalorder %s30, 1
      %p300 = por %p298, %p299
      %p301 = scmp.ne.s32.totalorder %s292, %s293
      %p302 = scmp.eq.s32.totalorder %s30, 0
      %p303 = por %p301, %p302
      %p304 = scmp.ne.s32.totalorder %s292, %s293
      %p305 = scmp.eq.s32.totalorder %s31, 1
      %p306 = por %p304, %p305
      %p308 = scmp.ne.s32.totalorder %s293, %s307
      %p309 = scmp.eq.s32.totalorder %s31, 0
      %p310 = por %p308, %p309
      %s312 = sadd.s32 %s311, 1
      %p315 = scmp.eq.s32.totalorder %s25, 1
      %p316 = scmp.ne.s32.totalorder %s311, %s313
      %p317 = scmp.eq.s32.totalorder %s25, 0
      %p318 = por %p316, %p317
      %p319 = scmp.ne.s32.totalorder %s311, %s313
      %p320 = scmp.eq.s32.totalorder %s30, 1
      %p321 = por %p319, %p320
      %p322 = scmp.ne.s32.totalorder %s313, %s314
      %p323 = scmp.eq.s32.totalorder %s30, 0
      %p324 = por %p322, %p323
      %p325 = scmp.ne.s32.totalorder %s313, %s314
      %p326 = scmp.eq.s32.totalorder %s31, 1
      %p327 = por %p325, %p326
      %p329 = scmp.ne.s32.totalorder %s314, %s328
      %p330 = scmp.eq.s32.totalorder %s31, 0
      %p331 = por %p329, %p330
      %s333 = sadd.s32 %s332, 1
      %p336 = scmp.eq.s32.totalorder %s25, 1
      %p337 = scmp.ne.s32.totalorder %s332, %s334
      %p338 = scmp.eq.s32.totalorder %s25, 0
      %p339 = por %p337, %p338
      %p340 = scmp.ne.s32.totalorder %s332, %s334
      %p341 = scmp.eq.s32.totalorder %s30, 1
      %p342 = por %p340, %p341
      %p343 = scmp.ne.s32.totalorder %s334, %s335
      %p344 = scmp.eq.s32.totalorder %s30, 0
      %p345 = por %p343, %p344
      %p346 = scmp.ne.s32.totalorder %s334, %s335
      %p347 = scmp.eq.s32.totalorder %s31, 1
      %p348 = por %p346, %p347
      %p350 = scmp.ne.s32.totalorder %s335, %s349
      %p351 = scmp.eq.s32.totalorder %s31, 0
      %p352 = por %p350, %p351
      %s354 = sadd.s32 %s353, 1
      %p357 = scmp.eq.s32.totalorder %s25, 1
      %p358 = scmp.ne.s32.totalorder %s353, %s355
      %p359 = scmp.eq.s32.totalorder %s25, 0
      %p360 = por %p358, %p359
      %p361 = scmp.ne.s32.totalorder %s353, %s355
      %p362 = scmp.eq.s32.totalorder %s30, 1
      %p363 = por %p361, %p362
      %p364 = scmp.ne.s32.totalorder %s355, %s356
      %p365 = scmp.eq.s32.totalorder %s30, 0
      %p366 = por %p364, %p365
      %p367 = scmp.ne.s32.totalorder %s355, %s356
      %p368 = scmp.eq.s32.totalorder %s31, 1
      %p369 = por %p367, %p368
      %p371 = scmp.ne.s32.totalorder %s356, %s370
      %p372 = scmp.eq.s32.totalorder %s31, 0
      %p373 = por %p371, %p372
      %s374 = ssub.s32 %s25, %s32
      %p375 = scmp.eq.s32.totalorder %s374, 0
      %s377 = sadd.s32 %s376, 1
      %s378 = scalar_select %p375, %s376, %s377
      %p381 = pneg %p375
      %p382 = scmp.eq.s32.totalorder %s25, 1
      %p383 = por %p381, %p382
      %p384 = scmp.ne.s32.totalorder %s376, %s379
      %p385 = scmp.eq.s32.totalorder %s25, 0
      %p386 = por %p384, %p385
      %p387 = scmp.ne.s32.totalorder %s376, %s379
      %p388 = scmp.eq.s32.totalorder %s30, 1
      %p389 = por %p387, %p388
      %p390 = scmp.ne.s32.totalorder %s379, %s380
      %p391 = scmp.eq.s32.totalorder %s30, 0
      %p392 = por %p390, %p391
      %p393 = scmp.ne.s32.totalorder %s379, %s380
      %p394 = scmp.eq.s32.totalorder %s31, 1
      %p395 = por %p393, %p394
      %p397 = scmp.ne.s32.totalorder %s380, %s396
      %p398 = scmp.eq.s32.totalorder %s31, 0
      %p399 = por %p397, %p398
      %p400 = scmp.le.s32.totalorder 1, %s25
      %p401 = scmp.lt.s32.totalorder %s25, 3
      %p402 = pnand %p400, %p401
      %p403 = pneg %p402
      // Predicated region
      $region9: #{tpu_custom_call.1} parent=5 // pred_check
        _
      $region10: #{tpu_custom_call.1} parent=5 // pred_check_branch
        %405 = sbr.rel (%p402) target = $region12
      $region11: #{tpu_custom_call.1} parent=5 // pred_region
        %s406 = ssub.s32 %s25, 1
        // Predicated region
        $region13: #{tpu_custom_call.1} parent=11 // pred_check
          %p407 = pneg %p72
        $region14: #{tpu_custom_call.1} parent=11 // pred_check_branch
          %409 = sbr.rel (%p407) target = $region16
        $region15: #{tpu_custom_call.1} parent=11 // pred_region
          _
        $region16: #{tpu_custom_call.1} parent=11 // pred_fallthru
          _
        // Predicated region
        $region17: #{tpu_custom_call.1} parent=11 // pred_check
          %p410 = pneg %p93
        $region18: #{tpu_custom_call.1} parent=11 // pred_check_branch
          %412 = sbr.rel (%p410) target = $region20
        $region19: #{tpu_custom_call.1} parent=11 // pred_region
          _
        $region20: #{tpu_custom_call.1} parent=11 // pred_fallthru
          _
        // Predicated region
        $region21: #{tpu_custom_call.1} parent=11 // pred_check
          %p413 = pneg %p114
        $region22: #{tpu_custom_call.1} parent=11 // pred_check_branch
          %415 = sbr.rel (%p413) target = $region24
        $region23: #{tpu_custom_call.1} parent=11 // pred_region
          _
        $region24: #{tpu_custom_call.1} parent=11 // pred_fallthru
          _
        // Predicated region
        $region25: #{tpu_custom_call.1} parent=11 // pred_check
          %p416 = pneg %p135
        $region26: #{tpu_custom_call.1} parent=11 // pred_check_branch
          %418 = sbr.rel (%p416) target = $region28
        $region27: #{tpu_custom_call.1} parent=11 // pred_region
          _
        $region28: #{tpu_custom_call.1} parent=11 // pred_fallthru
          _
        // Predicated region
        $region29: #{tpu_custom_call.1} parent=11 // pred_check
          %p419 = pneg %p156
        $region30: #{tpu_custom_call.1} parent=11 // pred_check_branch
          %421 = sbr.rel (%p419) target = $region32
        $region31: #{tpu_custom_call.1} parent=11 // pred_region
          _
        $region32: #{tpu_custom_call.1} parent=11 // pred_fallthru
          _
        // Predicated region
        $region33: #{tpu_custom_call.1} parent=11 // pred_check
          %p422 = pneg %p177
        $region34: #{tpu_custom_call.1} parent=11 // pred_check_branch
          %424 = sbr.rel (%p422) target = $region36
        $region35: #{tpu_custom_call.1} parent=11 // pred_region
          _
        $region36: #{tpu_custom_call.1} parent=11 // pred_fallthru
          _
        // Predicated region
        $region37: #{tpu_custom_call.1} parent=11 // pred_check
          %p425 = pneg %p198
        $region38: #{tpu_custom_call.1} parent=11 // pred_check_branch
          %427 = sbr.rel (%p425) target = $region40
        $region39: #{tpu_custom_call.1} parent=11 // pred_region
          _
        $region40: #{tpu_custom_call.1} parent=11 // pred_fallthru
          _
        // Predicated region
        $region41: #{tpu_custom_call.1} parent=11 // pred_check
          %p428 = pneg %p219
        $region42: #{tpu_custom_call.1} parent=11 // pred_check_branch
          %430 = sbr.rel (%p428) target = $region44
        $region43: #{tpu_custom_call.1} parent=11 // pred_region
          _
        $region44: #{tpu_custom_call.1} parent=11 // pred_fallthru
          _
        // Predicated region
        $region45: #{tpu_custom_call.1} parent=11 // pred_check
          %p431 = pneg %p240
        $region46: #{tpu_custom_call.1} parent=11 // pred_check_branch
          %433 = sbr.rel (%p431) target = $region48
        $region47: #{tpu_custom_call.1} parent=11 // pred_region
          _
        $region48: #{tpu_custom_call.1} parent=11 // pred_fallthru
          _
        // Predicated region
        $region49: #{tpu_custom_call.1} parent=11 // pred_check
          %p434 = pneg %p261
        $region50: #{tpu_custom_call.1} parent=11 // pred_check_branch
          %436 = sbr.rel (%p434) target = $region52
        $region51: #{tpu_custom_call.1} parent=11 // pred_region
          _
        $region52: #{tpu_custom_call.1} parent=11 // pred_fallthru
          _
        // Predicated region
        $region53: #{tpu_custom_call.1} parent=11 // pred_check
          %p437 = pneg %p282
        $region54: #{tpu_custom_call.1} parent=11 // pred_check_branch
          %439 = sbr.rel (%p437) target = $region56
        $region55: #{tpu_custom_call.1} parent=11 // pred_region
          _
        $region56: #{tpu_custom_call.1} parent=11 // pred_fallthru
          _
        // Predicated region
        $region57: #{tpu_custom_call.1} parent=11 // pred_check
          %p440 = pneg %p303
        $region58: #{tpu_custom_call.1} parent=11 // pred_check_branch
          %442 = sbr.rel (%p440) target = $region60
        $region59: #{tpu_custom_call.1} parent=11 // pred_region
          _
        $region60: #{tpu_custom_call.1} parent=11 // pred_fallthru
          _
        // Predicated region
        $region61: #{tpu_custom_call.1} parent=11 // pred_check
          %p443 = pneg %p324
        $region62: #{tpu_custom_call.1} parent=11 // pred_check_branch
          %445 = sbr.rel (%p443) target = $region64
        $region63: #{tpu_custom_call.1} parent=11 // pred_region
          _
        $region64: #{tpu_custom_call.1} parent=11 // pred_fallthru
          _
        // Predicated region
        $region65: #{tpu_custom_call.1} parent=11 // pred_check
          %p446 = pneg %p345
        $region66: #{tpu_custom_call.1} parent=11 // pred_check_branch
          %448 = sbr.rel (%p446) target = $region68
        $region67: #{tpu_custom_call.1} parent=11 // pred_region
          _
        $region68: #{tpu_custom_call.1} parent=11 // pred_fallthru
          _
        // Predicated region
        $region69: #{tpu_custom_call.1} parent=11 // pred_check
          %p449 = pneg %p366
        $region70: #{tpu_custom_call.1} parent=11 // pred_check_branch
          %451 = sbr.rel (%p449) target = $region72
        $region71: #{tpu_custom_call.1} parent=11 // pred_region
          _
        $region72: #{tpu_custom_call.1} parent=11 // pred_fallthru
          _
      $region12: #{tpu_custom_call.1} parent=5 // pred_fallthru
        _
      %p452 = scmp.lt.s32.totalorder %s25, 2
      // Predicated region
      $region73: #{tpu_custom_call.1} parent=5 // pred_check
        %p453 = pneg %p452
      $region74: #{tpu_custom_call.1} parent=5 // pred_check_branch
        %455 = sbr.rel (%p453) target = $region76
      $region75: #{tpu_custom_call.1} parent=5 // pred_region
        // Predicated region
        $region77: #{tpu_custom_call.1} parent=75 // pred_check
          %p456 = pneg %p45
        $region78: #{tpu_custom_call.1} parent=75 // pred_check_branch
          %458 = sbr.rel (%p456) target = $region80
        $region79: #{tpu_custom_call.1} parent=75 // pred_region
          %p459 = scmp.lt.s32.totalorder %s25, 1
          %s460 = scalar_select %p459, %s25, 1
          %s461 = smul.addr %s460, 18
          %s462 = smul.addr %s461, 4
          %s463 = scalar_lea.vmem %s0, %s462
        $region80: #{tpu_custom_call.1} parent=75 // pred_fallthru
          _
      $region76: #{tpu_custom_call.1} parent=5 // pred_fallthru
        _
      %p464 = scmp.le.s32.totalorder 1, %s25
      %p465 = scmp.lt.s32.totalorder %s25, 3
      %p466 = pnand %p464, %p465
      %p467 = pneg %p466
      // Predicated region
      $region81: #{tpu_custom_call.1} parent=5 // pred_check
        _
      $region82: #{tpu_custom_call.1} parent=5 // pred_check_branch
        %469 = sbr.rel (%p466) target = $region84
      $region83: #{tpu_custom_call.1} parent=5 // pred_region
        %s470 = ssub.s32 %s25, 1
        %p471 = scmp.lt.s32.totalorder %s30, 1
        %s472 = scalar_select %p471, %s30, 1
        %s473 = smul.addr %s472, 18
        %s474 = smul.addr %s473, 4
        %s475 = scalar_lea.vmem %s0, %s474
        %p476 = pneg %p51
        %p477 = pneg %p48
        %p478 = pneg %p72
        %p479 = pneg %p69
        %p480 = pneg %p93
        %p481 = pneg %p90
        %p482 = pneg %p114
        %p483 = pneg %p111
        %p484 = pneg %p135
        %p485 = pneg %p132
        %p486 = pneg %p156
        %p487 = pneg %p153
        %p488 = pneg %p177
        %p489 = pneg %p174
        %p490 = pneg %p198
        %p491 = pneg %p195
        %p492 = pneg %p219
        %p493 = pneg %p216
        %p494 = pneg %p240
        %p495 = pneg %p237
        %p496 = pneg %p261
        %p497 = pneg %p258
        %p498 = pneg %p282
        %p499 = pneg %p279
        %p500 = pneg %p303
        %p501 = pneg %p300
        %p502 = pneg %p324
        %p503 = pneg %p321
        %p504 = pneg %p345
        %p505 = pneg %p342
        %p506 = pneg %p366
        %p507 = pneg %p363
        %p508 = pneg %p392
        %p509 = pneg %p389
        %s510 = sand.u32 %s379, 1
        %s511 = scalar_lea.sflag [#allocation7], %s510
        %s512 = sand.u32 %s379, 1
        %s513 = smul.addr %s512, 64
        %s514 = scalar_lea.vmem [#allocation6], %s513
        %p515 = scmp.lt.s32.totalorder %s30, 1
        %s516 = scalar_select %p515, %s30, 1
        %s517 = smul.addr %s516, 18
        %s518 = smul.addr %s517, 4
        %s519 = scalar_lea.vmem %s0, %s518
        %v521 = vld [vmem:[%s4] sm:$0xf]
        %v522 = vld [vmem:[%s4 + $0x4] sm:$0xf]
        %v523 = vld [vmem:[%s4 + $0x8] sm:$0xf]
        %v524 = vld [vmem:[%s4 + $0xc] sm:$0xf]
        %v525 = vld [vmem:[%s5] sm:$0x1]
        %v527 = vlaneseq
        %v528 = vshrl.u32 %v527, 7
        %v529 = vsub.s32 0, %v528
        %v530 = vrot.slane %v525, %v529
        %v532 = vld [vmem:[%s3] sm:$0x1]
        %v533 = vld [vmem:[%s6] sm:$0xf]
        loop: start=0, step=1, limit=2
        $region85: #{tpu_custom_call.1} parent=83 // loop_pre_header
          _
        $region86: #{tpu_custom_call.1} parent=83 // loop_header
          %s535 = sphi 0, %s539
          %p536 = scmp.ge.s32.totalorder %s535, 2
          %v540 = vphi 0.0, %v1497
        $region87: #{tpu_custom_call.1} parent=83 // loop_header_branch
          %538 = sbr.rel (%p536) target = $region91
        $region88: #{tpu_custom_call.1} parent=83 // loop_body
          %s541 = smul.u32 %s535, 8
          %s542 = smul.u32 %s541, 4
          %s543 = scalar_lea.vmem %s519, %s542
          %v544 = vld [vmem:[%s543] sm:$0xf]
          %v545 = vld [vmem:[%s543 + $0x4] sm:$0xf]
          %v546 = vld [vmem:[%s543 + $0x8] sm:$0xf]
          %v547 = vld [vmem:[%s543 + $0xc] sm:$0xf]
          %v548 = vld [vmem:[%s543 + $0x10] sm:$0xf]
          %v549 = vld [vmem:[%s543 + $0x14] sm:$0xf]
          %v550 = vld [vmem:[%s543 + $0x18] sm:$0xf]
          %v551 = vld [vmem:[%s543 + $0x1c] sm:$0xf]
          %v560 = vcombine.low %v544, %v545
          %v561 = vcombine.low %v546, %v547
          %v562 = vcombine.low %v548, %v549
          %v563 = vcombine.low %v550, %v551
          %v568 = vpack.c.bf16 %v561, %v560
          %v569 = vpack.c.bf16 %v563, %v562
          %v570 = vld [vmem:[%s2] sm:$0x3]
          %s571 = sadd.s32 %s541, 1
          %s572 = smul.u32 %s571, 4
          %s573 = scalar_lea.vmem %s519, %s572
          %v574 = vld [vmem:[%s573] sm:$0xf]
          %v575 = vld [vmem:[%s573 + $0x4] sm:$0xf]
          %v576 = vld [vmem:[%s573 + $0x8] sm:$0xf]
          %v577 = vld [vmem:[%s573 + $0xc] sm:$0xf]
          %v578 = vld [vmem:[%s573 + $0x10] sm:$0xf]
          %v579 = vld [vmem:[%s573 + $0x14] sm:$0xf]
          %v580 = vld [vmem:[%s573 + $0x18] sm:$0xf]
          %v581 = vld [vmem:[%s573 + $0x1c] sm:$0xf]
          %v590 = vcombine.low %v574, %v575
          %v591 = vcombine.low %v576, %v577
          %v592 = vcombine.low %v578, %v579
          %v593 = vcombine.low %v580, %v581
          %v598 = vpack.c.bf16 %v591, %v590
          %v599 = vpack.c.bf16 %v593, %v592
          %s600 = scalar_lea.vmem %s2, 2
          %v601 = vld [vmem:[%s600] sm:$0x3]
          %vm602 = vcmask 31744
          %v604 = vsel %vm602, %v598, 0
          %v607 = vsel %vm602, %v599, 0
          %vm609 = vcmask 1041408
          %v611 = vsel %vm609, %v601, 0
          %613 = vmatprep.subr.bf16.mxu0 0
          %614 = vmatpush1.bf16.msra.mxu0 0
          %615 = vmatprep.subr.bf16.mxu0 0
          %616 = vmatpush1.bf16.msra.mxu0 0
          %617 = vmatprep.subr.bf16.mxu0 0
          %618 = vmatpush1.bf16.msra.mxu0 0
          %619 = vmatprep.subr.bf16.mxu0 0
          %620 = vmatpush1.bf16.msra.mxu0 0
          %621 = vmatprep.subr.bf16.mxu0 0
          %622 = vmatpush1.bf16.msra.mxu0 0
          %623 = vmatprep.subr.bf16.mxu0 0
          %624 = vmatpush1.bf16.msra.mxu0 0
          %625 = vmatprep.subr.bf16.mxu0 0
          %626 = vmatpush1.bf16.msra.mxu0 0
          %627 = vmatprep.subr.bf16.mxu0 0
          %628 = vmatpush1.bf16.msra.mxu0 %v611
          %629 = vmatprep.subr.bf16.mxu0 0
          %630 = vmatpush2.bf16.msra.mxu0 0
          %631 = vmatprep.subr.bf16.mxu0 0
          %632 = vmatpush2.bf16.msra.mxu0 0
          %633 = vmatprep.subr.bf16.mxu0 0
          %634 = vmatpush2.bf16.msra.mxu0 0
          %635 = vmatprep.subr.bf16.mxu0 0
          %636 = vmatpush2.bf16.msra.mxu0 0
          %637 = vmatprep.subr.bf16.mxu0 0
          %638 = vmatpush2.bf16.msra.mxu0 0
          %639 = vmatprep.subr.bf16.mxu0 0
          %640 = vmatpush2.bf16.msra.mxu0 0
          %641 = vmatprep.subr.bf16.mxu0 0
          %642 = vmatpush2.bf16.msra.mxu0 0
          %643 = vmatprep.subr.bf16.mxu0 0
          %644 = vmatpush2.bf16.msra.mxu0 0
          %645 = vmatprep.mubr.bf16.mxu0 0
          %646 = vmatmul.mubr.bf16.gmra.mxu0 %v604
          %v647 = vpop.f32.mrf.mxu0
          %v648 = vadd.f32 0.0, %v647
          %v649 = vpop.f32.mrf.mxu0
          %v650 = vpop.f32.mrf.mxu0
          %v651 = vadd.f32 0.0, %v650
          %v652 = vpop.f32.mrf.mxu0
          %653 = vmatprep.mubr.bf16.mxu0 0
          %654 = vmatmul.mubr.bf16.gmra.mxu0 %v607
          %v655 = vpop.f32.mrf.mxu0
          %v656 = vadd.f32 0.0, %v655
          %v657 = vpop.f32.mrf.mxu0
          %v658 = vpop.f32.mrf.mxu0
          %v659 = vadd.f32 0.0, %v658
          %v660 = vpop.f32.mrf.mxu0
          %661 = vdwg.mxu0
          %v663 = vsel %vm602, %v568, 0
          %v666 = vsel %vm602, %v569, 0
          %v669 = vsel %vm609, %v570, 0
          %671 = vmatprep.subr.bf16.mxu0 0
          %672 = vmatpush1.bf16.msra.mxu0 0
          %673 = vmatprep.subr.bf16.mxu0 0
          %674 = vmatpush1.bf16.msra.mxu0 0
          %675 = vmatprep.subr.bf16.mxu0 0
          %676 = vmatpush1.bf16.msra.mxu0 0
          %677 = vmatprep.subr.bf16.mxu0 0
          %678 = vmatpush1.bf16.msra.mxu0 0
          %679 = vmatprep.subr.bf16.mxu0 0
          %680 = vmatpush1.bf16.msra.mxu0 0
          %681 = vmatprep.subr.bf16.mxu0 0
          %682 = vmatpush1.bf16.msra.mxu0 0
          %683 = vmatprep.subr.bf16.mxu0 0
          %684 = vmatpush1.bf16.msra.mxu0 0
          %685 = vmatprep.subr.bf16.mxu0 0
          %686 = vmatpush1.bf16.msra.mxu0 %v669
          %687 = vmatprep.subr.bf16.mxu0 0
          %688 = vmatpush2.bf16.msra.mxu0 0
          %689 = vmatprep.subr.bf16.mxu0 0
          %690 = vmatpush2.bf16.msra.mxu0 0
          %691 = vmatprep.subr.bf16.mxu0 0
          %692 = vmatpush2.bf16.msra.mxu0 0
          %693 = vmatprep.subr.bf16.mxu0 0
          %694 = vmatpush2.bf16.msra.mxu0 0
          %695 = vmatprep.subr.bf16.mxu0 0
          %696 = vmatpush2.bf16.msra.mxu0 0
          %697 = vmatprep.subr.bf16.mxu0 0
          %698 = vmatpush2.bf16.msra.mxu0 0
          %699 = vmatprep.subr.bf16.mxu0 0
          %700 = vmatpush2.bf16.msra.mxu0 0
          %701 = vmatprep.subr.bf16.mxu0 0
          %702 = vmatpush2.bf16.msra.mxu0 0
          %703 = vmatprep.mubr.bf16.mxu0 0
          %704 = vmatmul.mubr.bf16.gmra.mxu0 %v663
          %v705 = vpop.f32.mrf.mxu0
          %v706 = vadd.f32 %v648, %v705
          %v707 = vpop.f32.mrf.mxu0
          %v708 = vpop.f32.mrf.mxu0
          %v709 = vadd.f32 %v651, %v708
          %v710 = vpop.f32.mrf.mxu0
          %711 = vmatprep.mubr.bf16.mxu0 0
          %712 = vmatmul.mubr.bf16.gmra.mxu0 %v666
          %v713 = vpop.f32.mrf.mxu0
          %v714 = vadd.f32 %v656, %v713
          %v715 = vpop.f32.mrf.mxu0
          %v716 = vpop.f32.mrf.mxu0
          %v717 = vadd.f32 %v659, %v716
          %v718 = vpop.f32.mrf.mxu0
          %719 = vdwg.mxu0
          %s720 = sadd.s32 %s541, 2
          %s721 = smul.u32 %s720, 4
          %s722 = scalar_lea.vmem %s519, %s721
          %v723 = vld [vmem:[%s722] sm:$0xf]
          %v724 = vld [vmem:[%s722 + $0x4] sm:$0xf]
          %v725 = vld [vmem:[%s722 + $0x8] sm:$0xf]
          %v726 = vld [vmem:[%s722 + $0xc] sm:$0xf]
          %v727 = vld [vmem:[%s722 + $0x10] sm:$0xf]
          %v728 = vld [vmem:[%s722 + $0x14] sm:$0xf]
          %v729 = vld [vmem:[%s722 + $0x18] sm:$0xf]
          %v730 = vld [vmem:[%s722 + $0x1c] sm:$0xf]
          %v739 = vcombine.low %v723, %v724
          %v740 = vcombine.low %v725, %v726
          %v741 = vcombine.low %v727, %v728
          %v742 = vcombine.low %v729, %v730
          %v747 = vpack.c.bf16 %v740, %v739
          %v748 = vpack.c.bf16 %v742, %v741
          %s749 = scalar_lea.vmem %s2, 4
          %v750 = vld [vmem:[%s749] sm:$0x3]
          %v752 = vsel %vm602, %v747, 0
          %v755 = vsel %vm602, %v748, 0
          %v758 = vsel %vm609, %v750, 0
          %760 = vmatprep.subr.bf16.mxu0 0
          %761 = vmatpush1.bf16.msra.mxu0 0
          %762 = vmatprep.subr.bf16.mxu0 0
          %763 = vmatpush1.bf16.msra.mxu0 0
          %764 = vmatprep.subr.bf16.mxu0 0
          %765 = vmatpush1.bf16.msra.mxu0 0
          %766 = vmatprep.subr.bf16.mxu0 0
          %767 = vmatpush1.bf16.msra.mxu0 0
          %768 = vmatprep.subr.bf16.mxu0 0
          %769 = vmatpush1.bf16.msra.mxu0 0
          %770 = vmatprep.subr.bf16.mxu0 0
          %771 = vmatpush1.bf16.msra.mxu0 0
          %772 = vmatprep.subr.bf16.mxu0 0
          %773 = vmatpush1.bf16.msra.mxu0 0
          %774 = vmatprep.subr.bf16.mxu0 0
          %775 = vmatpush1.bf16.msra.mxu0 %v758
          %776 = vmatprep.subr.bf16.mxu0 0
          %777 = vmatpush2.bf16.msra.mxu0 0
          %778 = vmatprep.subr.bf16.mxu0 0
          %779 = vmatpush2.bf16.msra.mxu0 0
          %780 = vmatprep.subr.bf16.mxu0 0
          %781 = vmatpush2.bf16.msra.mxu0 0
          %782 = vmatprep.subr.bf16.mxu0 0
          %783 = vmatpush2.bf16.msra.mxu0 0
          %784 = vmatprep.subr.bf16.mxu0 0
          %785 = vmatpush2.bf16.msra.mxu0 0
          %786 = vmatprep.subr.bf16.mxu0 0
          %787 = vmatpush2.bf16.msra.mxu0 0
          %788 = vmatprep.subr.bf16.mxu0 0
          %789 = vmatpush2.bf16.msra.mxu0 0
          %790 = vmatprep.subr.bf16.mxu0 0
          %791 = vmatpush2.bf16.msra.mxu0 0
          %792 = vmatprep.mubr.bf16.mxu0 0
          %793 = vmatmul.mubr.bf16.gmra.mxu0 %v752
          %v794 = vpop.f32.mrf.mxu0
          %v795 = vadd.f32 0.0, %v794
          %v796 = vpop.f32.mrf.mxu0
          %v797 = vpop.f32.mrf.mxu0
          %v798 = vadd.f32 0.0, %v797
          %v799 = vpop.f32.mrf.mxu0
          %800 = vmatprep.mubr.bf16.mxu0 0
          %801 = vmatmul.mubr.bf16.gmra.mxu0 %v755
          %v802 = vpop.f32.mrf.mxu0
          %v803 = vadd.f32 0.0, %v802
          %v804 = vpop.f32.mrf.mxu0
          %v805 = vpop.f32.mrf.mxu0
          %v806 = vadd.f32 0.0, %v805
          %v807 = vpop.f32.mrf.mxu0
          %808 = vdwg.mxu0
          %v809 = vadd.f32 %v706, %v795
          %v810 = vadd.f32 %v709, %v798
          %v811 = vadd.f32 %v714, %v803
          %v812 = vadd.f32 %v717, %v806
          %v814 = vlaneseq
          %v815 = vshrl.u32 %v814, 7
          %v816 = vsub.s32 0, %v815
          %v817 = vrot.slane %v532, %v816
          %v819 = vadd.f32 %v809, %v817
          %v820 = vadd.f32 %v810, %v817
          %v821 = vadd.f32 %v811, %v817
          %v822 = vadd.f32 %v812, %v817
          %v827 = vcombine.high %v819, %v819
          %v828 = vcombine.high %v820, %v820
          %v829 = vcombine.high %v821, %v821
          %v830 = vcombine.high %v822, %v822
          %vm835 = vcmask 781312
          %836 = vst.msk [vmem:[#allocation4] sm:$0xf] %vm835, %v819
          %837 = vst.msk [vmem:[#allocation4 + $0x4] sm:$0xf] %vm835, %v827
          %838 = vst.msk [vmem:[#allocation4 + $0x8] sm:$0xf] %vm835, %v820
          %839 = vst.msk [vmem:[#allocation4 + $0xc] sm:$0xf] %vm835, %v828
          %840 = vst.msk [vmem:[#allocation4 + $0x10] sm:$0xf] %vm835, %v821
          %841 = vst.msk [vmem:[#allocation4 + $0x14] sm:$0xf] %vm835, %v829
          %842 = vst.msk [vmem:[#allocation4 + $0x18] sm:$0xf] %vm835, %v822
          %843 = vst.msk [vmem:[#allocation4 + $0x1c] sm:$0xf] %vm835, %v830
          %v844 = vld [vmem:[#allocation4] sm:$0xf]
          %v845 = vpack.c.bf16 %v540, %v540
          %847 = vrot.lane.b32.xlu0 %v845, 96
          %v848 = vpop.permute.xlu0 %847
          %v853 = vunpack.c.l.b16 %v521
          %v854 = vunpack.c.l.b16 %v522
          %v855 = vunpack.c.l.b16 %v523
          %v856 = vunpack.c.l.b16 %v524
          %v857 = vpack.c.b16 %v854, %v853
          %v858 = vpack.c.b16 %v856, %v855
          %vm861 = vcmask 261120
          %v863 = vsel %vm861, %v848, 0
          %865 = vmatprep.subr.bf16.mxu0 0
          %866 = vmatpush1.bf16.msra.mxu0 0
          %867 = vmatprep.subr.bf16.mxu0 0
          %868 = vmatpush1.bf16.msra.mxu0 0
          %869 = vmatprep.subr.bf16.mxu0 0
          %870 = vmatpush1.bf16.msra.mxu0 0
          %871 = vmatprep.subr.bf16.mxu0 0
          %872 = vmatpush1.bf16.msra.mxu0 0
          %873 = vmatprep.subr.bf16.mxu0 0
          %874 = vmatpush1.bf16.msra.mxu0 0
          %875 = vmatprep.subr.bf16.mxu0 0
          %876 = vmatpush1.bf16.msra.mxu0 0
          %877 = vmatprep.subr.bf16.mxu0 0
          %878 = vmatpush1.bf16.msra.mxu0 %v858
          %879 = vmatprep.subr.bf16.mxu0 0
          %880 = vmatpush1.bf16.msra.mxu0 %v857
          %881 = vmatprep.subr.bf16.mxu0 0
          %882 = vmatpush2.bf16.msra.mxu0 0
          %883 = vmatprep.subr.bf16.mxu0 0
          %884 = vmatpush2.bf16.msra.mxu0 0
          %885 = vmatprep.subr.bf16.mxu0 0
          %886 = vmatpush2.bf16.msra.mxu0 0
          %887 = vmatprep.subr.bf16.mxu0 0
          %888 = vmatpush2.bf16.msra.mxu0 0
          %889 = vmatprep.subr.bf16.mxu0 0
          %890 = vmatpush2.bf16.msra.mxu0 0
          %891 = vmatprep.subr.bf16.mxu0 0
          %892 = vmatpush2.bf16.msra.mxu0 0
          %893 = vmatprep.subr.bf16.mxu0 0
          %894 = vmatpush2.bf16.msra.mxu0 0
          %895 = vmatprep.subr.bf16.mxu0 0
          %896 = vmatpush2.bf16.msra.mxu0 0
          %897 = vmatprep.mubr.bf16.mxu0 0
          %898 = vmatmul.mubr.bf16.gmra.mxu0 %v863
          %v899 = vpop.f32.mrf.mxu0
          %v900 = vadd.f32 %v530, %v899
          %v901 = vpop.f32.mrf.mxu0
          %v902 = vpop.f32.mrf.mxu0
          %v903 = vpop.f32.mrf.mxu0
          %904 = vdwg.mxu0
          %v905 = vadd.f32 %v844, %v900
          %v906 = vxor.u32 %v905, 2147483648
          %v907 = vmul.f32 %v906, 1.442695
          %v908 = vpow.pop %v907
          %v909 = vadd.f32 %v908, 1.0
          %v910 = vrcp.pop %v909
          %v911 = vmul.f32 1.0, %v910
          %913 = vrot.lane.b32.xlu0 %v900, 64
          %v914 = vpop.permute.xlu0 %913
          %v916 = vmul.f32 %v911, %v914
          %918 = vrot.lane.b32.xlu0 %v916, 64
          %v919 = vpop.permute.xlu0 %918
          %v921 = vadd.f32 %v844, %v919
          %v922 = vtanh.pop %v921
          %v923 = vsub.f32 1.0, %v911
          %925 = vrot.lane.b32.xlu0 %v922, 96
          %v926 = vpop.permute.xlu0 %925
          %v928 = vmul.f32 %v923, %v926
          %v929 = vmul.f32 %v911, %v540
          %v930 = vadd.f32 %v928, %v929
          %932 = vrot.lane.b32.xlu0 %v930, 96
          %v933 = vpop.permute.xlu0 %932
          %vm935 = vcmask 257024
          %936 = vst.msk [vmem:[#allocation5] sm:$0xf] %vm935, %v933
          %s937 = scalar_lea.vmem [#allocation4], 4
          %v938 = vld [vmem:[%s937] sm:$0xf]
          %v939 = vpack.c.bf16 %v930, %v930
          %941 = vrot.lane.b32.xlu0 %v939, 96
          %v942 = vpop.permute.xlu0 %941
          %v944 = vsel %vm861, %v942, 0
          %946 = vmatprep.subr.bf16.mxu0 0
          %947 = vmatpush1.bf16.msra.mxu0 0
          %948 = vmatprep.subr.bf16.mxu0 0
          %949 = vmatpush1.bf16.msra.mxu0 0
          %950 = vmatprep.subr.bf16.mxu0 0
          %951 = vmatpush1.bf16.msra.mxu0 0
          %952 = vmatprep.subr.bf16.mxu0 0
          %953 = vmatpush1.bf16.msra.mxu0 0
          %954 = vmatprep.subr.bf16.mxu0 0
          %955 = vmatpush1.bf16.msra.mxu0 0
          %956 = vmatprep.subr.bf16.mxu0 0
          %957 = vmatpush1.bf16.msra.mxu0 0
          %958 = vmatprep.subr.bf16.mxu0 0
          %959 = vmatpush1.bf16.msra.mxu0 %v858
          %960 = vmatprep.subr.bf16.mxu0 0
          %961 = vmatpush1.bf16.msra.mxu0 %v857
          %962 = vmatprep.subr.bf16.mxu0 0
          %963 = vmatpush2.bf16.msra.mxu0 0
          %964 = vmatprep.subr.bf16.mxu0 0
          %965 = vmatpush2.bf16.msra.mxu0 0
          %966 = vmatprep.subr.bf16.mxu0 0
          %967 = vmatpush2.bf16.msra.mxu0 0
          %968 = vmatprep.subr.bf16.mxu0 0
          %969 = vmatpush2.bf16.msra.mxu0 0
          %970 = vmatprep.subr.bf16.mxu0 0
          %971 = vmatpush2.bf16.msra.mxu0 0
          %972 = vmatprep.subr.bf16.mxu0 0
          %973 = vmatpush2.bf16.msra.mxu0 0
          %974 = vmatprep.subr.bf16.mxu0 0
          %975 = vmatpush2.bf16.msra.mxu0 0
          %976 = vmatprep.subr.bf16.mxu0 0
          %977 = vmatpush2.bf16.msra.mxu0 0
          %978 = vmatprep.mubr.bf16.mxu0 0
          %979 = vmatmul.mubr.bf16.gmra.mxu0 %v944
          %v980 = vpop.f32.mrf.mxu0
          %v981 = vadd.f32 %v530, %v980
          %v982 = vpop.f32.mrf.mxu0
          %v983 = vpop.f32.mrf.mxu0
          %v984 = vpop.f32.mrf.mxu0
          %985 = vdwg.mxu0
          %v986 = vadd.f32 %v938, %v981
          %v987 = vxor.u32 %v986, 2147483648
          %v988 = vmul.f32 %v987, 1.442695
          %v989 = vpow.pop %v988
          %v990 = vadd.f32 %v989, 1.0
          %v991 = vrcp.pop %v990
          %v992 = vmul.f32 1.0, %v991
          %994 = vrot.lane.b32.xlu0 %v981, 64
          %v995 = vpop.permute.xlu0 %994
          %v997 = vmul.f32 %v992, %v995
          %999 = vrot.lane.b32.xlu0 %v997, 64
          %v1000 = vpop.permute.xlu0 %999
          %v1002 = vadd.f32 %v938, %v1000
          %v1003 = vtanh.pop %v1002
          %v1004 = vsub.f32 1.0, %v992
          %1006 = vrot.lane.b32.xlu0 %v1003, 96
          %v1007 = vpop.permute.xlu0 %1006
          %v1009 = vmul.f32 %v1004, %v1007
          %v1010 = vmul.f32 %v992, %v930
          %v1011 = vadd.f32 %v1009, %v1010
          %1013 = vrot.lane.b32.xlu0 %v1011, 96
          %v1014 = vpop.permute.xlu0 %1013
          %s1016 = scalar_lea.vmem [#allocation5], 4
          %1017 = vst.msk [vmem:[%s1016] sm:$0xf] %vm935, %v1014
          %s1018 = scalar_lea.vmem [#allocation4], 8
          %v1019 = vld [vmem:[%s1018] sm:$0xf]
          %v1020 = vpack.c.bf16 %v1011, %v1011
          %1022 = vrot.lane.b32.xlu0 %v1020, 96
          %v1023 = vpop.permute.xlu0 %1022
          %v1025 = vsel %vm861, %v1023, 0
          %1027 = vmatprep.subr.bf16.mxu0 0
          %1028 = vmatpush1.bf16.msra.mxu0 0
          %1029 = vmatprep.subr.bf16.mxu0 0
          %1030 = vmatpush1.bf16.msra.mxu0 0
          %1031 = vmatprep.subr.bf16.mxu0 0
          %1032 = vmatpush1.bf16.msra.mxu0 0
          %1033 = vmatprep.subr.bf16.mxu0 0
          %1034 = vmatpush1.bf16.msra.mxu0 0
          %1035 = vmatprep.subr.bf16.mxu0 0
          %1036 = vmatpush1.bf16.msra.mxu0 0
          %1037 = vmatprep.subr.bf16.mxu0 0
          %1038 = vmatpush1.bf16.msra.mxu0 0
          %1039 = vmatprep.subr.bf16.mxu0 0
          %1040 = vmatpush1.bf16.msra.mxu0 %v858
          %1041 = vmatprep.subr.bf16.mxu0 0
          %1042 = vmatpush1.bf16.msra.mxu0 %v857
          %1043 = vmatprep.subr.bf16.mxu0 0
          %1044 = vmatpush2.bf16.msra.mxu0 0
          %1045 = vmatprep.subr.bf16.mxu0 0
          %1046 = vmatpush2.bf16.msra.mxu0 0
          %1047 = vmatprep.subr.bf16.mxu0 0
          %1048 = vmatpush2.bf16.msra.mxu0 0
          %1049 = vmatprep.subr.bf16.mxu0 0
          %1050 = vmatpush2.bf16.msra.mxu0 0
          %1051 = vmatprep.subr.bf16.mxu0 0
          %1052 = vmatpush2.bf16.msra.mxu0 0
          %1053 = vmatprep.subr.bf16.mxu0 0
          %1054 = vmatpush2.bf16.msra.mxu0 0
          %1055 = vmatprep.subr.bf16.mxu0 0
          %1056 = vmatpush2.bf16.msra.mxu0 0
          %1057 = vmatprep.subr.bf16.mxu0 0
          %1058 = vmatpush2.bf16.msra.mxu0 0
          %1059 = vmatprep.mubr.bf16.mxu0 0
          %1060 = vmatmul.mubr.bf16.gmra.mxu0 %v1025
          %v1061 = vpop.f32.mrf.mxu0
          %v1062 = vadd.f32 %v530, %v1061
          %v1063 = vpop.f32.mrf.mxu0
          %v1064 = vpop.f32.mrf.mxu0
          %v1065 = vpop.f32.mrf.mxu0
          %1066 = vdwg.mxu0
          %v1067 = vadd.f32 %v1019, %v1062
          %v1068 = vxor.u32 %v1067, 2147483648
          %v1069 = vmul.f32 %v1068, 1.442695
          %v1070 = vpow.pop %v1069
          %v1071 = vadd.f32 %v1070, 1.0
          %v1072 = vrcp.pop %v1071
          %v1073 = vmul.f32 1.0, %v1072
          %1075 = vrot.lane.b32.xlu0 %v1062, 64
          %v1076 = vpop.permute.xlu0 %1075
          %v1078 = vmul.f32 %v1073, %v1076
          %1080 = vrot.lane.b32.xlu0 %v1078, 64
          %v1081 = vpop.permute.xlu0 %1080
          %v1083 = vadd.f32 %v1019, %v1081
          %v1084 = vtanh.pop %v1083
          %v1085 = vsub.f32 1.0, %v1073
          %1087 = vrot.lane.b32.xlu0 %v1084, 96
          %v1088 = vpop.permute.xlu0 %1087
          %v1090 = vmul.f32 %v1085, %v1088
          %v1091 = vmul.f32 %v1073, %v1011
          %v1092 = vadd.f32 %v1090, %v1091
          %1094 = vrot.lane.b32.xlu0 %v1092, 96
          %v1095 = vpop.permute.xlu0 %1094
          %s1097 = scalar_lea.vmem [#allocation5], 8
          %1098 = vst.msk [vmem:[%s1097] sm:$0xf] %vm935, %v1095
          %s1099 = scalar_lea.vmem [#allocation4], 12
          %v1100 = vld [vmem:[%s1099] sm:$0xf]
          %v1101 = vpack.c.bf16 %v1092, %v1092
          %1103 = vrot.lane.b32.xlu0 %v1101, 96
          %v1104 = vpop.permute.xlu0 %1103
          %v1106 = vsel %vm861, %v1104, 0
          %1108 = vmatprep.subr.bf16.mxu0 0
          %1109 = vmatpush1.bf16.msra.mxu0 0
          %1110 = vmatprep.subr.bf16.mxu0 0
          %1111 = vmatpush1.bf16.msra.mxu0 0
          %1112 = vmatprep.subr.bf16.mxu0 0
          %1113 = vmatpush1.bf16.msra.mxu0 0
          %1114 = vmatprep.subr.bf16.mxu0 0
          %1115 = vmatpush1.bf16.msra.mxu0 0
          %1116 = vmatprep.subr.bf16.mxu0 0
          %1117 = vmatpush1.bf16.msra.mxu0 0
          %1118 = vmatprep.subr.bf16.mxu0 0
          %1119 = vmatpush1.bf16.msra.mxu0 0
          %1120 = vmatprep.subr.bf16.mxu0 0
          %1121 = vmatpush1.bf16.msra.mxu0 %v858
          %1122 = vmatprep.subr.bf16.mxu0 0
          %1123 = vmatpush1.bf16.msra.mxu0 %v857
          %1124 = vmatprep.subr.bf16.mxu0 0
          %1125 = vmatpush2.bf16.msra.mxu0 0
          %1126 = vmatprep.subr.bf16.mxu0 0
          %1127 = vmatpush2.bf16.msra.mxu0 0
          %1128 = vmatprep.subr.bf16.mxu0 0
          %1129 = vmatpush2.bf16.msra.mxu0 0
          %1130 = vmatprep.subr.bf16.mxu0 0
          %1131 = vmatpush2.bf16.msra.mxu0 0
          %1132 = vmatprep.subr.bf16.mxu0 0
          %1133 = vmatpush2.bf16.msra.mxu0 0
          %1134 = vmatprep.subr.bf16.mxu0 0
          %1135 = vmatpush2.bf16.msra.mxu0 0
          %1136 = vmatprep.subr.bf16.mxu0 0
          %1137 = vmatpush2.bf16.msra.mxu0 0
          %1138 = vmatprep.subr.bf16.mxu0 0
          %1139 = vmatpush2.bf16.msra.mxu0 0
          %1140 = vmatprep.mubr.bf16.mxu0 0
          %1141 = vmatmul.mubr.bf16.gmra.mxu0 %v1106
          %v1142 = vpop.f32.mrf.mxu0
          %v1143 = vadd.f32 %v530, %v1142
          %v1144 = vpop.f32.mrf.mxu0
          %v1145 = vpop.f32.mrf.mxu0
          %v1146 = vpop.f32.mrf.mxu0
          %1147 = vdwg.mxu0
          %v1148 = vadd.f32 %v1100, %v1143
          %v1149 = vxor.u32 %v1148, 2147483648
          %v1150 = vmul.f32 %v1149, 1.442695
          %v1151 = vpow.pop %v1150
          %v1152 = vadd.f32 %v1151, 1.0
          %v1153 = vrcp.pop %v1152
          %v1154 = vmul.f32 1.0, %v1153
          %1156 = vrot.lane.b32.xlu0 %v1143, 64
          %v1157 = vpop.permute.xlu0 %1156
          %v1159 = vmul.f32 %v1154, %v1157
          %1161 = vrot.lane.b32.xlu0 %v1159, 64
          %v1162 = vpop.permute.xlu0 %1161
          %v1164 = vadd.f32 %v1100, %v1162
          %v1165 = vtanh.pop %v1164
          %v1166 = vsub.f32 1.0, %v1154
          %1168 = vrot.lane.b32.xlu0 %v1165, 96
          %v1169 = vpop.permute.xlu0 %1168
          %v1171 = vmul.f32 %v1166, %v1169
          %v1172 = vmul.f32 %v1154, %v1092
          %v1173 = vadd.f32 %v1171, %v1172
          %1175 = vrot.lane.b32.xlu0 %v1173, 96
          %v1176 = vpop.permute.xlu0 %1175
          %s1178 = scalar_lea.vmem [#allocation5], 12
          %1179 = vst.msk [vmem:[%s1178] sm:$0xf] %vm935, %v1176
          %s1180 = scalar_lea.vmem [#allocation4], 16
          %v1181 = vld [vmem:[%s1180] sm:$0xf]
          %v1182 = vpack.c.bf16 %v1173, %v1173
          %1184 = vrot.lane.b32.xlu0 %v1182, 96
          %v1185 = vpop.permute.xlu0 %1184
          %v1187 = vsel %vm861, %v1185, 0
          %1189 = vmatprep.subr.bf16.mxu0 0
          %1190 = vmatpush1.bf16.msra.mxu0 0
          %1191 = vmatprep.subr.bf16.mxu0 0
          %1192 = vmatpush1.bf16.msra.mxu0 0
          %1193 = vmatprep.subr.bf16.mxu0 0
          %1194 = vmatpush1.bf16.msra.mxu0 0
          %1195 = vmatprep.subr.bf16.mxu0 0
          %1196 = vmatpush1.bf16.msra.mxu0 0
          %1197 = vmatprep.subr.bf16.mxu0 0
          %1198 = vmatpush1.bf16.msra.mxu0 0
          %1199 = vmatprep.subr.bf16.mxu0 0
          %1200 = vmatpush1.bf16.msra.mxu0 0
          %1201 = vmatprep.subr.bf16.mxu0 0
          %1202 = vmatpush1.bf16.msra.mxu0 %v858
          %1203 = vmatprep.subr.bf16.mxu0 0
          %1204 = vmatpush1.bf16.msra.mxu0 %v857
          %1205 = vmatprep.subr.bf16.mxu0 0
          %1206 = vmatpush2.bf16.msra.mxu0 0
          %1207 = vmatprep.subr.bf16.mxu0 0
          %1208 = vmatpush2.bf16.msra.mxu0 0
          %1209 = vmatprep.subr.bf16.mxu0 0
          %1210 = vmatpush2.bf16.msra.mxu0 0
          %1211 = vmatprep.subr.bf16.mxu0 0
          %1212 = vmatpush2.bf16.msra.mxu0 0
          %1213 = vmatprep.subr.bf16.mxu0 0
          %1214 = vmatpush2.bf16.msra.mxu0 0
          %1215 = vmatprep.subr.bf16.mxu0 0
          %1216 = vmatpush2.bf16.msra.mxu0 0
          %1217 = vmatprep.subr.bf16.mxu0 0
          %1218 = vmatpush2.bf16.msra.mxu0 0
          %1219 = vmatprep.subr.bf16.mxu0 0
          %1220 = vmatpush2.bf16.msra.mxu0 0
          %1221 = vmatprep.mubr.bf16.mxu0 0
          %1222 = vmatmul.mubr.bf16.gmra.mxu0 %v1187
          %v1223 = vpop.f32.mrf.mxu0
          %v1224 = vadd.f32 %v530, %v1223
          %v1225 = vpop.f32.mrf.mxu0
          %v1226 = vpop.f32.mrf.mxu0
          %v1227 = vpop.f32.mrf.mxu0
          %1228 = vdwg.mxu0
          %v1229 = vadd.f32 %v1181, %v1224
          %v1230 = vxor.u32 %v1229, 2147483648
          %v1231 = vmul.f32 %v1230, 1.442695
          %v1232 = vpow.pop %v1231
          %v1233 = vadd.f32 %v1232, 1.0
          %v1234 = vrcp.pop %v1233
          %v1235 = vmul.f32 1.0, %v1234
          %1237 = vrot.lane.b32.xlu0 %v1224, 64
          %v1238 = vpop.permute.xlu0 %1237
          %v1240 = vmul.f32 %v1235, %v1238
          %1242 = vrot.lane.b32.xlu0 %v1240, 64
          %v1243 = vpop.permute.xlu0 %1242
          %v1245 = vadd.f32 %v1181, %v1243
          %v1246 = vtanh.pop %v1245
          %v1247 = vsub.f32 1.0, %v1235
          %1249 = vrot.lane.b32.xlu0 %v1246, 96
          %v1250 = vpop.permute.xlu0 %1249
          %v1252 = vmul.f32 %v1247, %v1250
          %v1253 = vmul.f32 %v1235, %v1173
          %v1254 = vadd.f32 %v1252, %v1253
          %1256 = vrot.lane.b32.xlu0 %v1254, 96
          %v1257 = vpop.permute.xlu0 %1256
          %s1259 = scalar_lea.vmem [#allocation5], 16
          %1260 = vst.msk [vmem:[%s1259] sm:$0xf] %vm935, %v1257
          %s1261 = scalar_lea.vmem [#allocation4], 20
          %v1262 = vld [vmem:[%s1261] sm:$0xf]
          %v1263 = vpack.c.bf16 %v1254, %v1254
          %1265 = vrot.lane.b32.xlu0 %v1263, 96
          %v1266 = vpop.permute.xlu0 %1265
          %v1268 = vsel %vm861, %v1266, 0
          %1270 = vmatprep.subr.bf16.mxu0 0
          %1271 = vmatpush1.bf16.msra.mxu0 0
          %1272 = vmatprep.subr.bf16.mxu0 0
          %1273 = vmatpush1.bf16.msra.mxu0 0
          %1274 = vmatprep.subr.bf16.mxu0 0
          %1275 = vmatpush1.bf16.msra.mxu0 0
          %1276 = vmatprep.subr.bf16.mxu0 0
          %1277 = vmatpush1.bf16.msra.mxu0 0
          %1278 = vmatprep.subr.bf16.mxu0 0
          %1279 = vmatpush1.bf16.msra.mxu0 0
          %1280 = vmatprep.subr.bf16.mxu0 0
          %1281 = vmatpush1.bf16.msra.mxu0 0
          %1282 = vmatprep.subr.bf16.mxu0 0
          %1283 = vmatpush1.bf16.msra.mxu0 %v858
          %1284 = vmatprep.subr.bf16.mxu0 0
          %1285 = vmatpush1.bf16.msra.mxu0 %v857
          %1286 = vmatprep.subr.bf16.mxu0 0
          %1287 = vmatpush2.bf16.msra.mxu0 0
          %1288 = vmatprep.subr.bf16.mxu0 0
          %1289 = vmatpush2.bf16.msra.mxu0 0
          %1290 = vmatprep.subr.bf16.mxu0 0
          %1291 = vmatpush2.bf16.msra.mxu0 0
          %1292 = vmatprep.subr.bf16.mxu0 0
          %1293 = vmatpush2.bf16.msra.mxu0 0
          %1294 = vmatprep.subr.bf16.mxu0 0
          %1295 = vmatpush2.bf16.msra.mxu0 0
          %1296 = vmatprep.subr.bf16.mxu0 0
          %1297 = vmatpush2.bf16.msra.mxu0 0
          %1298 = vmatprep.subr.bf16.mxu0 0
          %1299 = vmatpush2.bf16.msra.mxu0 0
          %1300 = vmatprep.subr.bf16.mxu0 0
          %1301 = vmatpush2.bf16.msra.mxu0 0
          %1302 = vmatprep.mubr.bf16.mxu0 0
          %1303 = vmatmul.mubr.bf16.gmra.mxu0 %v1268
          %v1304 = vpop.f32.mrf.mxu0
          %v1305 = vadd.f32 %v530, %v1304
          %v1306 = vpop.f32.mrf.mxu0
          %v1307 = vpop.f32.mrf.mxu0
          %v1308 = vpop.f32.mrf.mxu0
          %1309 = vdwg.mxu0
          %v1310 = vadd.f32 %v1262, %v1305
          %v1311 = vxor.u32 %v1310, 2147483648
          %v1312 = vmul.f32 %v1311, 1.442695
          %v1313 = vpow.pop %v1312
          %v1314 = vadd.f32 %v1313, 1.0
          %v1315 = vrcp.pop %v1314
          %v1316 = vmul.f32 1.0, %v1315
          %1318 = vrot.lane.b32.xlu0 %v1305, 64
          %v1319 = vpop.permute.xlu0 %1318
          %v1321 = vmul.f32 %v1316, %v1319
          %1323 = vrot.lane.b32.xlu0 %v1321, 64
          %v1324 = vpop.permute.xlu0 %1323
          %v1326 = vadd.f32 %v1262, %v1324
          %v1327 = vtanh.pop %v1326
          %v1328 = vsub.f32 1.0, %v1316
          %1330 = vrot.lane.b32.xlu0 %v1327, 96
          %v1331 = vpop.permute.xlu0 %1330
          %v1333 = vmul.f32 %v1328, %v1331
          %v1334 = vmul.f32 %v1316, %v1254
          %v1335 = vadd.f32 %v1333, %v1334
          %1337 = vrot.lane.b32.xlu0 %v1335, 96
          %v1338 = vpop.permute.xlu0 %1337
          %s1340 = scalar_lea.vmem [#allocation5], 20
          %1341 = vst.msk [vmem:[%s1340] sm:$0xf] %vm935, %v1338
          %s1342 = scalar_lea.vmem [#allocation4], 24
          %v1343 = vld [vmem:[%s1342] sm:$0xf]
          %v1344 = vpack.c.bf16 %v1335, %v1335
          %1346 = vrot.lane.b32.xlu0 %v1344, 96
          %v1347 = vpop.permute.xlu0 %1346
          %v1349 = vsel %vm861, %v1347, 0
          %1351 = vmatprep.subr.bf16.mxu0 0
          %1352 = vmatpush1.bf16.msra.mxu0 0
          %1353 = vmatprep.subr.bf16.mxu0 0
          %1354 = vmatpush1.bf16.msra.mxu0 0
          %1355 = vmatprep.subr.bf16.mxu0 0
          %1356 = vmatpush1.bf16.msra.mxu0 0
          %1357 = vmatprep.subr.bf16.mxu0 0
          %1358 = vmatpush1.bf16.msra.mxu0 0
          %1359 = vmatprep.subr.bf16.mxu0 0
          %1360 = vmatpush1.bf16.msra.mxu0 0
          %1361 = vmatprep.subr.bf16.mxu0 0
          %1362 = vmatpush1.bf16.msra.mxu0 0
          %1363 = vmatprep.subr.bf16.mxu0 0
          %1364 = vmatpush1.bf16.msra.mxu0 %v858
          %1365 = vmatprep.subr.bf16.mxu0 0
          %1366 = vmatpush1.bf16.msra.mxu0 %v857
          %1367 = vmatprep.subr.bf16.mxu0 0
          %1368 = vmatpush2.bf16.msra.mxu0 0
          %1369 = vmatprep.subr.bf16.mxu0 0
          %1370 = vmatpush2.bf16.msra.mxu0 0
          %1371 = vmatprep.subr.bf16.mxu0 0
          %1372 = vmatpush2.bf16.msra.mxu0 0
          %1373 = vmatprep.subr.bf16.mxu0 0
          %1374 = vmatpush2.bf16.msra.mxu0 0
          %1375 = vmatprep.subr.bf16.mxu0 0
          %1376 = vmatpush2.bf16.msra.mxu0 0
          %1377 = vmatprep.subr.bf16.mxu0 0
          %1378 = vmatpush2.bf16.msra.mxu0 0
          %1379 = vmatprep.subr.bf16.mxu0 0
          %1380 = vmatpush2.bf16.msra.mxu0 0
          %1381 = vmatprep.subr.bf16.mxu0 0
          %1382 = vmatpush2.bf16.msra.mxu0 0
          %1383 = vmatprep.mubr.bf16.mxu0 0
          %1384 = vmatmul.mubr.bf16.gmra.mxu0 %v1349
          %v1385 = vpop.f32.mrf.mxu0
          %v1386 = vadd.f32 %v530, %v1385
          %v1387 = vpop.f32.mrf.mxu0
          %v1388 = vpop.f32.mrf.mxu0
          %v1389 = vpop.f32.mrf.mxu0
          %1390 = vdwg.mxu0
          %v1391 = vadd.f32 %v1343, %v1386
          %v1392 = vxor.u32 %v1391, 2147483648
          %v1393 = vmul.f32 %v1392, 1.442695
          %v1394 = vpow.pop %v1393
          %v1395 = vadd.f32 %v1394, 1.0
          %v1396 = vrcp.pop %v1395
          %v1397 = vmul.f32 1.0, %v1396
          %1399 = vrot.lane.b32.xlu0 %v1386, 64
          %v1400 = vpop.permute.xlu0 %1399
          %v1402 = vmul.f32 %v1397, %v1400
          %1404 = vrot.lane.b32.xlu0 %v1402, 64
          %v1405 = vpop.permute.xlu0 %1404
          %v1407 = vadd.f32 %v1343, %v1405
          %v1408 = vtanh.pop %v1407
          %v1409 = vsub.f32 1.0, %v1397
          %1411 = vrot.lane.b32.xlu0 %v1408, 96
          %v1412 = vpop.permute.xlu0 %1411
          %v1414 = vmul.f32 %v1409, %v1412
          %v1415 = vmul.f32 %v1397, %v1335
          %v1416 = vadd.f32 %v1414, %v1415
          %1418 = vrot.lane.b32.xlu0 %v1416, 96
          %v1419 = vpop.permute.xlu0 %1418
          %s1421 = scalar_lea.vmem [#allocation5], 24
          %1422 = vst.msk [vmem:[%s1421] sm:$0xf] %vm935, %v1419
          %s1423 = scalar_lea.vmem [#allocation4], 28
          %v1424 = vld [vmem:[%s1423] sm:$0xf]
          %v1425 = vpack.c.bf16 %v1416, %v1416
          %1427 = vrot.lane.b32.xlu0 %v1425, 96
          %v1428 = vpop.permute.xlu0 %1427
          %v1430 = vsel %vm861, %v1428, 0
          %1432 = vmatprep.subr.bf16.mxu0 0
          %1433 = vmatpush1.bf16.msra.mxu0 0
          %1434 = vmatprep.subr.bf16.mxu0 0
          %1435 = vmatpush1.bf16.msra.mxu0 0
          %1436 = vmatprep.subr.bf16.mxu0 0
          %1437 = vmatpush1.bf16.msra.mxu0 0
          %1438 = vmatprep.subr.bf16.mxu0 0
          %1439 = vmatpush1.bf16.msra.mxu0 0
          %1440 = vmatprep.subr.bf16.mxu0 0
          %1441 = vmatpush1.bf16.msra.mxu0 0
          %1442 = vmatprep.subr.bf16.mxu0 0
          %1443 = vmatpush1.bf16.msra.mxu0 0
          %1444 = vmatprep.subr.bf16.mxu0 0
          %1445 = vmatpush1.bf16.msra.mxu0 %v858
          %1446 = vmatprep.subr.bf16.mxu0 0
          %1447 = vmatpush1.bf16.msra.mxu0 %v857
          %1448 = vmatprep.subr.bf16.mxu0 0
          %1449 = vmatpush2.bf16.msra.mxu0 0
          %1450 = vmatprep.subr.bf16.mxu0 0
          %1451 = vmatpush2.bf16.msra.mxu0 0
          %1452 = vmatprep.subr.bf16.mxu0 0
          %1453 = vmatpush2.bf16.msra.mxu0 0
          %1454 = vmatprep.subr.bf16.mxu0 0
          %1455 = vmatpush2.bf16.msra.mxu0 0
          %1456 = vmatprep.subr.bf16.mxu0 0
          %1457 = vmatpush2.bf16.msra.mxu0 0
          %1458 = vmatprep.subr.bf16.mxu0 0
          %1459 = vmatpush2.bf16.msra.mxu0 0
          %1460 = vmatprep.subr.bf16.mxu0 0
          %1461 = vmatpush2.bf16.msra.mxu0 0
          %1462 = vmatprep.subr.bf16.mxu0 0
          %1463 = vmatpush2.bf16.msra.mxu0 0
          %1464 = vmatprep.mubr.bf16.mxu0 0
          %1465 = vmatmul.mubr.bf16.gmra.mxu0 %v1430
          %v1466 = vpop.f32.mrf.mxu0
          %v1467 = vadd.f32 %v530, %v1466
          %v1468 = vpop.f32.mrf.mxu0
          %v1469 = vpop.f32.mrf.mxu0
          %v1470 = vpop.f32.mrf.mxu0
          %1471 = vdwg.mxu0
          %v1472 = vadd.f32 %v1424, %v1467
          %v1473 = vxor.u32 %v1472, 2147483648
          %v1474 = vmul.f32 %v1473, 1.442695
          %v1475 = vpow.pop %v1474
          %v1476 = vadd.f32 %v1475, 1.0
          %v1477 = vrcp.pop %v1476
          %v1478 = vmul.f32 1.0, %v1477
          %1480 = vrot.lane.b32.xlu0 %v1467, 64
          %v1481 = vpop.permute.xlu0 %1480
          %v1483 = vmul.f32 %v1478, %v1481
          %1485 = vrot.lane.b32.xlu0 %v1483, 64
          %v1486 = vpop.permute.xlu0 %1485
          %v1488 = vadd.f32 %v1424, %v1486
          %v1489 = vtanh.pop %v1488
          %v1490 = vsub.f32 1.0, %v1478
          %1492 = vrot.lane.b32.xlu0 %v1489, 96
          %v1493 = vpop.permute.xlu0 %1492
          %v1495 = vmul.f32 %v1490, %v1493
          %v1496 = vmul.f32 %v1478, %v1416
          %v1497 = vadd.f32 %v1495, %v1496
          %1499 = vrot.lane.b32.xlu0 %v1497, 96
          %v1500 = vpop.permute.xlu0 %1499
          %s1502 = scalar_lea.vmem [#allocation5], 28
          %1503 = vst.msk [vmem:[%s1502] sm:$0xf] %vm935, %v1500
          %v1504 = vld [vmem:[#allocation5] sm:$0xf]
          %v1505 = vld [vmem:[#allocation5 + $0x4] sm:$0xf]
          %v1506 = vld [vmem:[#allocation5 + $0x8] sm:$0xf]
          %v1507 = vld [vmem:[#allocation5 + $0xc] sm:$0xf]
          %v1508 = vld [vmem:[#allocation5 + $0x10] sm:$0xf]
          %v1509 = vld [vmem:[#allocation5 + $0x14] sm:$0xf]
          %v1510 = vld [vmem:[#allocation5 + $0x18] sm:$0xf]
          %v1511 = vld [vmem:[#allocation5 + $0x1c] sm:$0xf]
          %1513 = vset.pattern.permute.xlu0 0
          %1514 = vperm.xlu0 %1513, %v533
          %v1515 = vpop.permute.xlu0 %1514
          %v1517 = vmul.f32 %v1515, %v1504
          %v1518 = vmul.f32 %v1515, %v1505
          %v1519 = vmul.f32 %v1515, %v1506
          %v1520 = vmul.f32 %v1515, %v1507
          %v1521 = vmul.f32 %v1515, %v1508
          %v1522 = vmul.f32 %v1515, %v1509
          %v1523 = vmul.f32 %v1515, %v1510
          %v1524 = vmul.f32 %v1515, %v1511
          %1525 = vset.pattern.permute.xlu0 1
          %1526 = vperm.xlu0 %1525, %v533
          %v1527 = vpop.permute.xlu0 %1526
          %v1529 = vmul.f32 %v1527, %v1504
          %v1530 = vmul.f32 %v1527, %v1505
          %v1531 = vmul.f32 %v1527, %v1506
          %v1532 = vmul.f32 %v1527, %v1507
          %v1533 = vmul.f32 %v1527, %v1508
          %v1534 = vmul.f32 %v1527, %v1509
          %v1535 = vmul.f32 %v1527, %v1510
          %v1536 = vmul.f32 %v1527, %v1511
          %1545 = vrot.lane.b32.xlu0 %v1529, 112
          %v1546 = vpop.permute.xlu0 %1545
          %1547 = vrot.lane.b32.xlu0 %v1530, 112
          %v1548 = vpop.permute.xlu0 %1547
          %1549 = vrot.lane.b32.xlu0 %v1531, 112
          %v1550 = vpop.permute.xlu0 %1549
          %1551 = vrot.lane.b32.xlu0 %v1532, 112
          %v1552 = vpop.permute.xlu0 %1551
          %1553 = vrot.lane.b32.xlu0 %v1533, 112
          %v1554 = vpop.permute.xlu0 %1553
          %1555 = vrot.lane.b32.xlu0 %v1534, 112
          %v1556 = vpop.permute.xlu0 %1555
          %1557 = vrot.lane.b32.xlu0 %v1535, 112
          %v1558 = vpop.permute.xlu0 %1557
          %1559 = vrot.lane.b32.xlu0 %v1536, 112
          %v1560 = vpop.permute.xlu0 %1559
          %v1569 = vadd.f32 %v1517, %v1546
          %v1570 = vadd.f32 %v1518, %v1548
          %v1571 = vadd.f32 %v1519, %v1550
          %v1572 = vadd.f32 %v1520, %v1552
          %v1573 = vadd.f32 %v1521, %v1554
          %v1574 = vadd.f32 %v1522, %v1556
          %v1575 = vadd.f32 %v1523, %v1558
          %v1576 = vadd.f32 %v1524, %v1560
          %s1577 = scalar_lea.vmem [#allocation2], %s542
          %vm1578 = vcmask 125952
          %1579 = vst.msk [vmem:[%s1577] sm:$0xf] %vm1578, %v1569
          %1580 = vst.msk [vmem:[%s1577 + $0x4] sm:$0xf] %vm1578, %v1570
          %1581 = vst.msk [vmem:[%s1577 + $0x8] sm:$0xf] %vm1578, %v1571
          %1582 = vst.msk [vmem:[%s1577 + $0xc] sm:$0xf] %vm1578, %v1572
          %1583 = vst.msk [vmem:[%s1577 + $0x10] sm:$0xf] %vm1578, %v1573
          %1584 = vst.msk [vmem:[%s1577 + $0x14] sm:$0xf] %vm1578, %v1574
          %1585 = vst.msk [vmem:[%s1577 + $0x18] sm:$0xf] %vm1578, %v1575
          %1586 = vst.msk [vmem:[%s1577 + $0x1c] sm:$0xf] %vm1578, %v1576
        $region89: #{tpu_custom_call.1} parent=83 // loop_footer
          %s539 = sadd.s32 1, %s535
        $region90: #{tpu_custom_call.1} parent=83 // loop_footer_branch
          %534 = sbr.rel target = $region86
        $region91: #{tpu_custom_call.1} parent=83 // loop_exit
          _
        %v1587 = vld [vmem:[#allocation2] sm:$0xf]
        %v1588 = vld [vmem:[#allocation2 + $0x4] sm:$0xf]
        %v1589 = vld [vmem:[#allocation2 + $0x8] sm:$0xf]
        %v1590 = vld [vmem:[#allocation2 + $0xc] sm:$0xf]
        %v1591 = vld [vmem:[#allocation2 + $0x10] sm:$0xf]
        %v1592 = vld [vmem:[#allocation2 + $0x14] sm:$0xf]
        %v1593 = vld [vmem:[#allocation2 + $0x18] sm:$0xf]
        %v1594 = vld [vmem:[#allocation2 + $0x1c] sm:$0xf]
        %v1595 = vld [vmem:[#allocation2 + $0x20] sm:$0xf]
        %v1596 = vld [vmem:[#allocation2 + $0x24] sm:$0xf]
        %v1597 = vld [vmem:[#allocation2 + $0x28] sm:$0xf]
        %v1598 = vld [vmem:[#allocation2 + $0x2c] sm:$0xf]
        %v1599 = vld [vmem:[#allocation2 + $0x30] sm:$0xf]
        %v1600 = vld [vmem:[#allocation2 + $0x34] sm:$0xf]
        %v1601 = vld [vmem:[#allocation2 + $0x38] sm:$0xf]
        %v1602 = vld [vmem:[#allocation2 + $0x3c] sm:$0xf]
        %v1619 = vcombine.low %v1587, %v1588
        %v1620 = vcombine.low %v1589, %v1590
        %v1621 = vcombine.low %v1591, %v1592
        %v1622 = vcombine.low %v1593, %v1594
        %v1623 = vcombine.low %v1595, %v1596
        %v1624 = vcombine.low %v1597, %v1598
        %v1625 = vcombine.low %v1599, %v1600
        %v1626 = vcombine.low %v1601, %v1602
        %v1635 = vpack.c.bf16 %v1620, %v1619
        %v1636 = vpack.c.bf16 %v1622, %v1621
        %v1637 = vpack.c.bf16 %v1624, %v1623
        %v1638 = vpack.c.bf16 %v1626, %v1625
        %v1639 = vld [vmem:[%s7] sm:$0xf]
        %v1640 = vld [vmem:[%s7 + $0x4] sm:$0xf]
        %v1643 = vunpack.c.l.b16 %v1639
        %v1644 = vunpack.c.l.b16 %v1640
        %v1645 = vpack.c.b16 %v1644, %v1643
        %vm1647 = vcmask 130048
        %v1649 = vsel %vm1647, %v1635, 0
        %v1652 = vsel %vm1647, %v1636, 0
        %v1655 = vsel %vm1647, %v1637, 0
        %v1658 = vsel %vm1647, %v1638, 0
        %1660 = vmatprep.subr.bf16.mxu0 0
        %1661 = vmatpush1.bf16.msra.mxu0 0
        %1662 = vmatprep.subr.bf16.mxu0 0
        %1663 = vmatpush1.bf16.msra.mxu0 0
        %1664 = vmatprep.subr.bf16.mxu0 0
        %1665 = vmatpush1.bf16.msra.mxu0 0
        %1666 = vmatprep.subr.bf16.mxu0 0
        %1667 = vmatpush1.bf16.msra.mxu0 0
        %1668 = vmatprep.subr.bf16.mxu0 0
        %1669 = vmatpush1.bf16.msra.mxu0 0
        %1670 = vmatprep.subr.bf16.mxu0 0
        %1671 = vmatpush1.bf16.msra.mxu0 0
        %1672 = vmatprep.subr.bf16.mxu0 0
        %1673 = vmatpush1.bf16.msra.mxu0 0
        %1674 = vmatprep.subr.bf16.mxu0 0
        %1675 = vmatpush1.bf16.msra.mxu0 %v1645
        %1676 = vmatprep.subr.bf16.mxu0 0
        %1677 = vmatpush2.bf16.msra.mxu0 0
        %1678 = vmatprep.subr.bf16.mxu0 0
        %1679 = vmatpush2.bf16.msra.mxu0 0
        %1680 = vmatprep.subr.bf16.mxu0 0
        %1681 = vmatpush2.bf16.msra.mxu0 0
        %1682 = vmatprep.subr.bf16.mxu0 0
        %1683 = vmatpush2.bf16.msra.mxu0 0
        %1684 = vmatprep.subr.bf16.mxu0 0
        %1685 = vmatpush2.bf16.msra.mxu0 0
        %1686 = vmatprep.subr.bf16.mxu0 0
        %1687 = vmatpush2.bf16.msra.mxu0 0
        %1688 = vmatprep.subr.bf16.mxu0 0
        %1689 = vmatpush2.bf16.msra.mxu0 0
        %1690 = vmatprep.subr.bf16.mxu0 0
        %1691 = vmatpush2.bf16.msra.mxu0 0
        %1692 = vmatprep.mubr.bf16.mxu0 0
        %1693 = vmatmul.mubr.bf16.gmra.mxu0 %v1649
        %v1694 = vpop.f32.mrf.mxu0
        %v1695 = vadd.f32 0.0, %v1694
        %v1696 = vpop.f32.mrf.mxu0
        %v1697 = vpop.f32.mrf.mxu0
        %v1698 = vadd.f32 0.0, %v1697
        %v1699 = vpop.f32.mrf.mxu0
        %1700 = vmatprep.mubr.bf16.mxu0 0
        %1701 = vmatmul.mubr.bf16.gmra.mxu0 %v1652
        %v1702 = vpop.f32.mrf.mxu0
        %v1703 = vadd.f32 0.0, %v1702
        %v1704 = vpop.f32.mrf.mxu0
        %v1705 = vpop.f32.mrf.mxu0
        %v1706 = vadd.f32 0.0, %v1705
        %v1707 = vpop.f32.mrf.mxu0
        %1708 = vmatprep.mubr.bf16.mxu0 0
        %1709 = vmatmul.mubr.bf16.gmra.mxu0 %v1655
        %v1710 = vpop.f32.mrf.mxu0
        %v1711 = vadd.f32 0.0, %v1710
        %v1712 = vpop.f32.mrf.mxu0
        %v1713 = vpop.f32.mrf.mxu0
        %v1714 = vadd.f32 0.0, %v1713
        %v1715 = vpop.f32.mrf.mxu0
        %1716 = vmatprep.mubr.bf16.mxu0 0
        %1717 = vmatmul.mubr.bf16.gmra.mxu0 %v1658
        %v1718 = vpop.f32.mrf.mxu0
        %v1719 = vadd.f32 0.0, %v1718
        %v1720 = vpop.f32.mrf.mxu0
        %v1721 = vpop.f32.mrf.mxu0
        %v1722 = vadd.f32 0.0, %v1721
        %v1723 = vpop.f32.mrf.mxu0
        %1724 = vdwg.mxu0
        %v1733 = vcombine.high %v1695, %v1695
        %v1734 = vcombine.high %v1698, %v1698
        %v1735 = vcombine.high %v1703, %v1703
        %v1736 = vcombine.high %v1706, %v1706
        %v1737 = vcombine.high %v1711, %v1711
        %v1738 = vcombine.high %v1714, %v1714
        %v1739 = vcombine.high %v1719, %v1719
        %v1740 = vcombine.high %v1722, %v1722
        %v1749 = vld [vmem:[%s8] sm:$0x1]
        %v1751 = vlaneseq
        %v1752 = vshrl.u32 %v1751, 7
        %v1753 = vsub.s32 0, %v1752
        %v1754 = vrot.slane %v1749, %v1753
        %v1756 = vmul.f32 %v1695, %v1754
        %v1757 = vmul.f32 %v1733, %v1754
        %v1758 = vmul.f32 %v1698, %v1754
        %v1759 = vmul.f32 %v1734, %v1754
        %v1760 = vmul.f32 %v1703, %v1754
        %v1761 = vmul.f32 %v1735, %v1754
        %v1762 = vmul.f32 %v1706, %v1754
        %v1763 = vmul.f32 %v1736, %v1754
        %v1764 = vmul.f32 %v1711, %v1754
        %v1765 = vmul.f32 %v1737, %v1754
        %v1766 = vmul.f32 %v1714, %v1754
        %v1767 = vmul.f32 %v1738, %v1754
        %v1768 = vmul.f32 %v1719, %v1754
        %v1769 = vmul.f32 %v1739, %v1754
        %v1770 = vmul.f32 %v1722, %v1754
        %v1771 = vmul.f32 %v1740, %v1754
        %vm1772 = vcmask 125952
        %v1773 = vsel %vm1772, %v1756, 0.0
        %1774 = vadd.xlane.f32.xlu0 %v1773
        %v1775 = vpop.xlane.xlu0 %1774
        %v1776 = vsel %vm1772, %v1757, 0.0
        %1777 = vadd.xlane.f32.xlu0 %v1776
        %v1778 = vpop.xlane.xlu0 %1777
        %v1779 = vsel %vm1772, %v1758, 0.0
        %1780 = vadd.xlane.f32.xlu0 %v1779
        %v1781 = vpop.xlane.xlu0 %1780
        %v1782 = vsel %vm1772, %v1759, 0.0
        %1783 = vadd.xlane.f32.xlu0 %v1782
        %v1784 = vpop.xlane.xlu0 %1783
        %v1785 = vsel %vm1772, %v1760, 0.0
        %1786 = vadd.xlane.f32.xlu0 %v1785
        %v1787 = vpop.xlane.xlu0 %1786
        %v1788 = vsel %vm1772, %v1761, 0.0
        %1789 = vadd.xlane.f32.xlu0 %v1788
        %v1790 = vpop.xlane.xlu0 %1789
        %v1791 = vsel %vm1772, %v1762, 0.0
        %1792 = vadd.xlane.f32.xlu0 %v1791
        %v1793 = vpop.xlane.xlu0 %1792
        %v1794 = vsel %vm1772, %v1763, 0.0
        %1795 = vadd.xlane.f32.xlu0 %v1794
        %v1796 = vpop.xlane.xlu0 %1795
        %v1797 = vsel %vm1772, %v1764, 0.0
        %1798 = vadd.xlane.f32.xlu0 %v1797
        %v1799 = vpop.xlane.xlu0 %1798
        %v1800 = vsel %vm1772, %v1765, 0.0
        %1801 = vadd.xlane.f32.xlu0 %v1800
        %v1802 = vpop.xlane.xlu0 %1801
        %v1803 = vsel %vm1772, %v1766, 0.0
        %1804 = vadd.xlane.f32.xlu0 %v1803
        %v1805 = vpop.xlane.xlu0 %1804
        %v1806 = vsel %vm1772, %v1767, 0.0
        %1807 = vadd.xlane.f32.xlu0 %v1806
        %v1808 = vpop.xlane.xlu0 %1807
        %v1809 = vsel %vm1772, %v1768, 0.0
        %1810 = vadd.xlane.f32.xlu0 %v1809
        %v1811 = vpop.xlane.xlu0 %1810
        %v1812 = vsel %vm1772, %v1769, 0.0
        %1813 = vadd.xlane.f32.xlu0 %v1812
        %v1814 = vpop.xlane.xlu0 %1813
        %v1815 = vsel %vm1772, %v1770, 0.0
        %1816 = vadd.xlane.f32.xlu0 %v1815
        %v1817 = vpop.xlane.xlu0 %1816
        %v1818 = vsel %vm1772, %v1771, 0.0
        %1819 = vadd.xlane.f32.xlu0 %v1818
        %v1820 = vpop.xlane.xlu0 %1819
        %v1821 = vld [vmem:[%s9] sm:$0x1]
        %v1823 = vlaneseq
        %v1824 = vshrl.u32 %v1823, 7
        %v1825 = vsub.s32 0, %v1824
        %v1826 = vrot.slane %v1821, %v1825
        %v1828 = vmul.f32 %v1695, %v1826
        %v1829 = vmul.f32 %v1733, %v1826
        %v1830 = vmul.f32 %v1698, %v1826
        %v1831 = vmul.f32 %v1734, %v1826
        %v1832 = vmul.f32 %v1703, %v1826
        %v1833 = vmul.f32 %v1735, %v1826
        %v1834 = vmul.f32 %v1706, %v1826
        %v1835 = vmul.f32 %v1736, %v1826
        %v1836 = vmul.f32 %v1711, %v1826
        %v1837 = vmul.f32 %v1737, %v1826
        %v1838 = vmul.f32 %v1714, %v1826
        %v1839 = vmul.f32 %v1738, %v1826
        %v1840 = vmul.f32 %v1719, %v1826
        %v1841 = vmul.f32 %v1739, %v1826
        %v1842 = vmul.f32 %v1722, %v1826
        %v1843 = vmul.f32 %v1740, %v1826
        %v1844 = vsel %vm1772, %v1828, 0.0
        %1845 = vadd.xlane.f32.xlu0 %v1844
        %v1846 = vpop.xlane.xlu0 %1845
        %v1847 = vsel %vm1772, %v1829, 0.0
        %1848 = vadd.xlane.f32.xlu0 %v1847
        %v1849 = vpop.xlane.xlu0 %1848
        %v1850 = vsel %vm1772, %v1830, 0.0
        %1851 = vadd.xlane.f32.xlu0 %v1850
        %v1852 = vpop.xlane.xlu0 %1851
        %v1853 = vsel %vm1772, %v1831, 0.0
        %1854 = vadd.xlane.f32.xlu0 %v1853
        %v1855 = vpop.xlane.xlu0 %1854
        %v1856 = vsel %vm1772, %v1832, 0.0
        %1857 = vadd.xlane.f32.xlu0 %v1856
        %v1858 = vpop.xlane.xlu0 %1857
        %v1859 = vsel %vm1772, %v1833, 0.0
        %1860 = vadd.xlane.f32.xlu0 %v1859
        %v1861 = vpop.xlane.xlu0 %1860
        %v1862 = vsel %vm1772, %v1834, 0.0
        %1863 = vadd.xlane.f32.xlu0 %v1862
        %v1864 = vpop.xlane.xlu0 %1863
        %v1865 = vsel %vm1772, %v1835, 0.0
        %1866 = vadd.xlane.f32.xlu0 %v1865
        %v1867 = vpop.xlane.xlu0 %1866
        %v1868 = vsel %vm1772, %v1836, 0.0
        %1869 = vadd.xlane.f32.xlu0 %v1868
        %v1870 = vpop.xlane.xlu0 %1869
        %v1871 = vsel %vm1772, %v1837, 0.0
        %1872 = vadd.xlane.f32.xlu0 %v1871
        %v1873 = vpop.xlane.xlu0 %1872
        %v1874 = vsel %vm1772, %v1838, 0.0
        %1875 = vadd.xlane.f32.xlu0 %v1874
        %v1876 = vpop.xlane.xlu0 %1875
        %v1877 = vsel %vm1772, %v1839, 0.0
        %1878 = vadd.xlane.f32.xlu0 %v1877
        %v1879 = vpop.xlane.xlu0 %1878
        %v1880 = vsel %vm1772, %v1840, 0.0
        %1881 = vadd.xlane.f32.xlu0 %v1880
        %v1882 = vpop.xlane.xlu0 %1881
        %v1883 = vsel %vm1772, %v1841, 0.0
        %1884 = vadd.xlane.f32.xlu0 %v1883
        %v1885 = vpop.xlane.xlu0 %1884
        %v1886 = vsel %vm1772, %v1842, 0.0
        %1887 = vadd.xlane.f32.xlu0 %v1886
        %v1888 = vpop.xlane.xlu0 %1887
        %v1889 = vsel %vm1772, %v1843, 0.0
        %1890 = vadd.xlane.f32.xlu0 %v1889
        %v1891 = vpop.xlane.xlu0 %1890
        %v1908 = vlaneseq
        %v1909 = vand.u32 %v1908, 127
        %v1910 = vlaneseq
        %v1911 = vshrl.u32 %v1910, 7
        %v1912 = vsub.s32 %v1909, %v1911
        %v1913 = vrot.slane %v1846, %v1912
        %v1914 = vlaneseq
        %v1915 = vshrl.u32 %v1914, 7
        %v1916 = vsub.s32 %v1909, %v1915
        %v1917 = vrot.slane %v1849, %v1916
        %v1918 = vlaneseq
        %v1919 = vshrl.u32 %v1918, 7
        %v1920 = vsub.s32 %v1909, %v1919
        %v1921 = vrot.slane %v1852, %v1920
        %v1922 = vlaneseq
        %v1923 = vshrl.u32 %v1922, 7
        %v1924 = vsub.s32 %v1909, %v1923
        %v1925 = vrot.slane %v1855, %v1924
        %v1926 = vlaneseq
        %v1927 = vshrl.u32 %v1926, 7
        %v1928 = vsub.s32 %v1909, %v1927
        %v1929 = vrot.slane %v1858, %v1928
        %v1930 = vlaneseq
        %v1931 = vshrl.u32 %v1930, 7
        %v1932 = vsub.s32 %v1909, %v1931
        %v1933 = vrot.slane %v1861, %v1932
        %v1934 = vlaneseq
        %v1935 = vshrl.u32 %v1934, 7
        %v1936 = vsub.s32 %v1909, %v1935
        %v1937 = vrot.slane %v1864, %v1936
        %v1938 = vlaneseq
        %v1939 = vshrl.u32 %v1938, 7
        %v1940 = vsub.s32 %v1909, %v1939
        %v1941 = vrot.slane %v1867, %v1940
        %v1942 = vlaneseq
        %v1943 = vshrl.u32 %v1942, 7
        %v1944 = vsub.s32 %v1909, %v1943
        %v1945 = vrot.slane %v1870, %v1944
        %v1946 = vlaneseq
        %v1947 = vshrl.u32 %v1946, 7
        %v1948 = vsub.s32 %v1909, %v1947
        %v1949 = vrot.slane %v1873, %v1948
        %v1950 = vlaneseq
        %v1951 = vshrl.u32 %v1950, 7
        %v1952 = vsub.s32 %v1909, %v1951
        %v1953 = vrot.slane %v1876, %v1952
        %v1954 = vlaneseq
        %v1955 = vshrl.u32 %v1954, 7
        %v1956 = vsub.s32 %v1909, %v1955
        %v1957 = vrot.slane %v1879, %v1956
        %v1958 = vlaneseq
        %v1959 = vshrl.u32 %v1958, 7
        %v1960 = vsub.s32 %v1909, %v1959
        %v1961 = vrot.slane %v1882, %v1960
        %v1962 = vlaneseq
        %v1963 = vshrl.u32 %v1962, 7
        %v1964 = vsub.s32 %v1909, %v1963
        %v1965 = vrot.slane %v1885, %v1964
        %v1966 = vlaneseq
        %v1967 = vshrl.u32 %v1966, 7
        %v1968 = vsub.s32 %v1909, %v1967
        %v1969 = vrot.slane %v1888, %v1968
        %v1970 = vlaneseq
        %v1971 = vshrl.u32 %v1970, 7
        %v1972 = vsub.s32 %v1909, %v1971
        %v1973 = vrot.slane %v1891, %v1972
        %vm1974 = vcmask 1042434
        %v1975 = vsel %vm1974, %v1913, %v1913
        %vm1976 = vcmask 1043459
        %v1977 = vsel %vm1976, %v1913, %v1975
        %v1978 = vsel %vm1974, %v1917, %v1917
        %v1979 = vsel %vm1976, %v1917, %v1978
        %v1980 = vsel %vm1974, %v1921, %v1921
        %v1981 = vsel %vm1976, %v1921, %v1980
        %v1982 = vsel %vm1974, %v1925, %v1925
        %v1983 = vsel %vm1976, %v1925, %v1982
        %v1984 = vsel %vm1974, %v1929, %v1929
        %v1985 = vsel %vm1976, %v1929, %v1984
        %v1986 = vsel %vm1974, %v1933, %v1933
        %v1987 = vsel %vm1976, %v1933, %v1986
        %v1988 = vsel %vm1974, %v1937, %v1937
        %v1989 = vsel %vm1976, %v1937, %v1988
        %v1990 = vsel %vm1974, %v1941, %v1941
        %v1991 = vsel %vm1976, %v1941, %v1990
        %v1992 = vsel %vm1974, %v1945, %v1945
        %v1993 = vsel %vm1976, %v1945, %v1992
        %v1994 = vsel %vm1974, %v1949, %v1949
        %v1995 = vsel %vm1976, %v1949, %v1994
        %v1996 = vsel %vm1974, %v1953, %v1953
        %v1997 = vsel %vm1976, %v1953, %v1996
        %v1998 = vsel %vm1974, %v1957, %v1957
        %v1999 = vsel %vm1976, %v1957, %v1998
        %v2000 = vsel %vm1974, %v1961, %v1961
        %v2001 = vsel %vm1976, %v1961, %v2000
        %v2002 = vsel %vm1974, %v1965, %v1965
        %v2003 = vsel %vm1976, %v1965, %v2002
        %v2004 = vsel %vm1974, %v1969, %v1969
        %v2005 = vsel %vm1976, %v1969, %v2004
        %v2006 = vsel %vm1974, %v1973, %v1973
        %v2007 = vsel %vm1976, %v1973, %v2006
        %v2024 = vadd.f32 %v1775, %v1977
        %v2025 = vadd.f32 %v1778, %v1979
        %v2026 = vadd.f32 %v1781, %v1981
        %v2027 = vadd.f32 %v1784, %v1983
        %v2028 = vadd.f32 %v1787, %v1985
        %v2029 = vadd.f32 %v1790, %v1987
        %v2030 = vadd.f32 %v1793, %v1989
        %v2031 = vadd.f32 %v1796, %v1991
        %v2032 = vadd.f32 %v1799, %v1993
        %v2033 = vadd.f32 %v1802, %v1995
        %v2034 = vadd.f32 %v1805, %v1997
        %v2035 = vadd.f32 %v1808, %v1999
        %v2036 = vadd.f32 %v1811, %v2001
        %v2037 = vadd.f32 %v1814, %v2003
        %v2038 = vadd.f32 %v1817, %v2005
        %v2039 = vadd.f32 %v1820, %v2007
        %vm2040 = vcmp.gt.f32.partialorder %v2024, 0.0
        %vm2041 = vcmp.gt.f32.partialorder %v2025, 0.0
        %vm2042 = vcmp.gt.f32.partialorder %v2026, 0.0
        %vm2043 = vcmp.gt.f32.partialorder %v2027, 0.0
        %vm2044 = vcmp.gt.f32.partialorder %v2028, 0.0
        %vm2045 = vcmp.gt.f32.partialorder %v2029, 0.0
        %vm2046 = vcmp.gt.f32.partialorder %v2030, 0.0
        %vm2047 = vcmp.gt.f32.partialorder %v2031, 0.0
        %vm2048 = vcmp.gt.f32.partialorder %v2032, 0.0
        %vm2049 = vcmp.gt.f32.partialorder %v2033, 0.0
        %vm2050 = vcmp.gt.f32.partialorder %v2034, 0.0
        %vm2051 = vcmp.gt.f32.partialorder %v2035, 0.0
        %vm2052 = vcmp.gt.f32.partialorder %v2036, 0.0
        %vm2053 = vcmp.gt.f32.partialorder %v2037, 0.0
        %vm2054 = vcmp.gt.f32.partialorder %v2038, 0.0
        %vm2055 = vcmp.gt.f32.partialorder %v2039, 0.0
        %v2056 = vmul.f32 %v2024, 0.2
        %v2057 = vmul.f32 %v2025, 0.2
        %v2058 = vmul.f32 %v2026, 0.2
        %v2059 = vmul.f32 %v2027, 0.2
        %v2060 = vmul.f32 %v2028, 0.2
        %v2061 = vmul.f32 %v2029, 0.2
        %v2062 = vmul.f32 %v2030, 0.2
        %v2063 = vmul.f32 %v2031, 0.2
        %v2064 = vmul.f32 %v2032, 0.2
        %v2065 = vmul.f32 %v2033, 0.2
        %v2066 = vmul.f32 %v2034, 0.2
        %v2067 = vmul.f32 %v2035, 0.2
        %v2068 = vmul.f32 %v2036, 0.2
        %v2069 = vmul.f32 %v2037, 0.2
        %v2070 = vmul.f32 %v2038, 0.2
        %v2071 = vmul.f32 %v2039, 0.2
        %v2072 = vsel %vm2040, %v2024, %v2056
        %v2073 = vsel %vm2041, %v2025, %v2057
        %v2074 = vsel %vm2042, %v2026, %v2058
        %v2075 = vsel %vm2043, %v2027, %v2059
        %v2076 = vsel %vm2044, %v2028, %v2060
        %v2077 = vsel %vm2045, %v2029, %v2061
        %v2078 = vsel %vm2046, %v2030, %v2062
        %v2079 = vsel %vm2047, %v2031, %v2063
        %v2080 = vsel %vm2048, %v2032, %v2064
        %v2081 = vsel %vm2049, %v2033, %v2065
        %v2082 = vsel %vm2050, %v2034, %v2066
        %v2083 = vsel %vm2051, %v2035, %v2067
        %v2084 = vsel %vm2052, %v2036, %v2068
        %v2085 = vsel %vm2053, %v2037, %v2069
        %v2086 = vsel %vm2054, %v2038, %v2070
        %v2087 = vsel %vm2055, %v2039, %v2071
        %v2088 = vld [vmem:[%s1] sm:$0xf]
        %v2089 = vadd.f32 %v2072, %v2088
        %v2090 = vadd.f32 %v2073, %v2088
        %v2091 = vadd.f32 %v2074, %v2088
        %v2092 = vadd.f32 %v2075, %v2088
        %v2093 = vadd.f32 %v2076, %v2088
        %v2094 = vadd.f32 %v2077, %v2088
        %v2095 = vadd.f32 %v2078, %v2088
        %v2096 = vadd.f32 %v2079, %v2088
        %v2097 = vadd.f32 %v2080, %v2088
        %v2098 = vadd.f32 %v2081, %v2088
        %v2099 = vadd.f32 %v2082, %v2088
        %v2100 = vadd.f32 %v2083, %v2088
        %v2101 = vadd.f32 %v2084, %v2088
        %v2102 = vadd.f32 %v2085, %v2088
        %v2103 = vadd.f32 %v2086, %v2088
        %v2104 = vadd.f32 %v2087, %v2088
        %vm2105 = vcmask 27648
        %v2106 = vsel %vm2105, %v2089, -inf
        %2107 = vmax.xlane.f32.xlu0 %v2106
        %v2108 = vpop.xlane.xlu0 %2107
        %v2109 = vsel %vm2105, %v2090, -inf
        %2110 = vmax.xlane.f32.xlu0 %v2109
        %v2111 = vpop.xlane.xlu0 %2110
        %v2112 = vsel %vm2105, %v2091, -inf
        %2113 = vmax.xlane.f32.xlu0 %v2112
        %v2114 = vpop.xlane.xlu0 %2113
        %v2115 = vsel %vm2105, %v2092, -inf
        %2116 = vmax.xlane.f32.xlu0 %v2115
        %v2117 = vpop.xlane.xlu0 %2116
        %v2118 = vsel %vm2105, %v2093, -inf
        %2119 = vmax.xlane.f32.xlu0 %v2118
        %v2120 = vpop.xlane.xlu0 %2119
        %v2121 = vsel %vm2105, %v2094, -inf
        %2122 = vmax.xlane.f32.xlu0 %v2121
        %v2123 = vpop.xlane.xlu0 %2122
        %v2124 = vsel %vm2105, %v2095, -inf
        %2125 = vmax.xlane.f32.xlu0 %v2124
        %v2126 = vpop.xlane.xlu0 %2125
        %v2127 = vsel %vm2105, %v2096, -inf
        %2128 = vmax.xlane.f32.xlu0 %v2127
        %v2129 = vpop.xlane.xlu0 %2128
        %v2130 = vsel %vm2105, %v2097, -inf
        %2131 = vmax.xlane.f32.xlu0 %v2130
        %v2132 = vpop.xlane.xlu0 %2131
        %v2133 = vsel %vm2105, %v2098, -inf
        %2134 = vmax.xlane.f32.xlu0 %v2133
        %v2135 = vpop.xlane.xlu0 %2134
        %v2136 = vsel %vm2105, %v2099, -inf
        %2137 = vmax.xlane.f32.xlu0 %v2136
        %v2138 = vpop.xlane.xlu0 %2137
        %v2139 = vsel %vm2105, %v2100, -inf
        %2140 = vmax.xlane.f32.xlu0 %v2139
        %v2141 = vpop.xlane.xlu0 %2140
        %v2142 = vsel %vm2105, %v2101, -inf
        %2143 = vmax.xlane.f32.xlu0 %v2142
        %v2144 = vpop.xlane.xlu0 %2143
        %v2145 = vsel %vm2105, %v2102, -inf
        %2146 = vmax.xlane.f32.xlu0 %v2145
        %v2147 = vpop.xlane.xlu0 %2146
        %v2148 = vsel %vm2105, %v2103, -inf
        %2149 = vmax.xlane.f32.xlu0 %v2148
        %v2150 = vpop.xlane.xlu0 %2149
        %v2151 = vsel %vm2105, %v2104, -inf
        %2152 = vmax.xlane.f32.xlu0 %v2151
        %v2153 = vpop.xlane.xlu0 %2152
        %v2154 = vsub.f32 %v2089, %v2108
        %v2155 = vsub.f32 %v2090, %v2111
        %v2156 = vsub.f32 %v2091, %v2114
        %v2157 = vsub.f32 %v2092, %v2117
        %v2158 = vsub.f32 %v2093, %v2120
        %v2159 = vsub.f32 %v2094, %v2123
        %v2160 = vsub.f32 %v2095, %v2126
        %v2161 = vsub.f32 %v2096, %v2129
        %v2162 = vsub.f32 %v2097, %v2132
        %v2163 = vsub.f32 %v2098, %v2135
        %v2164 = vsub.f32 %v2099, %v2138
        %v2165 = vsub.f32 %v2100, %v2141
        %v2166 = vsub.f32 %v2101, %v2144
        %v2167 = vsub.f32 %v2102, %v2147
        %v2168 = vsub.f32 %v2103, %v2150
        %v2169 = vsub.f32 %v2104, %v2153
        %v2170 = vmul.f32 %v2154, 1.442695
        %v2171 = vpow.pop %v2170
        %v2172 = vmul.f32 %v2155, 1.442695
        %v2173 = vpow.pop %v2172
        %v2174 = vmul.f32 %v2156, 1.442695
        %v2175 = vpow.pop %v2174
        %v2176 = vmul.f32 %v2157, 1.442695
        %v2177 = vpow.pop %v2176
        %v2178 = vmul.f32 %v2158, 1.442695
        %v2179 = vpow.pop %v2178
        %v2180 = vmul.f32 %v2159, 1.442695
        %v2181 = vpow.pop %v2180
        %v2182 = vmul.f32 %v2160, 1.442695
        %v2183 = vpow.pop %v2182
        %v2184 = vmul.f32 %v2161, 1.442695
        %v2185 = vpow.pop %v2184
        %v2186 = vmul.f32 %v2162, 1.442695
        %v2187 = vpow.pop %v2186
        %v2188 = vmul.f32 %v2163, 1.442695
        %v2189 = vpow.pop %v2188
        %v2190 = vmul.f32 %v2164, 1.442695
        %v2191 = vpow.pop %v2190
        %v2192 = vmul.f32 %v2165, 1.442695
        %v2193 = vpow.pop %v2192
        %v2194 = vmul.f32 %v2166, 1.442695
        %v2195 = vpow.pop %v2194
        %v2196 = vmul.f32 %v2167, 1.442695
        %v2197 = vpow.pop %v2196
        %v2198 = vmul.f32 %v2168, 1.442695
        %v2199 = vpow.pop %v2198
        %v2200 = vmul.f32 %v2169, 1.442695
        %v2201 = vpow.pop %v2200
        %v2202 = vsel %vm2105, %v2171, 0.0
        %2203 = vadd.xlane.f32.xlu0 %v2202
        %v2204 = vpop.xlane.xlu0 %2203
        %v2205 = vsel %vm2105, %v2173, 0.0
        %2206 = vadd.xlane.f32.xlu0 %v2205
        %v2207 = vpop.xlane.xlu0 %2206
        %v2208 = vsel %vm2105, %v2175, 0.0
        %2209 = vadd.xlane.f32.xlu0 %v2208
        %v2210 = vpop.xlane.xlu0 %2209
        %v2211 = vsel %vm2105, %v2177, 0.0
        %2212 = vadd.xlane.f32.xlu0 %v2211
        %v2213 = vpop.xlane.xlu0 %2212
        %v2214 = vsel %vm2105, %v2179, 0.0
        %2215 = vadd.xlane.f32.xlu0 %v2214
        %v2216 = vpop.xlane.xlu0 %2215
        %v2217 = vsel %vm2105, %v2181, 0.0
        %2218 = vadd.xlane.f32.xlu0 %v2217
        %v2219 = vpop.xlane.xlu0 %2218
        %v2220 = vsel %vm2105, %v2183, 0.0
        %2221 = vadd.xlane.f32.xlu0 %v2220
        %v2222 = vpop.xlane.xlu0 %2221
        %v2223 = vsel %vm2105, %v2185, 0.0
        %2224 = vadd.xlane.f32.xlu0 %v2223
        %v2225 = vpop.xlane.xlu0 %2224
        %v2226 = vsel %vm2105, %v2187, 0.0
        %2227 = vadd.xlane.f32.xlu0 %v2226
        %v2228 = vpop.xlane.xlu0 %2227
        %v2229 = vsel %vm2105, %v2189, 0.0
        %2230 = vadd.xlane.f32.xlu0 %v2229
        %v2231 = vpop.xlane.xlu0 %2230
        %v2232 = vsel %vm2105, %v2191, 0.0
        %2233 = vadd.xlane.f32.xlu0 %v2232
        %v2234 = vpop.xlane.xlu0 %2233
        %v2235 = vsel %vm2105, %v2193, 0.0
        %2236 = vadd.xlane.f32.xlu0 %v2235
        %v2237 = vpop.xlane.xlu0 %2236
        %v2238 = vsel %vm2105, %v2195, 0.0
        %2239 = vadd.xlane.f32.xlu0 %v2238
        %v2240 = vpop.xlane.xlu0 %2239
        %v2241 = vsel %vm2105, %v2197, 0.0
        %2242 = vadd.xlane.f32.xlu0 %v2241
        %v2243 = vpop.xlane.xlu0 %2242
        %v2244 = vsel %vm2105, %v2199, 0.0
        %2245 = vadd.xlane.f32.xlu0 %v2244
        %v2246 = vpop.xlane.xlu0 %2245
        %v2247 = vsel %vm2105, %v2201, 0.0
        %2248 = vadd.xlane.f32.xlu0 %v2247
        %v2249 = vpop.xlane.xlu0 %2248
        %v2250 = vrcp.pop %v2204
        %v2251 = vmul.f32 %v2171, %v2250
        %v2252 = vrcp.pop %v2207
        %v2253 = vmul.f32 %v2173, %v2252
        %v2254 = vrcp.pop %v2210
        %v2255 = vmul.f32 %v2175, %v2254
        %v2256 = vrcp.pop %v2213
        %v2257 = vmul.f32 %v2177, %v2256
        %v2258 = vrcp.pop %v2216
        %v2259 = vmul.f32 %v2179, %v2258
        %v2260 = vrcp.pop %v2219
        %v2261 = vmul.f32 %v2181, %v2260
        %v2262 = vrcp.pop %v2222
        %v2263 = vmul.f32 %v2183, %v2262
        %v2264 = vrcp.pop %v2225
        %v2265 = vmul.f32 %v2185, %v2264
        %v2266 = vrcp.pop %v2228
        %v2267 = vmul.f32 %v2187, %v2266
        %v2268 = vrcp.pop %v2231
        %v2269 = vmul.f32 %v2189, %v2268
        %v2270 = vrcp.pop %v2234
        %v2271 = vmul.f32 %v2191, %v2270
        %v2272 = vrcp.pop %v2237
        %v2273 = vmul.f32 %v2193, %v2272
        %v2274 = vrcp.pop %v2240
        %v2275 = vmul.f32 %v2195, %v2274
        %v2276 = vrcp.pop %v2243
        %v2277 = vmul.f32 %v2197, %v2276
        %v2278 = vrcp.pop %v2246
        %v2279 = vmul.f32 %v2199, %v2278
        %v2280 = vrcp.pop %v2249
        %v2281 = vmul.f32 %v2201, %v2280
        %v2282 = vpack.c.bf16 %v2251, %v2251
        %v2283 = vpack.c.bf16 %v2253, %v2253
        %v2284 = vpack.c.bf16 %v2255, %v2255
        %v2285 = vpack.c.bf16 %v2257, %v2257
        %v2286 = vpack.c.bf16 %v2259, %v2259
        %v2287 = vpack.c.bf16 %v2261, %v2261
        %v2288 = vpack.c.bf16 %v2263, %v2263
        %v2289 = vpack.c.bf16 %v2265, %v2265
        %v2290 = vpack.c.bf16 %v2267, %v2267
        %v2291 = vpack.c.bf16 %v2269, %v2269
        %v2292 = vpack.c.bf16 %v2271, %v2271
        %v2293 = vpack.c.bf16 %v2273, %v2273
        %v2294 = vpack.c.bf16 %v2275, %v2275
        %v2295 = vpack.c.bf16 %v2277, %v2277
        %v2296 = vpack.c.bf16 %v2279, %v2279
        %v2297 = vpack.c.bf16 %v2281, %v2281
        %v2298 = vpack.c.bf16 %v1695, %v1695
        %v2299 = vpack.c.bf16 %v1733, %v1733
        %v2300 = vpack.c.bf16 %v1698, %v1698
        %v2301 = vpack.c.bf16 %v1734, %v1734
        %v2302 = vpack.c.bf16 %v1703, %v1703
        %v2303 = vpack.c.bf16 %v1735, %v1735
        %v2304 = vpack.c.bf16 %v1706, %v1706
        %v2305 = vpack.c.bf16 %v1736, %v1736
        %v2306 = vpack.c.bf16 %v1711, %v1711
        %v2307 = vpack.c.bf16 %v1737, %v1737
        %v2308 = vpack.c.bf16 %v1714, %v1714
        %v2309 = vpack.c.bf16 %v1738, %v1738
        %v2310 = vpack.c.bf16 %v1719, %v1719
        %v2311 = vpack.c.bf16 %v1739, %v1739
        %v2312 = vpack.c.bf16 %v1722, %v1722
        %v2313 = vpack.c.bf16 %v1740, %v1740
        %v2314 = vld [vmem:[%s10] sm:$0x1]
        %v2316 = vlaneseq
        %v2317 = vshrl.u32 %v2316, 7
        %v2318 = vsub.s32 0, %v2317
        %v2319 = vrot.slane %v2314, %v2318
        %vm2321 = vcmask 31744
        %v2323 = vsel %vm2321, %v2282, 0
        %vm2325 = vcmask 1041408
        %v2327 = vsel %vm2325, %v2298, 0
        %2329 = vmatprep.subr.bf16.mxu0 0
        %2330 = vmatpush1.bf16.msra.mxu0 0
        %2331 = vmatprep.subr.bf16.mxu0 0
        %2332 = vmatpush1.bf16.msra.mxu0 0
        %2333 = vmatprep.subr.bf16.mxu0 0
        %2334 = vmatpush1.bf16.msra.mxu0 0
        %2335 = vmatprep.subr.bf16.mxu0 0
        %2336 = vmatpush1.bf16.msra.mxu0 0
        %2337 = vmatprep.subr.bf16.mxu0 0
        %2338 = vmatpush1.bf16.msra.mxu0 0
        %2339 = vmatprep.subr.bf16.mxu0 0
        %2340 = vmatpush1.bf16.msra.mxu0 0
        %2341 = vmatprep.subr.bf16.mxu0 0
        %2342 = vmatpush1.bf16.msra.mxu0 0
        %2343 = vmatprep.subr.bf16.mxu0 0
        %2344 = vmatpush1.bf16.msra.mxu0 %v2327
        %2345 = vmatprep.subr.bf16.mxu0 0
        %2346 = vmatpush2.bf16.msra.mxu0 0
        %2347 = vmatprep.subr.bf16.mxu0 0
        %2348 = vmatpush2.bf16.msra.mxu0 0
        %2349 = vmatprep.subr.bf16.mxu0 0
        %2350 = vmatpush2.bf16.msra.mxu0 0
        %2351 = vmatprep.subr.bf16.mxu0 0
        %2352 = vmatpush2.bf16.msra.mxu0 0
        %2353 = vmatprep.subr.bf16.mxu0 0
        %2354 = vmatpush2.bf16.msra.mxu0 0
        %2355 = vmatprep.subr.bf16.mxu0 0
        %2356 = vmatpush2.bf16.msra.mxu0 0
        %2357 = vmatprep.subr.bf16.mxu0 0
        %2358 = vmatpush2.bf16.msra.mxu0 0
        %2359 = vmatprep.subr.bf16.mxu0 0
        %2360 = vmatpush2.bf16.msra.mxu0 0
        %2361 = vmatprep.mubr.bf16.mxu0 0
        %2362 = vmatmul.mubr.bf16.gmra.mxu0 %v2323
        %v2363 = vpop.f32.mrf.mxu0
        %v2364 = vadd.f32 %v2319, %v2363
        %v2365 = vpop.f32.mrf.mxu0
        %v2366 = vpop.f32.mrf.mxu0
        %v2367 = vpop.f32.mrf.mxu0
        %2368 = vdwg.mxu0
        %v2370 = vsel %vm2321, %v2283, 0
        %v2373 = vsel %vm2325, %v2299, 0
        %2375 = vmatprep.subr.bf16.mxu0 0
        %2376 = vmatpush1.bf16.msra.mxu0 0
        %2377 = vmatprep.subr.bf16.mxu0 0
        %2378 = vmatpush1.bf16.msra.mxu0 0
        %2379 = vmatprep.subr.bf16.mxu0 0
        %2380 = vmatpush1.bf16.msra.mxu0 0
        %2381 = vmatprep.subr.bf16.mxu0 0
        %2382 = vmatpush1.bf16.msra.mxu0 0
        %2383 = vmatprep.subr.bf16.mxu0 0
        %2384 = vmatpush1.bf16.msra.mxu0 0
        %2385 = vmatprep.subr.bf16.mxu0 0
        %2386 = vmatpush1.bf16.msra.mxu0 0
        %2387 = vmatprep.subr.bf16.mxu0 0
        %2388 = vmatpush1.bf16.msra.mxu0 0
        %2389 = vmatprep.subr.bf16.mxu0 0
        %2390 = vmatpush1.bf16.msra.mxu0 %v2373
        %2391 = vmatprep.subr.bf16.mxu0 0
        %2392 = vmatpush2.bf16.msra.mxu0 0
        %2393 = vmatprep.subr.bf16.mxu0 0
        %2394 = vmatpush2.bf16.msra.mxu0 0
        %2395 = vmatprep.subr.bf16.mxu0 0
        %2396 = vmatpush2.bf16.msra.mxu0 0
        %2397 = vmatprep.subr.bf16.mxu0 0
        %2398 = vmatpush2.bf16.msra.mxu0 0
        %2399 = vmatprep.subr.bf16.mxu0 0
        %2400 = vmatpush2.bf16.msra.mxu0 0
        %2401 = vmatprep.subr.bf16.mxu0 0
        %2402 = vmatpush2.bf16.msra.mxu0 0
        %2403 = vmatprep.subr.bf16.mxu0 0
        %2404 = vmatpush2.bf16.msra.mxu0 0
        %2405 = vmatprep.subr.bf16.mxu0 0
        %2406 = vmatpush2.bf16.msra.mxu0 0
        %2407 = vmatprep.mubr.bf16.mxu0 0
        %2408 = vmatmul.mubr.bf16.gmra.mxu0 %v2370
        %v2409 = vpop.f32.mrf.mxu0
        %v2410 = vadd.f32 %v2319, %v2409
        %v2411 = vpop.f32.mrf.mxu0
        %v2412 = vpop.f32.mrf.mxu0
        %v2413 = vpop.f32.mrf.mxu0
        %2414 = vdwg.mxu0
        %v2416 = vsel %vm2321, %v2284, 0
        %v2419 = vsel %vm2325, %v2300, 0
        %2421 = vmatprep.subr.bf16.mxu0 0
        %2422 = vmatpush1.bf16.msra.mxu0 0
        %2423 = vmatprep.subr.bf16.mxu0 0
        %2424 = vmatpush1.bf16.msra.mxu0 0
        %2425 = vmatprep.subr.bf16.mxu0 0
        %2426 = vmatpush1.bf16.msra.mxu0 0
        %2427 = vmatprep.subr.bf16.mxu0 0
        %2428 = vmatpush1.bf16.msra.mxu0 0
        %2429 = vmatprep.subr.bf16.mxu0 0
        %2430 = vmatpush1.bf16.msra.mxu0 0
        %2431 = vmatprep.subr.bf16.mxu0 0
        %2432 = vmatpush1.bf16.msra.mxu0 0
        %2433 = vmatprep.subr.bf16.mxu0 0
        %2434 = vmatpush1.bf16.msra.mxu0 0
        %2435 = vmatprep.subr.bf16.mxu0 0
        %2436 = vmatpush1.bf16.msra.mxu0 %v2419
        %2437 = vmatprep.subr.bf16.mxu0 0
        %2438 = vmatpush2.bf16.msra.mxu0 0
        %2439 = vmatprep.subr.bf16.mxu0 0
        %2440 = vmatpush2.bf16.msra.mxu0 0
        %2441 = vmatprep.subr.bf16.mxu0 0
        %2442 = vmatpush2.bf16.msra.mxu0 0
        %2443 = vmatprep.subr.bf16.mxu0 0
        %2444 = vmatpush2.bf16.msra.mxu0 0
        %2445 = vmatprep.subr.bf16.mxu0 0
        %2446 = vmatpush2.bf16.msra.mxu0 0
        %2447 = vmatprep.subr.bf16.mxu0 0
        %2448 = vmatpush2.bf16.msra.mxu0 0
        %2449 = vmatprep.subr.bf16.mxu0 0
        %2450 = vmatpush2.bf16.msra.mxu0 0
        %2451 = vmatprep.subr.bf16.mxu0 0
        %2452 = vmatpush2.bf16.msra.mxu0 0
        %2453 = vmatprep.mubr.bf16.mxu0 0
        %2454 = vmatmul.mubr.bf16.gmra.mxu0 %v2416
        %v2455 = vpop.f32.mrf.mxu0
        %v2456 = vadd.f32 %v2319, %v2455
        %v2457 = vpop.f32.mrf.mxu0
        %v2458 = vpop.f32.mrf.mxu0
        %v2459 = vpop.f32.mrf.mxu0
        %2460 = vdwg.mxu0
        %v2462 = vsel %vm2321, %v2285, 0
        %v2465 = vsel %vm2325, %v2301, 0
        %2467 = vmatprep.subr.bf16.mxu0 0
        %2468 = vmatpush1.bf16.msra.mxu0 0
        %2469 = vmatprep.subr.bf16.mxu0 0
        %2470 = vmatpush1.bf16.msra.mxu0 0
        %2471 = vmatprep.subr.bf16.mxu0 0
        %2472 = vmatpush1.bf16.msra.mxu0 0
        %2473 = vmatprep.subr.bf16.mxu0 0
        %2474 = vmatpush1.bf16.msra.mxu0 0
        %2475 = vmatprep.subr.bf16.mxu0 0
        %2476 = vmatpush1.bf16.msra.mxu0 0
        %2477 = vmatprep.subr.bf16.mxu0 0
        %2478 = vmatpush1.bf16.msra.mxu0 0
        %2479 = vmatprep.subr.bf16.mxu0 0
        %2480 = vmatpush1.bf16.msra.mxu0 0
        %2481 = vmatprep.subr.bf16.mxu0 0
        %2482 = vmatpush1.bf16.msra.mxu0 %v2465
        %2483 = vmatprep.subr.bf16.mxu0 0
        %2484 = vmatpush2.bf16.msra.mxu0 0
        %2485 = vmatprep.subr.bf16.mxu0 0
        %2486 = vmatpush2.bf16.msra.mxu0 0
        %2487 = vmatprep.subr.bf16.mxu0 0
        %2488 = vmatpush2.bf16.msra.mxu0 0
        %2489 = vmatprep.subr.bf16.mxu0 0
        %2490 = vmatpush2.bf16.msra.mxu0 0
        %2491 = vmatprep.subr.bf16.mxu0 0
        %2492 = vmatpush2.bf16.msra.mxu0 0
        %2493 = vmatprep.subr.bf16.mxu0 0
        %2494 = vmatpush2.bf16.msra.mxu0 0
        %2495 = vmatprep.subr.bf16.mxu0 0
        %2496 = vmatpush2.bf16.msra.mxu0 0
        %2497 = vmatprep.subr.bf16.mxu0 0
        %2498 = vmatpush2.bf16.msra.mxu0 0
        %2499 = vmatprep.mubr.bf16.mxu0 0
        %2500 = vmatmul.mubr.bf16.gmra.mxu0 %v2462
        %v2501 = vpop.f32.mrf.mxu0
        %v2502 = vadd.f32 %v2319, %v2501
        %v2503 = vpop.f32.mrf.mxu0
        %v2504 = vpop.f32.mrf.mxu0
        %v2505 = vpop.f32.mrf.mxu0
        %2506 = vdwg.mxu0
        %v2508 = vsel %vm2321, %v2286, 0
        %v2511 = vsel %vm2325, %v2302, 0
        %2513 = vmatprep.subr.bf16.mxu0 0
        %2514 = vmatpush1.bf16.msra.mxu0 0
        %2515 = vmatprep.subr.bf16.mxu0 0
        %2516 = vmatpush1.bf16.msra.mxu0 0
        %2517 = vmatprep.subr.bf16.mxu0 0
        %2518 = vmatpush1.bf16.msra.mxu0 0
        %2519 = vmatprep.subr.bf16.mxu0 0
        %2520 = vmatpush1.bf16.msra.mxu0 0
        %2521 = vmatprep.subr.bf16.mxu0 0
        %2522 = vmatpush1.bf16.msra.mxu0 0
        %2523 = vmatprep.subr.bf16.mxu0 0
        %2524 = vmatpush1.bf16.msra.mxu0 0
        %2525 = vmatprep.subr.bf16.mxu0 0
        %2526 = vmatpush1.bf16.msra.mxu0 0
        %2527 = vmatprep.subr.bf16.mxu0 0
        %2528 = vmatpush1.bf16.msra.mxu0 %v2511
        %2529 = vmatprep.subr.bf16.mxu0 0
        %2530 = vmatpush2.bf16.msra.mxu0 0
        %2531 = vmatprep.subr.bf16.mxu0 0
        %2532 = vmatpush2.bf16.msra.mxu0 0
        %2533 = vmatprep.subr.bf16.mxu0 0
        %2534 = vmatpush2.bf16.msra.mxu0 0
        %2535 = vmatprep.subr.bf16.mxu0 0
        %2536 = vmatpush2.bf16.msra.mxu0 0
        %2537 = vmatprep.subr.bf16.mxu0 0
        %2538 = vmatpush2.bf16.msra.mxu0 0
        %2539 = vmatprep.subr.bf16.mxu0 0
        %2540 = vmatpush2.bf16.msra.mxu0 0
        %2541 = vmatprep.subr.bf16.mxu0 0
        %2542 = vmatpush2.bf16.msra.mxu0 0
        %2543 = vmatprep.subr.bf16.mxu0 0
        %2544 = vmatpush2.bf16.msra.mxu0 0
        %2545 = vmatprep.mubr.bf16.mxu0 0
        %2546 = vmatmul.mubr.bf16.gmra.mxu0 %v2508
        %v2547 = vpop.f32.mrf.mxu0
        %v2548 = vadd.f32 %v2319, %v2547
        %v2549 = vpop.f32.mrf.mxu0
        %v2550 = vpop.f32.mrf.mxu0
        %v2551 = vpop.f32.mrf.mxu0
        %2552 = vdwg.mxu0
        %v2554 = vsel %vm2321, %v2287, 0
        %v2557 = vsel %vm2325, %v2303, 0
        %2559 = vmatprep.subr.bf16.mxu0 0
        %2560 = vmatpush1.bf16.msra.mxu0 0
        %2561 = vmatprep.subr.bf16.mxu0 0
        %2562 = vmatpush1.bf16.msra.mxu0 0
        %2563 = vmatprep.subr.bf16.mxu0 0
        %2564 = vmatpush1.bf16.msra.mxu0 0
        %2565 = vmatprep.subr.bf16.mxu0 0
        %2566 = vmatpush1.bf16.msra.mxu0 0
        %2567 = vmatprep.subr.bf16.mxu0 0
        %2568 = vmatpush1.bf16.msra.mxu0 0
        %2569 = vmatprep.subr.bf16.mxu0 0
        %2570 = vmatpush1.bf16.msra.mxu0 0
        %2571 = vmatprep.subr.bf16.mxu0 0
        %2572 = vmatpush1.bf16.msra.mxu0 0
        %2573 = vmatprep.subr.bf16.mxu0 0
        %2574 = vmatpush1.bf16.msra.mxu0 %v2557
        %2575 = vmatprep.subr.bf16.mxu0 0
        %2576 = vmatpush2.bf16.msra.mxu0 0
        %2577 = vmatprep.subr.bf16.mxu0 0
        %2578 = vmatpush2.bf16.msra.mxu0 0
        %2579 = vmatprep.subr.bf16.mxu0 0
        %2580 = vmatpush2.bf16.msra.mxu0 0
        %2581 = vmatprep.subr.bf16.mxu0 0
        %2582 = vmatpush2.bf16.msra.mxu0 0
        %2583 = vmatprep.subr.bf16.mxu0 0
        %2584 = vmatpush2.bf16.msra.mxu0 0
        %2585 = vmatprep.subr.bf16.mxu0 0
        %2586 = vmatpush2.bf16.msra.mxu0 0
        %2587 = vmatprep.subr.bf16.mxu0 0
        %2588 = vmatpush2.bf16.msra.mxu0 0
        %2589 = vmatprep.subr.bf16.mxu0 0
        %2590 = vmatpush2.bf16.msra.mxu0 0
        %2591 = vmatprep.mubr.bf16.mxu0 0
        %2592 = vmatmul.mubr.bf16.gmra.mxu0 %v2554
        %v2593 = vpop.f32.mrf.mxu0
        %v2594 = vadd.f32 %v2319, %v2593
        %v2595 = vpop.f32.mrf.mxu0
        %v2596 = vpop.f32.mrf.mxu0
        %v2597 = vpop.f32.mrf.mxu0
        %2598 = vdwg.mxu0
        %v2600 = vsel %vm2321, %v2288, 0
        %v2603 = vsel %vm2325, %v2304, 0
        %2605 = vmatprep.subr.bf16.mxu0 0
        %2606 = vmatpush1.bf16.msra.mxu0 0
        %2607 = vmatprep.subr.bf16.mxu0 0
        %2608 = vmatpush1.bf16.msra.mxu0 0
        %2609 = vmatprep.subr.bf16.mxu0 0
        %2610 = vmatpush1.bf16.msra.mxu0 0
        %2611 = vmatprep.subr.bf16.mxu0 0
        %2612 = vmatpush1.bf16.msra.mxu0 0
        %2613 = vmatprep.subr.bf16.mxu0 0
        %2614 = vmatpush1.bf16.msra.mxu0 0
        %2615 = vmatprep.subr.bf16.mxu0 0
        %2616 = vmatpush1.bf16.msra.mxu0 0
        %2617 = vmatprep.subr.bf16.mxu0 0
        %2618 = vmatpush1.bf16.msra.mxu0 0
        %2619 = vmatprep.subr.bf16.mxu0 0
        %2620 = vmatpush1.bf16.msra.mxu0 %v2603
        %2621 = vmatprep.subr.bf16.mxu0 0
        %2622 = vmatpush2.bf16.msra.mxu0 0
        %2623 = vmatprep.subr.bf16.mxu0 0
        %2624 = vmatpush2.bf16.msra.mxu0 0
        %2625 = vmatprep.subr.bf16.mxu0 0
        %2626 = vmatpush2.bf16.msra.mxu0 0
        %2627 = vmatprep.subr.bf16.mxu0 0
        %2628 = vmatpush2.bf16.msra.mxu0 0
        %2629 = vmatprep.subr.bf16.mxu0 0
        %2630 = vmatpush2.bf16.msra.mxu0 0
        %2631 = vmatprep.subr.bf16.mxu0 0
        %2632 = vmatpush2.bf16.msra.mxu0 0
        %2633 = vmatprep.subr.bf16.mxu0 0
        %2634 = vmatpush2.bf16.msra.mxu0 0
        %2635 = vmatprep.subr.bf16.mxu0 0
        %2636 = vmatpush2.bf16.msra.mxu0 0
        %2637 = vmatprep.mubr.bf16.mxu0 0
        %2638 = vmatmul.mubr.bf16.gmra.mxu0 %v2600
        %v2639 = vpop.f32.mrf.mxu0
        %v2640 = vadd.f32 %v2319, %v2639
        %v2641 = vpop.f32.mrf.mxu0
        %v2642 = vpop.f32.mrf.mxu0
        %v2643 = vpop.f32.mrf.mxu0
        %2644 = vdwg.mxu0
        %v2646 = vsel %vm2321, %v2289, 0
        %v2649 = vsel %vm2325, %v2305, 0
        %2651 = vmatprep.subr.bf16.mxu0 0
        %2652 = vmatpush1.bf16.msra.mxu0 0
        %2653 = vmatprep.subr.bf16.mxu0 0
        %2654 = vmatpush1.bf16.msra.mxu0 0
        %2655 = vmatprep.subr.bf16.mxu0 0
        %2656 = vmatpush1.bf16.msra.mxu0 0
        %2657 = vmatprep.subr.bf16.mxu0 0
        %2658 = vmatpush1.bf16.msra.mxu0 0
        %2659 = vmatprep.subr.bf16.mxu0 0
        %2660 = vmatpush1.bf16.msra.mxu0 0
        %2661 = vmatprep.subr.bf16.mxu0 0
        %2662 = vmatpush1.bf16.msra.mxu0 0
        %2663 = vmatprep.subr.bf16.mxu0 0
        %2664 = vmatpush1.bf16.msra.mxu0 0
        %2665 = vmatprep.subr.bf16.mxu0 0
        %2666 = vmatpush1.bf16.msra.mxu0 %v2649
        %2667 = vmatprep.subr.bf16.mxu0 0
        %2668 = vmatpush2.bf16.msra.mxu0 0
        %2669 = vmatprep.subr.bf16.mxu0 0
        %2670 = vmatpush2.bf16.msra.mxu0 0
        %2671 = vmatprep.subr.bf16.mxu0 0
        %2672 = vmatpush2.bf16.msra.mxu0 0
        %2673 = vmatprep.subr.bf16.mxu0 0
        %2674 = vmatpush2.bf16.msra.mxu0 0
        %2675 = vmatprep.subr.bf16.mxu0 0
        %2676 = vmatpush2.bf16.msra.mxu0 0
        %2677 = vmatprep.subr.bf16.mxu0 0
        %2678 = vmatpush2.bf16.msra.mxu0 0
        %2679 = vmatprep.subr.bf16.mxu0 0
        %2680 = vmatpush2.bf16.msra.mxu0 0
        %2681 = vmatprep.subr.bf16.mxu0 0
        %2682 = vmatpush2.bf16.msra.mxu0 0
        %2683 = vmatprep.mubr.bf16.mxu0 0
        %2684 = vmatmul.mubr.bf16.gmra.mxu0 %v2646
        %v2685 = vpop.f32.mrf.mxu0
        %v2686 = vadd.f32 %v2319, %v2685
        %v2687 = vpop.f32.mrf.mxu0
        %v2688 = vpop.f32.mrf.mxu0
        %v2689 = vpop.f32.mrf.mxu0
        %2690 = vdwg.mxu0
        %v2692 = vsel %vm2321, %v2290, 0
        %v2695 = vsel %vm2325, %v2306, 0
        %2697 = vmatprep.subr.bf16.mxu0 0
        %2698 = vmatpush1.bf16.msra.mxu0 0
        %2699 = vmatprep.subr.bf16.mxu0 0
        %2700 = vmatpush1.bf16.msra.mxu0 0
        %2701 = vmatprep.subr.bf16.mxu0 0
        %2702 = vmatpush1.bf16.msra.mxu0 0
        %2703 = vmatprep.subr.bf16.mxu0 0
        %2704 = vmatpush1.bf16.msra.mxu0 0
        %2705 = vmatprep.subr.bf16.mxu0 0
        %2706 = vmatpush1.bf16.msra.mxu0 0
        %2707 = vmatprep.subr.bf16.mxu0 0
        %2708 = vmatpush1.bf16.msra.mxu0 0
        %2709 = vmatprep.subr.bf16.mxu0 0
        %2710 = vmatpush1.bf16.msra.mxu0 0
        %2711 = vmatprep.subr.bf16.mxu0 0
        %2712 = vmatpush1.bf16.msra.mxu0 %v2695
        %2713 = vmatprep.subr.bf16.mxu0 0
        %2714 = vmatpush2.bf16.msra.mxu0 0
        %2715 = vmatprep.subr.bf16.mxu0 0
        %2716 = vmatpush2.bf16.msra.mxu0 0
        %2717 = vmatprep.subr.bf16.mxu0 0
        %2718 = vmatpush2.bf16.msra.mxu0 0
        %2719 = vmatprep.subr.bf16.mxu0 0
        %2720 = vmatpush2.bf16.msra.mxu0 0
        %2721 = vmatprep.subr.bf16.mxu0 0
        %2722 = vmatpush2.bf16.msra.mxu0 0
        %2723 = vmatprep.subr.bf16.mxu0 0
        %2724 = vmatpush2.bf16.msra.mxu0 0
        %2725 = vmatprep.subr.bf16.mxu0 0
        %2726 = vmatpush2.bf16.msra.mxu0 0
        %2727 = vmatprep.subr.bf16.mxu0 0
        %2728 = vmatpush2.bf16.msra.mxu0 0
        %2729 = vmatprep.mubr.bf16.mxu0 0
        %2730 = vmatmul.mubr.bf16.gmra.mxu0 %v2692
        %v2731 = vpop.f32.mrf.mxu0
        %v2732 = vadd.f32 %v2319, %v2731
        %v2733 = vpop.f32.mrf.mxu0
        %v2734 = vpop.f32.mrf.mxu0
        %v2735 = vpop.f32.mrf.mxu0
        %2736 = vdwg.mxu0
        %v2738 = vsel %vm2321, %v2291, 0
        %v2741 = vsel %vm2325, %v2307, 0
        %2743 = vmatprep.subr.bf16.mxu0 0
        %2744 = vmatpush1.bf16.msra.mxu0 0
        %2745 = vmatprep.subr.bf16.mxu0 0
        %2746 = vmatpush1.bf16.msra.mxu0 0
        %2747 = vmatprep.subr.bf16.mxu0 0
        %2748 = vmatpush1.bf16.msra.mxu0 0
        %2749 = vmatprep.subr.bf16.mxu0 0
        %2750 = vmatpush1.bf16.msra.mxu0 0
        %2751 = vmatprep.subr.bf16.mxu0 0
        %2752 = vmatpush1.bf16.msra.mxu0 0
        %2753 = vmatprep.subr.bf16.mxu0 0
        %2754 = vmatpush1.bf16.msra.mxu0 0
        %2755 = vmatprep.subr.bf16.mxu0 0
        %2756 = vmatpush1.bf16.msra.mxu0 0
        %2757 = vmatprep.subr.bf16.mxu0 0
        %2758 = vmatpush1.bf16.msra.mxu0 %v2741
        %2759 = vmatprep.subr.bf16.mxu0 0
        %2760 = vmatpush2.bf16.msra.mxu0 0
        %2761 = vmatprep.subr.bf16.mxu0 0
        %2762 = vmatpush2.bf16.msra.mxu0 0
        %2763 = vmatprep.subr.bf16.mxu0 0
        %2764 = vmatpush2.bf16.msra.mxu0 0
        %2765 = vmatprep.subr.bf16.mxu0 0
        %2766 = vmatpush2.bf16.msra.mxu0 0
        %2767 = vmatprep.subr.bf16.mxu0 0
        %2768 = vmatpush2.bf16.msra.mxu0 0
        %2769 = vmatprep.subr.bf16.mxu0 0
        %2770 = vmatpush2.bf16.msra.mxu0 0
        %2771 = vmatprep.subr.bf16.mxu0 0
        %2772 = vmatpush2.bf16.msra.mxu0 0
        %2773 = vmatprep.subr.bf16.mxu0 0
        %2774 = vmatpush2.bf16.msra.mxu0 0
        %2775 = vmatprep.mubr.bf16.mxu0 0
        %2776 = vmatmul.mubr.bf16.gmra.mxu0 %v2738
        %v2777 = vpop.f32.mrf.mxu0
        %v2778 = vadd.f32 %v2319, %v2777
        %v2779 = vpop.f32.mrf.mxu0
        %v2780 = vpop.f32.mrf.mxu0
        %v2781 = vpop.f32.mrf.mxu0
        %2782 = vdwg.mxu0
        %v2784 = vsel %vm2321, %v2292, 0
        %v2787 = vsel %vm2325, %v2308, 0
        %2789 = vmatprep.subr.bf16.mxu0 0
        %2790 = vmatpush1.bf16.msra.mxu0 0
        %2791 = vmatprep.subr.bf16.mxu0 0
        %2792 = vmatpush1.bf16.msra.mxu0 0
        %2793 = vmatprep.subr.bf16.mxu0 0
        %2794 = vmatpush1.bf16.msra.mxu0 0
        %2795 = vmatprep.subr.bf16.mxu0 0
        %2796 = vmatpush1.bf16.msra.mxu0 0
        %2797 = vmatprep.subr.bf16.mxu0 0
        %2798 = vmatpush1.bf16.msra.mxu0 0
        %2799 = vmatprep.subr.bf16.mxu0 0
        %2800 = vmatpush1.bf16.msra.mxu0 0
        %2801 = vmatprep.subr.bf16.mxu0 0
        %2802 = vmatpush1.bf16.msra.mxu0 0
        %2803 = vmatprep.subr.bf16.mxu0 0
        %2804 = vmatpush1.bf16.msra.mxu0 %v2787
        %2805 = vmatprep.subr.bf16.mxu0 0
        %2806 = vmatpush2.bf16.msra.mxu0 0
        %2807 = vmatprep.subr.bf16.mxu0 0
        %2808 = vmatpush2.bf16.msra.mxu0 0
        %2809 = vmatprep.subr.bf16.mxu0 0
        %2810 = vmatpush2.bf16.msra.mxu0 0
        %2811 = vmatprep.subr.bf16.mxu0 0
        %2812 = vmatpush2.bf16.msra.mxu0 0
        %2813 = vmatprep.subr.bf16.mxu0 0
        %2814 = vmatpush2.bf16.msra.mxu0 0
        %2815 = vmatprep.subr.bf16.mxu0 0
        %2816 = vmatpush2.bf16.msra.mxu0 0
        %2817 = vmatprep.subr.bf16.mxu0 0
        %2818 = vmatpush2.bf16.msra.mxu0 0
        %2819 = vmatprep.subr.bf16.mxu0 0
        %2820 = vmatpush2.bf16.msra.mxu0 0
        %2821 = vmatprep.mubr.bf16.mxu0 0
        %2822 = vmatmul.mubr.bf16.gmra.mxu0 %v2784
        %v2823 = vpop.f32.mrf.mxu0
        %v2824 = vadd.f32 %v2319, %v2823
        %v2825 = vpop.f32.mrf.mxu0
        %v2826 = vpop.f32.mrf.mxu0
        %v2827 = vpop.f32.mrf.mxu0
        %2828 = vdwg.mxu0
        %v2830 = vsel %vm2321, %v2293, 0
        %v2833 = vsel %vm2325, %v2309, 0
        %2835 = vmatprep.subr.bf16.mxu0 0
        %2836 = vmatpush1.bf16.msra.mxu0 0
        %2837 = vmatprep.subr.bf16.mxu0 0
        %2838 = vmatpush1.bf16.msra.mxu0 0
        %2839 = vmatprep.subr.bf16.mxu0 0
        %2840 = vmatpush1.bf16.msra.mxu0 0
        %2841 = vmatprep.subr.bf16.mxu0 0
        %2842 = vmatpush1.bf16.msra.mxu0 0
        %2843 = vmatprep.subr.bf16.mxu0 0
        %2844 = vmatpush1.bf16.msra.mxu0 0
        %2845 = vmatprep.subr.bf16.mxu0 0
        %2846 = vmatpush1.bf16.msra.mxu0 0
        %2847 = vmatprep.subr.bf16.mxu0 0
        %2848 = vmatpush1.bf16.msra.mxu0 0
        %2849 = vmatprep.subr.bf16.mxu0 0
        %2850 = vmatpush1.bf16.msra.mxu0 %v2833
        %2851 = vmatprep.subr.bf16.mxu0 0
        %2852 = vmatpush2.bf16.msra.mxu0 0
        %2853 = vmatprep.subr.bf16.mxu0 0
        %2854 = vmatpush2.bf16.msra.mxu0 0
        %2855 = vmatprep.subr.bf16.mxu0 0
        %2856 = vmatpush2.bf16.msra.mxu0 0
        %2857 = vmatprep.subr.bf16.mxu0 0
        %2858 = vmatpush2.bf16.msra.mxu0 0
        %2859 = vmatprep.subr.bf16.mxu0 0
        %2860 = vmatpush2.bf16.msra.mxu0 0
        %2861 = vmatprep.subr.bf16.mxu0 0
        %2862 = vmatpush2.bf16.msra.mxu0 0
        %2863 = vmatprep.subr.bf16.mxu0 0
        %2864 = vmatpush2.bf16.msra.mxu0 0
        %2865 = vmatprep.subr.bf16.mxu0 0
        %2866 = vmatpush2.bf16.msra.mxu0 0
        %2867 = vmatprep.mubr.bf16.mxu0 0
        %2868 = vmatmul.mubr.bf16.gmra.mxu0 %v2830
        %v2869 = vpop.f32.mrf.mxu0
        %v2870 = vadd.f32 %v2319, %v2869
        %v2871 = vpop.f32.mrf.mxu0
        %v2872 = vpop.f32.mrf.mxu0
        %v2873 = vpop.f32.mrf.mxu0
        %2874 = vdwg.mxu0
        %v2876 = vsel %vm2321, %v2294, 0
        %v2879 = vsel %vm2325, %v2310, 0
        %2881 = vmatprep.subr.bf16.mxu0 0
        %2882 = vmatpush1.bf16.msra.mxu0 0
        %2883 = vmatprep.subr.bf16.mxu0 0
        %2884 = vmatpush1.bf16.msra.mxu0 0
        %2885 = vmatprep.subr.bf16.mxu0 0
        %2886 = vmatpush1.bf16.msra.mxu0 0
        %2887 = vmatprep.subr.bf16.mxu0 0
        %2888 = vmatpush1.bf16.msra.mxu0 0
        %2889 = vmatprep.subr.bf16.mxu0 0
        %2890 = vmatpush1.bf16.msra.mxu0 0
        %2891 = vmatprep.subr.bf16.mxu0 0
        %2892 = vmatpush1.bf16.msra.mxu0 0
        %2893 = vmatprep.subr.bf16.mxu0 0
        %2894 = vmatpush1.bf16.msra.mxu0 0
        %2895 = vmatprep.subr.bf16.mxu0 0
        %2896 = vmatpush1.bf16.msra.mxu0 %v2879
        %2897 = vmatprep.subr.bf16.mxu0 0
        %2898 = vmatpush2.bf16.msra.mxu0 0
        %2899 = vmatprep.subr.bf16.mxu0 0
        %2900 = vmatpush2.bf16.msra.mxu0 0
        %2901 = vmatprep.subr.bf16.mxu0 0
        %2902 = vmatpush2.bf16.msra.mxu0 0
        %2903 = vmatprep.subr.bf16.mxu0 0
        %2904 = vmatpush2.bf16.msra.mxu0 0
        %2905 = vmatprep.subr.bf16.mxu0 0
        %2906 = vmatpush2.bf16.msra.mxu0 0
        %2907 = vmatprep.subr.bf16.mxu0 0
        %2908 = vmatpush2.bf16.msra.mxu0 0
        %2909 = vmatprep.subr.bf16.mxu0 0
        %2910 = vmatpush2.bf16.msra.mxu0 0
        %2911 = vmatprep.subr.bf16.mxu0 0
        %2912 = vmatpush2.bf16.msra.mxu0 0
        %2913 = vmatprep.mubr.bf16.mxu0 0
        %2914 = vmatmul.mubr.bf16.gmra.mxu0 %v2876
        %v2915 = vpop.f32.mrf.mxu0
        %v2916 = vadd.f32 %v2319, %v2915
        %v2917 = vpop.f32.mrf.mxu0
        %v2918 = vpop.f32.mrf.mxu0
        %v2919 = vpop.f32.mrf.mxu0
        %2920 = vdwg.mxu0
        %v2922 = vsel %vm2321, %v2295, 0
        %v2925 = vsel %vm2325, %v2311, 0
        %2927 = vmatprep.subr.bf16.mxu0 0
        %2928 = vmatpush1.bf16.msra.mxu0 0
        %2929 = vmatprep.subr.bf16.mxu0 0
        %2930 = vmatpush1.bf16.msra.mxu0 0
        %2931 = vmatprep.subr.bf16.mxu0 0
        %2932 = vmatpush1.bf16.msra.mxu0 0
        %2933 = vmatprep.subr.bf16.mxu0 0
        %2934 = vmatpush1.bf16.msra.mxu0 0
        %2935 = vmatprep.subr.bf16.mxu0 0
        %2936 = vmatpush1.bf16.msra.mxu0 0
        %2937 = vmatprep.subr.bf16.mxu0 0
        %2938 = vmatpush1.bf16.msra.mxu0 0
        %2939 = vmatprep.subr.bf16.mxu0 0
        %2940 = vmatpush1.bf16.msra.mxu0 0
        %2941 = vmatprep.subr.bf16.mxu0 0
        %2942 = vmatpush1.bf16.msra.mxu0 %v2925
        %2943 = vmatprep.subr.bf16.mxu0 0
        %2944 = vmatpush2.bf16.msra.mxu0 0
        %2945 = vmatprep.subr.bf16.mxu0 0
        %2946 = vmatpush2.bf16.msra.mxu0 0
        %2947 = vmatprep.subr.bf16.mxu0 0
        %2948 = vmatpush2.bf16.msra.mxu0 0
        %2949 = vmatprep.subr.bf16.mxu0 0
        %2950 = vmatpush2.bf16.msra.mxu0 0
        %2951 = vmatprep.subr.bf16.mxu0 0
        %2952 = vmatpush2.bf16.msra.mxu0 0
        %2953 = vmatprep.subr.bf16.mxu0 0
        %2954 = vmatpush2.bf16.msra.mxu0 0
        %2955 = vmatprep.subr.bf16.mxu0 0
        %2956 = vmatpush2.bf16.msra.mxu0 0
        %2957 = vmatprep.subr.bf16.mxu0 0
        %2958 = vmatpush2.bf16.msra.mxu0 0
        %2959 = vmatprep.mubr.bf16.mxu0 0
        %2960 = vmatmul.mubr.bf16.gmra.mxu0 %v2922
        %v2961 = vpop.f32.mrf.mxu0
        %v2962 = vadd.f32 %v2319, %v2961
        %v2963 = vpop.f32.mrf.mxu0
        %v2964 = vpop.f32.mrf.mxu0
        %v2965 = vpop.f32.mrf.mxu0
        %2966 = vdwg.mxu0
        %v2968 = vsel %vm2321, %v2296, 0
        %v2971 = vsel %vm2325, %v2312, 0
        %2973 = vmatprep.subr.bf16.mxu0 0
        %2974 = vmatpush1.bf16.msra.mxu0 0
        %2975 = vmatprep.subr.bf16.mxu0 0
        %2976 = vmatpush1.bf16.msra.mxu0 0
        %2977 = vmatprep.subr.bf16.mxu0 0
        %2978 = vmatpush1.bf16.msra.mxu0 0
        %2979 = vmatprep.subr.bf16.mxu0 0
        %2980 = vmatpush1.bf16.msra.mxu0 0
        %2981 = vmatprep.subr.bf16.mxu0 0
        %2982 = vmatpush1.bf16.msra.mxu0 0
        %2983 = vmatprep.subr.bf16.mxu0 0
        %2984 = vmatpush1.bf16.msra.mxu0 0
        %2985 = vmatprep.subr.bf16.mxu0 0
        %2986 = vmatpush1.bf16.msra.mxu0 0
        %2987 = vmatprep.subr.bf16.mxu0 0
        %2988 = vmatpush1.bf16.msra.mxu0 %v2971
        %2989 = vmatprep.subr.bf16.mxu0 0
        %2990 = vmatpush2.bf16.msra.mxu0 0
        %2991 = vmatprep.subr.bf16.mxu0 0
        %2992 = vmatpush2.bf16.msra.mxu0 0
        %2993 = vmatprep.subr.bf16.mxu0 0
        %2994 = vmatpush2.bf16.msra.mxu0 0
        %2995 = vmatprep.subr.bf16.mxu0 0
        %2996 = vmatpush2.bf16.msra.mxu0 0
        %2997 = vmatprep.subr.bf16.mxu0 0
        %2998 = vmatpush2.bf16.msra.mxu0 0
        %2999 = vmatprep.subr.bf16.mxu0 0
        %3000 = vmatpush2.bf16.msra.mxu0 0
        %3001 = vmatprep.subr.bf16.mxu0 0
        %3002 = vmatpush2.bf16.msra.mxu0 0
        %3003 = vmatprep.subr.bf16.mxu0 0
        %3004 = vmatpush2.bf16.msra.mxu0 0
        %3005 = vmatprep.mubr.bf16.mxu0 0
        %3006 = vmatmul.mubr.bf16.gmra.mxu0 %v2968
        %v3007 = vpop.f32.mrf.mxu0
        %v3008 = vadd.f32 %v2319, %v3007
        %v3009 = vpop.f32.mrf.mxu0
        %v3010 = vpop.f32.mrf.mxu0
        %v3011 = vpop.f32.mrf.mxu0
        %3012 = vdwg.mxu0
        %v3014 = vsel %vm2321, %v2297, 0
        %v3017 = vsel %vm2325, %v2313, 0
        %3019 = vmatprep.subr.bf16.mxu0 0
        %3020 = vmatpush1.bf16.msra.mxu0 0
        %3021 = vmatprep.subr.bf16.mxu0 0
        %3022 = vmatpush1.bf16.msra.mxu0 0
        %3023 = vmatprep.subr.bf16.mxu0 0
        %3024 = vmatpush1.bf16.msra.mxu0 0
        %3025 = vmatprep.subr.bf16.mxu0 0
        %3026 = vmatpush1.bf16.msra.mxu0 0
        %3027 = vmatprep.subr.bf16.mxu0 0
        %3028 = vmatpush1.bf16.msra.mxu0 0
        %3029 = vmatprep.subr.bf16.mxu0 0
        %3030 = vmatpush1.bf16.msra.mxu0 0
        %3031 = vmatprep.subr.bf16.mxu0 0
        %3032 = vmatpush1.bf16.msra.mxu0 0
        %3033 = vmatprep.subr.bf16.mxu0 0
        %3034 = vmatpush1.bf16.msra.mxu0 %v3017
        %3035 = vmatprep.subr.bf16.mxu0 0
        %3036 = vmatpush2.bf16.msra.mxu0 0
        %3037 = vmatprep.subr.bf16.mxu0 0
        %3038 = vmatpush2.bf16.msra.mxu0 0
        %3039 = vmatprep.subr.bf16.mxu0 0
        %3040 = vmatpush2.bf16.msra.mxu0 0
        %3041 = vmatprep.subr.bf16.mxu0 0
        %3042 = vmatpush2.bf16.msra.mxu0 0
        %3043 = vmatprep.subr.bf16.mxu0 0
        %3044 = vmatpush2.bf16.msra.mxu0 0
        %3045 = vmatprep.subr.bf16.mxu0 0
        %3046 = vmatpush2.bf16.msra.mxu0 0
        %3047 = vmatprep.subr.bf16.mxu0 0
        %3048 = vmatpush2.bf16.msra.mxu0 0
        %3049 = vmatprep.subr.bf16.mxu0 0
        %3050 = vmatpush2.bf16.msra.mxu0 0
        %3051 = vmatprep.mubr.bf16.mxu0 0
        %3052 = vmatmul.mubr.bf16.gmra.mxu0 %v3014
        %v3053 = vpop.f32.mrf.mxu0
        %v3054 = vadd.f32 %v2319, %v3053
        %v3055 = vpop.f32.mrf.mxu0
        %v3056 = vpop.f32.mrf.mxu0
        %v3057 = vpop.f32.mrf.mxu0
        %3058 = vdwg.mxu0
        %v3059 = vmax.f32 %v2364, 0.0
        %v3060 = vmax.f32 %v2410, 0.0
        %v3061 = vmax.f32 %v2456, 0.0
        %v3062 = vmax.f32 %v2502, 0.0
        %v3063 = vmax.f32 %v2548, 0.0
        %v3064 = vmax.f32 %v2594, 0.0
        %v3065 = vmax.f32 %v2640, 0.0
        %v3066 = vmax.f32 %v2686, 0.0
        %v3067 = vmax.f32 %v2732, 0.0
        %v3068 = vmax.f32 %v2778, 0.0
        %v3069 = vmax.f32 %v2824, 0.0
        %v3070 = vmax.f32 %v2870, 0.0
        %v3071 = vmax.f32 %v2916, 0.0
        %v3072 = vmax.f32 %v2962, 0.0
        %v3073 = vmax.f32 %v3008, 0.0
        %v3074 = vmax.f32 %v3054, 0.0
        %3075 = vst.msk [vmem:[#allocation3] sm:$0xf] %vm1772, 0.0
        %s3076 = scalar_lea.vmem [#allocation3], 68
        %3077 = vst.msk [vmem:[%s3076] sm:$0xf] %vm1772, 0.0
        %s3078 = scalar_lea.vmem [#allocation3], 4
        %3079 = vst.msk [vmem:[%s3078] sm:$0xf] %vm1772, %v3059
        %3080 = vst.msk [vmem:[%s3078 + $0x4] sm:$0xf] %vm1772, %v3060
        %3081 = vst.msk [vmem:[%s3078 + $0x8] sm:$0xf] %vm1772, %v3061
        %3082 = vst.msk [vmem:[%s3078 + $0xc] sm:$0xf] %vm1772, %v3062
        %3083 = vst.msk [vmem:[%s3078 + $0x10] sm:$0xf] %vm1772, %v3063
        %3084 = vst.msk [vmem:[%s3078 + $0x14] sm:$0xf] %vm1772, %v3064
        %3085 = vst.msk [vmem:[%s3078 + $0x18] sm:$0xf] %vm1772, %v3065
        %3086 = vst.msk [vmem:[%s3078 + $0x1c] sm:$0xf] %vm1772, %v3066
        %3087 = vst.msk [vmem:[%s3078 + $0x20] sm:$0xf] %vm1772, %v3067
        %3088 = vst.msk [vmem:[%s3078 + $0x24] sm:$0xf] %vm1772, %v3068
        %3089 = vst.msk [vmem:[%s3078 + $0x28] sm:$0xf] %vm1772, %v3069
        %3090 = vst.msk [vmem:[%s3078 + $0x2c] sm:$0xf] %vm1772, %v3070
        %3091 = vst.msk [vmem:[%s3078 + $0x30] sm:$0xf] %vm1772, %v3071
        %3092 = vst.msk [vmem:[%s3078 + $0x34] sm:$0xf] %vm1772, %v3072
        %3093 = vst.msk [vmem:[%s3078 + $0x38] sm:$0xf] %vm1772, %v3073
        %3094 = vst.msk [vmem:[%s3078 + $0x3c] sm:$0xf] %vm1772, %v3074
        %v3095 = vld [vmem:[%s13] sm:$0xf]
        %v3096 = vld [vmem:[%s13 + $0x4] sm:$0xf]
        %v3097 = vld [vmem:[%s13 + $0x8] sm:$0xf]
        %v3098 = vld [vmem:[%s13 + $0xc] sm:$0xf]
        %v3099 = vld [vmem:[%s14] sm:$0x1]
        %v3101 = vlaneseq
        %v3102 = vshrl.u32 %v3101, 7
        %v3103 = vsub.s32 0, %v3102
        %v3104 = vrot.slane %v3099, %v3103
        %v3106 = vld [vmem:[%s12] sm:$0x1]
        %v3107 = vld [vmem:[%s15] sm:$0xf]
        loop: start=0, step=1, limit=2
        $region92: #{tpu_custom_call.1} parent=83 // loop_pre_header
          _
        $region93: #{tpu_custom_call.1} parent=83 // loop_header
          %s3109 = sphi 0, %s3113
          %p3110 = scmp.ge.s32.totalorder %s3109, 2
          %v3114 = vphi 0.0, %v4081
        $region94: #{tpu_custom_call.1} parent=83 // loop_header_branch
          %3112 = sbr.rel (%p3110) target = $region98
        $region95: #{tpu_custom_call.1} parent=83 // loop_body
          %s3115 = smul.u32 %s3109, 8
          %s3116 = smul.u32 %s3115, 4
          %s3117 = scalar_lea.vmem [#allocation3], %s3116
          %v3118 = vld [vmem:[%s3117] sm:$0xf]
          %v3119 = vld [vmem:[%s3117 + $0x4] sm:$0xf]
          %v3120 = vld [vmem:[%s3117 + $0x8] sm:$0xf]
          %v3121 = vld [vmem:[%s3117 + $0xc] sm:$0xf]
          %v3122 = vld [vmem:[%s3117 + $0x10] sm:$0xf]
          %v3123 = vld [vmem:[%s3117 + $0x14] sm:$0xf]
          %v3124 = vld [vmem:[%s3117 + $0x18] sm:$0xf]
          %v3125 = vld [vmem:[%s3117 + $0x1c] sm:$0xf]
          %v3134 = vcombine.low %v3118, %v3119
          %v3135 = vcombine.low %v3120, %v3121
          %v3136 = vcombine.low %v3122, %v3123
          %v3137 = vcombine.low %v3124, %v3125
          %v3142 = vpack.c.bf16 %v3135, %v3134
          %v3143 = vpack.c.bf16 %v3137, %v3136
          %v3144 = vld [vmem:[%s11] sm:$0xf]
          %v3145 = vld [vmem:[%s11 + $0x4] sm:$0xf]
          %s3146 = sadd.s32 %s3115, 1
          %s3147 = smul.u32 %s3146, 4
          %s3148 = scalar_lea.vmem [#allocation3], %s3147
          %v3149 = vld [vmem:[%s3148] sm:$0xf]
          %v3150 = vld [vmem:[%s3148 + $0x4] sm:$0xf]
          %v3151 = vld [vmem:[%s3148 + $0x8] sm:$0xf]
          %v3152 = vld [vmem:[%s3148 + $0xc] sm:$0xf]
          %v3153 = vld [vmem:[%s3148 + $0x10] sm:$0xf]
          %v3154 = vld [vmem:[%s3148 + $0x14] sm:$0xf]
          %v3155 = vld [vmem:[%s3148 + $0x18] sm:$0xf]
          %v3156 = vld [vmem:[%s3148 + $0x1c] sm:$0xf]
          %v3165 = vcombine.low %v3149, %v3150
          %v3166 = vcombine.low %v3151, %v3152
          %v3167 = vcombine.low %v3153, %v3154
          %v3168 = vcombine.low %v3155, %v3156
          %v3173 = vpack.c.bf16 %v3166, %v3165
          %v3174 = vpack.c.bf16 %v3168, %v3167
          %s3175 = scalar_lea.vmem %s11, 8
          %v3176 = vld [vmem:[%s3175] sm:$0xf]
          %v3177 = vld [vmem:[%s3175 + $0x4] sm:$0xf]
          %v3180 = vunpack.c.l.b16 %v3176
          %v3181 = vunpack.c.l.b16 %v3177
          %v3182 = vpack.c.b16 %v3181, %v3180
          %v3185 = vsel %vm1647, %v3173, 0
          %v3188 = vsel %vm1647, %v3174, 0
          %3190 = vmatprep.subr.bf16.mxu0 0
          %3191 = vmatpush1.bf16.msra.mxu0 0
          %3192 = vmatprep.subr.bf16.mxu0 0
          %3193 = vmatpush1.bf16.msra.mxu0 0
          %3194 = vmatprep.subr.bf16.mxu0 0
          %3195 = vmatpush1.bf16.msra.mxu0 0
          %3196 = vmatprep.subr.bf16.mxu0 0
          %3197 = vmatpush1.bf16.msra.mxu0 0
          %3198 = vmatprep.subr.bf16.mxu0 0
          %3199 = vmatpush1.bf16.msra.mxu0 0
          %3200 = vmatprep.subr.bf16.mxu0 0
          %3201 = vmatpush1.bf16.msra.mxu0 0
          %3202 = vmatprep.subr.bf16.mxu0 0
          %3203 = vmatpush1.bf16.msra.mxu0 0
          %3204 = vmatprep.subr.bf16.mxu0 0
          %3205 = vmatpush1.bf16.msra.mxu0 %v3182
          %3206 = vmatprep.subr.bf16.mxu0 0
          %3207 = vmatpush2.bf16.msra.mxu0 0
          %3208 = vmatprep.subr.bf16.mxu0 0
          %3209 = vmatpush2.bf16.msra.mxu0 0
          %3210 = vmatprep.subr.bf16.mxu0 0
          %3211 = vmatpush2.bf16.msra.mxu0 0
          %3212 = vmatprep.subr.bf16.mxu0 0
          %3213 = vmatpush2.bf16.msra.mxu0 0
          %3214 = vmatprep.subr.bf16.mxu0 0
          %3215 = vmatpush2.bf16.msra.mxu0 0
          %3216 = vmatprep.subr.bf16.mxu0 0
          %3217 = vmatpush2.bf16.msra.mxu0 0
          %3218 = vmatprep.subr.bf16.mxu0 0
          %3219 = vmatpush2.bf16.msra.mxu0 0
          %3220 = vmatprep.subr.bf16.mxu0 0
          %3221 = vmatpush2.bf16.msra.mxu0 0
          %3222 = vmatprep.mubr.bf16.mxu0 0
          %3223 = vmatmul.mubr.bf16.gmra.mxu0 %v3185
          %v3224 = vpop.f32.mrf.mxu0
          %v3225 = vadd.f32 0.0, %v3224
          %v3226 = vpop.f32.mrf.mxu0
          %v3227 = vpop.f32.mrf.mxu0
          %v3228 = vadd.f32 0.0, %v3227
          %v3229 = vpop.f32.mrf.mxu0
          %3230 = vmatprep.mubr.bf16.mxu0 0
          %3231 = vmatmul.mubr.bf16.gmra.mxu0 %v3188
          %v3232 = vpop.f32.mrf.mxu0
          %v3233 = vadd.f32 0.0, %v3232
          %v3234 = vpop.f32.mrf.mxu0
          %v3235 = vpop.f32.mrf.mxu0
          %v3236 = vadd.f32 0.0, %v3235
          %v3237 = vpop.f32.mrf.mxu0
          %3238 = vdwg.mxu0
          %v3241 = vunpack.c.l.b16 %v3144
          %v3242 = vunpack.c.l.b16 %v3145
          %v3243 = vpack.c.b16 %v3242, %v3241
          %v3246 = vsel %vm1647, %v3142, 0
          %v3249 = vsel %vm1647, %v3143, 0
          %3251 = vmatprep.subr.bf16.mxu0 0
          %3252 = vmatpush1.bf16.msra.mxu0 0
          %3253 = vmatprep.subr.bf16.mxu0 0
          %3254 = vmatpush1.bf16.msra.mxu0 0
          %3255 = vmatprep.subr.bf16.mxu0 0
          %3256 = vmatpush1.bf16.msra.mxu0 0
          %3257 = vmatprep.subr.bf16.mxu0 0
          %3258 = vmatpush1.bf16.msra.mxu0 0
          %3259 = vmatprep.subr.bf16.mxu0 0
          %3260 = vmatpush1.bf16.msra.mxu0 0
          %3261 = vmatprep.subr.bf16.mxu0 0
          %3262 = vmatpush1.bf16.msra.mxu0 0
          %3263 = vmatprep.subr.bf16.mxu0 0
          %3264 = vmatpush1.bf16.msra.mxu0 0
          %3265 = vmatprep.subr.bf16.mxu0 0
          %3266 = vmatpush1.bf16.msra.mxu0 %v3243
          %3267 = vmatprep.subr.bf16.mxu0 0
          %3268 = vmatpush2.bf16.msra.mxu0 0
          %3269 = vmatprep.subr.bf16.mxu0 0
          %3270 = vmatpush2.bf16.msra.mxu0 0
          %3271 = vmatprep.subr.bf16.mxu0 0
          %3272 = vmatpush2.bf16.msra.mxu0 0
          %3273 = vmatprep.subr.bf16.mxu0 0
          %3274 = vmatpush2.bf16.msra.mxu0 0
          %3275 = vmatprep.subr.bf16.mxu0 0
          %3276 = vmatpush2.bf16.msra.mxu0 0
          %3277 = vmatprep.subr.bf16.mxu0 0
          %3278 = vmatpush2.bf16.msra.mxu0 0
          %3279 = vmatprep.subr.bf16.mxu0 0
          %3280 = vmatpush2.bf16.msra.mxu0 0
          %3281 = vmatprep.subr.bf16.mxu0 0
          %3282 = vmatpush2.bf16.msra.mxu0 0
          %3283 = vmatprep.mubr.bf16.mxu0 0
          %3284 = vmatmul.mubr.bf16.gmra.mxu0 %v3246
          %v3285 = vpop.f32.mrf.mxu0
          %v3286 = vadd.f32 %v3225, %v3285
          %v3287 = vpop.f32.mrf.mxu0
          %v3288 = vpop.f32.mrf.mxu0
          %v3289 = vadd.f32 %v3228, %v3288
          %v3290 = vpop.f32.mrf.mxu0
          %3291 = vmatprep.mubr.bf16.mxu0 0
          %3292 = vmatmul.mubr.bf16.gmra.mxu0 %v3249
          %v3293 = vpop.f32.mrf.mxu0
          %v3294 = vadd.f32 %v3233, %v3293
          %v3295 = vpop.f32.mrf.mxu0
          %v3296 = vpop.f32.mrf.mxu0
          %v3297 = vadd.f32 %v3236, %v3296
          %v3298 = vpop.f32.mrf.mxu0
          %3299 = vdwg.mxu0
          %s3300 = sadd.s32 %s3115, 2
          %s3301 = smul.u32 %s3300, 4
          %s3302 = scalar_lea.vmem [#allocation3], %s3301
          %v3303 = vld [vmem:[%s3302] sm:$0xf]
          %v3304 = vld [vmem:[%s3302 + $0x4] sm:$0xf]
          %v3305 = vld [vmem:[%s3302 + $0x8] sm:$0xf]
          %v3306 = vld [vmem:[%s3302 + $0xc] sm:$0xf]
          %v3307 = vld [vmem:[%s3302 + $0x10] sm:$0xf]
          %v3308 = vld [vmem:[%s3302 + $0x14] sm:$0xf]
          %v3309 = vld [vmem:[%s3302 + $0x18] sm:$0xf]
          %v3310 = vld [vmem:[%s3302 + $0x1c] sm:$0xf]
          %v3319 = vcombine.low %v3303, %v3304
          %v3320 = vcombine.low %v3305, %v3306
          %v3321 = vcombine.low %v3307, %v3308
          %v3322 = vcombine.low %v3309, %v3310
          %v3327 = vpack.c.bf16 %v3320, %v3319
          %v3328 = vpack.c.bf16 %v3322, %v3321
          %s3329 = scalar_lea.vmem %s11, 16
          %v3330 = vld [vmem:[%s3329] sm:$0xf]
          %v3331 = vld [vmem:[%s3329 + $0x4] sm:$0xf]
          %v3334 = vunpack.c.l.b16 %v3330
          %v3335 = vunpack.c.l.b16 %v3331
          %v3336 = vpack.c.b16 %v3335, %v3334
          %v3339 = vsel %vm1647, %v3327, 0
          %v3342 = vsel %vm1647, %v3328, 0
          %3344 = vmatprep.subr.bf16.mxu0 0
          %3345 = vmatpush1.bf16.msra.mxu0 0
          %3346 = vmatprep.subr.bf16.mxu0 0
          %3347 = vmatpush1.bf16.msra.mxu0 0
          %3348 = vmatprep.subr.bf16.mxu0 0
          %3349 = vmatpush1.bf16.msra.mxu0 0
          %3350 = vmatprep.subr.bf16.mxu0 0
          %3351 = vmatpush1.bf16.msra.mxu0 0
          %3352 = vmatprep.subr.bf16.mxu0 0
          %3353 = vmatpush1.bf16.msra.mxu0 0
          %3354 = vmatprep.subr.bf16.mxu0 0
          %3355 = vmatpush1.bf16.msra.mxu0 0
          %3356 = vmatprep.subr.bf16.mxu0 0
          %3357 = vmatpush1.bf16.msra.mxu0 0
          %3358 = vmatprep.subr.bf16.mxu0 0
          %3359 = vmatpush1.bf16.msra.mxu0 %v3336
          %3360 = vmatprep.subr.bf16.mxu0 0
          %3361 = vmatpush2.bf16.msra.mxu0 0
          %3362 = vmatprep.subr.bf16.mxu0 0
          %3363 = vmatpush2.bf16.msra.mxu0 0
          %3364 = vmatprep.subr.bf16.mxu0 0
          %3365 = vmatpush2.bf16.msra.mxu0 0
          %3366 = vmatprep.subr.bf16.mxu0 0
          %3367 = vmatpush2.bf16.msra.mxu0 0
          %3368 = vmatprep.subr.bf16.mxu0 0
          %3369 = vmatpush2.bf16.msra.mxu0 0
          %3370 = vmatprep.subr.bf16.mxu0 0
          %3371 = vmatpush2.bf16.msra.mxu0 0
          %3372 = vmatprep.subr.bf16.mxu0 0
          %3373 = vmatpush2.bf16.msra.mxu0 0
          %3374 = vmatprep.subr.bf16.mxu0 0
          %3375 = vmatpush2.bf16.msra.mxu0 0
          %3376 = vmatprep.mubr.bf16.mxu0 0
          %3377 = vmatmul.mubr.bf16.gmra.mxu0 %v3339
          %v3378 = vpop.f32.mrf.mxu0
          %v3379 = vadd.f32 0.0, %v3378
          %v3380 = vpop.f32.mrf.mxu0
          %v3381 = vpop.f32.mrf.mxu0
          %v3382 = vadd.f32 0.0, %v3381
          %v3383 = vpop.f32.mrf.mxu0
          %3384 = vmatprep.mubr.bf16.mxu0 0
          %3385 = vmatmul.mubr.bf16.gmra.mxu0 %v3342
          %v3386 = vpop.f32.mrf.mxu0
          %v3387 = vadd.f32 0.0, %v3386
          %v3388 = vpop.f32.mrf.mxu0
          %v3389 = vpop.f32.mrf.mxu0
          %v3390 = vadd.f32 0.0, %v3389
          %v3391 = vpop.f32.mrf.mxu0
          %3392 = vdwg.mxu0
          %v3393 = vadd.f32 %v3286, %v3379
          %v3394 = vadd.f32 %v3289, %v3382
          %v3395 = vadd.f32 %v3294, %v3387
          %v3396 = vadd.f32 %v3297, %v3390
          %v3398 = vlaneseq
          %v3399 = vshrl.u32 %v3398, 7
          %v3400 = vsub.s32 0, %v3399
          %v3401 = vrot.slane %v3106, %v3400
          %v3403 = vadd.f32 %v3393, %v3401
          %v3404 = vadd.f32 %v3394, %v3401
          %v3405 = vadd.f32 %v3395, %v3401
          %v3406 = vadd.f32 %v3396, %v3401
          %v3411 = vcombine.high %v3403, %v3403
          %v3412 = vcombine.high %v3404, %v3404
          %v3413 = vcombine.high %v3405, %v3405
          %v3414 = vcombine.high %v3406, %v3406
          %vm3419 = vcmask 781312
          %3420 = vst.msk [vmem:[#allocation4] sm:$0xf] %vm3419, %v3403
          %3421 = vst.msk [vmem:[#allocation4 + $0x4] sm:$0xf] %vm3419, %v3411
          %3422 = vst.msk [vmem:[#allocation4 + $0x8] sm:$0xf] %vm3419, %v3404
          %3423 = vst.msk [vmem:[#allocation4 + $0xc] sm:$0xf] %vm3419, %v3412
          %3424 = vst.msk [vmem:[#allocation4 + $0x10] sm:$0xf] %vm3419, %v3405
          %3425 = vst.msk [vmem:[#allocation4 + $0x14] sm:$0xf] %vm3419, %v3413
          %3426 = vst.msk [vmem:[#allocation4 + $0x18] sm:$0xf] %vm3419, %v3406
          %3427 = vst.msk [vmem:[#allocation4 + $0x1c] sm:$0xf] %vm3419, %v3414
          %v3428 = vld [vmem:[#allocation4] sm:$0xf]
          %v3429 = vpack.c.bf16 %v3114, %v3114
          %3431 = vrot.lane.b32.xlu0 %v3429, 96
          %v3432 = vpop.permute.xlu0 %3431
          %v3437 = vunpack.c.l.b16 %v3095
          %v3438 = vunpack.c.l.b16 %v3096
          %v3439 = vunpack.c.l.b16 %v3097
          %v3440 = vunpack.c.l.b16 %v3098
          %v3441 = vpack.c.b16 %v3438, %v3437
          %v3442 = vpack.c.b16 %v3440, %v3439
          %vm3445 = vcmask 261120
          %v3447 = vsel %vm3445, %v3432, 0
          %3449 = vmatprep.subr.bf16.mxu0 0
          %3450 = vmatpush1.bf16.msra.mxu0 0
          %3451 = vmatprep.subr.bf16.mxu0 0
          %3452 = vmatpush1.bf16.msra.mxu0 0
          %3453 = vmatprep.subr.bf16.mxu0 0
          %3454 = vmatpush1.bf16.msra.mxu0 0
          %3455 = vmatprep.subr.bf16.mxu0 0
          %3456 = vmatpush1.bf16.msra.mxu0 0
          %3457 = vmatprep.subr.bf16.mxu0 0
          %3458 = vmatpush1.bf16.msra.mxu0 0
          %3459 = vmatprep.subr.bf16.mxu0 0
          %3460 = vmatpush1.bf16.msra.mxu0 0
          %3461 = vmatprep.subr.bf16.mxu0 0
          %3462 = vmatpush1.bf16.msra.mxu0 %v3442
          %3463 = vmatprep.subr.bf16.mxu0 0
          %3464 = vmatpush1.bf16.msra.mxu0 %v3441
          %3465 = vmatprep.subr.bf16.mxu0 0
          %3466 = vmatpush2.bf16.msra.mxu0 0
          %3467 = vmatprep.subr.bf16.mxu0 0
          %3468 = vmatpush2.bf16.msra.mxu0 0
          %3469 = vmatprep.subr.bf16.mxu0 0
          %3470 = vmatpush2.bf16.msra.mxu0 0
          %3471 = vmatprep.subr.bf16.mxu0 0
          %3472 = vmatpush2.bf16.msra.mxu0 0
          %3473 = vmatprep.subr.bf16.mxu0 0
          %3474 = vmatpush2.bf16.msra.mxu0 0
          %3475 = vmatprep.subr.bf16.mxu0 0
          %3476 = vmatpush2.bf16.msra.mxu0 0
          %3477 = vmatprep.subr.bf16.mxu0 0
          %3478 = vmatpush2.bf16.msra.mxu0 0
          %3479 = vmatprep.subr.bf16.mxu0 0
          %3480 = vmatpush2.bf16.msra.mxu0 0
          %3481 = vmatprep.mubr.bf16.mxu0 0
          %3482 = vmatmul.mubr.bf16.gmra.mxu0 %v3447
          %v3483 = vpop.f32.mrf.mxu0
          %v3484 = vadd.f32 %v3104, %v3483
          %v3485 = vpop.f32.mrf.mxu0
          %v3486 = vpop.f32.mrf.mxu0
          %v3487 = vpop.f32.mrf.mxu0
          %3488 = vdwg.mxu0
          %v3489 = vadd.f32 %v3428, %v3484
          %v3490 = vxor.u32 %v3489, 2147483648
          %v3491 = vmul.f32 %v3490, 1.442695
          %v3492 = vpow.pop %v3491
          %v3493 = vadd.f32 %v3492, 1.0
          %v3494 = vrcp.pop %v3493
          %v3495 = vmul.f32 1.0, %v3494
          %3497 = vrot.lane.b32.xlu0 %v3484, 64
          %v3498 = vpop.permute.xlu0 %3497
          %v3500 = vmul.f32 %v3495, %v3498
          %3502 = vrot.lane.b32.xlu0 %v3500, 64
          %v3503 = vpop.permute.xlu0 %3502
          %v3505 = vadd.f32 %v3428, %v3503
          %v3506 = vtanh.pop %v3505
          %v3507 = vsub.f32 1.0, %v3495
          %3509 = vrot.lane.b32.xlu0 %v3506, 96
          %v3510 = vpop.permute.xlu0 %3509
          %v3512 = vmul.f32 %v3507, %v3510
          %v3513 = vmul.f32 %v3495, %v3114
          %v3514 = vadd.f32 %v3512, %v3513
          %3516 = vrot.lane.b32.xlu0 %v3514, 96
          %v3517 = vpop.permute.xlu0 %3516
          %vm3519 = vcmask 257024
          %3520 = vst.msk [vmem:[#allocation5] sm:$0xf] %vm3519, %v3517
          %s3521 = scalar_lea.vmem [#allocation4], 4
          %v3522 = vld [vmem:[%s3521] sm:$0xf]
          %v3523 = vpack.c.bf16 %v3514, %v3514
          %3525 = vrot.lane.b32.xlu0 %v3523, 96
          %v3526 = vpop.permute.xlu0 %3525
          %v3528 = vsel %vm3445, %v3526, 0
          %3530 = vmatprep.subr.bf16.mxu0 0
          %3531 = vmatpush1.bf16.msra.mxu0 0
          %3532 = vmatprep.subr.bf16.mxu0 0
          %3533 = vmatpush1.bf16.msra.mxu0 0
          %3534 = vmatprep.subr.bf16.mxu0 0
          %3535 = vmatpush1.bf16.msra.mxu0 0
          %3536 = vmatprep.subr.bf16.mxu0 0
          %3537 = vmatpush1.bf16.msra.mxu0 0
          %3538 = vmatprep.subr.bf16.mxu0 0
          %3539 = vmatpush1.bf16.msra.mxu0 0
          %3540 = vmatprep.subr.bf16.mxu0 0
          %3541 = vmatpush1.bf16.msra.mxu0 0
          %3542 = vmatprep.subr.bf16.mxu0 0
          %3543 = vmatpush1.bf16.msra.mxu0 %v3442
          %3544 = vmatprep.subr.bf16.mxu0 0
          %3545 = vmatpush1.bf16.msra.mxu0 %v3441
          %3546 = vmatprep.subr.bf16.mxu0 0
          %3547 = vmatpush2.bf16.msra.mxu0 0
          %3548 = vmatprep.subr.bf16.mxu0 0
          %3549 = vmatpush2.bf16.msra.mxu0 0
          %3550 = vmatprep.subr.bf16.mxu0 0
          %3551 = vmatpush2.bf16.msra.mxu0 0
          %3552 = vmatprep.subr.bf16.mxu0 0
          %3553 = vmatpush2.bf16.msra.mxu0 0
          %3554 = vmatprep.subr.bf16.mxu0 0
          %3555 = vmatpush2.bf16.msra.mxu0 0
          %3556 = vmatprep.subr.bf16.mxu0 0
          %3557 = vmatpush2.bf16.msra.mxu0 0
          %3558 = vmatprep.subr.bf16.mxu0 0
          %3559 = vmatpush2.bf16.msra.mxu0 0
          %3560 = vmatprep.subr.bf16.mxu0 0
          %3561 = vmatpush2.bf16.msra.mxu0 0
          %3562 = vmatprep.mubr.bf16.mxu0 0
          %3563 = vmatmul.mubr.bf16.gmra.mxu0 %v3528
          %v3564 = vpop.f32.mrf.mxu0
          %v3565 = vadd.f32 %v3104, %v3564
          %v3566 = vpop.f32.mrf.mxu0
          %v3567 = vpop.f32.mrf.mxu0
          %v3568 = vpop.f32.mrf.mxu0
          %3569 = vdwg.mxu0
          %v3570 = vadd.f32 %v3522, %v3565
          %v3571 = vxor.u32 %v3570, 2147483648
          %v3572 = vmul.f32 %v3571, 1.442695
          %v3573 = vpow.pop %v3572
          %v3574 = vadd.f32 %v3573, 1.0
          %v3575 = vrcp.pop %v3574
          %v3576 = vmul.f32 1.0, %v3575
          %3578 = vrot.lane.b32.xlu0 %v3565, 64
          %v3579 = vpop.permute.xlu0 %3578
          %v3581 = vmul.f32 %v3576, %v3579
          %3583 = vrot.lane.b32.xlu0 %v3581, 64
          %v3584 = vpop.permute.xlu0 %3583
          %v3586 = vadd.f32 %v3522, %v3584
          %v3587 = vtanh.pop %v3586
          %v3588 = vsub.f32 1.0, %v3576
          %3590 = vrot.lane.b32.xlu0 %v3587, 96
          %v3591 = vpop.permute.xlu0 %3590
          %v3593 = vmul.f32 %v3588, %v3591
          %v3594 = vmul.f32 %v3576, %v3514
          %v3595 = vadd.f32 %v3593, %v3594
          %3597 = vrot.lane.b32.xlu0 %v3595, 96
          %v3598 = vpop.permute.xlu0 %3597
          %s3600 = scalar_lea.vmem [#allocation5], 4
          %3601 = vst.msk [vmem:[%s3600] sm:$0xf] %vm3519, %v3598
          %s3602 = scalar_lea.vmem [#allocation4], 8
          %v3603 = vld [vmem:[%s3602] sm:$0xf]
          %v3604 = vpack.c.bf16 %v3595, %v3595
          %3606 = vrot.lane.b32.xlu0 %v3604, 96
          %v3607 = vpop.permute.xlu0 %3606
          %v3609 = vsel %vm3445, %v3607, 0
          %3611 = vmatprep.subr.bf16.mxu0 0
          %3612 = vmatpush1.bf16.msra.mxu0 0
          %3613 = vmatprep.subr.bf16.mxu0 0
          %3614 = vmatpush1.bf16.msra.mxu0 0
          %3615 = vmatprep.subr.bf16.mxu0 0
          %3616 = vmatpush1.bf16.msra.mxu0 0
          %3617 = vmatprep.subr.bf16.mxu0 0
          %3618 = vmatpush1.bf16.msra.mxu0 0
          %3619 = vmatprep.subr.bf16.mxu0 0
          %3620 = vmatpush1.bf16.msra.mxu0 0
          %3621 = vmatprep.subr.bf16.mxu0 0
          %3622 = vmatpush1.bf16.msra.mxu0 0
          %3623 = vmatprep.subr.bf16.mxu0 0
          %3624 = vmatpush1.bf16.msra.mxu0 %v3442
          %3625 = vmatprep.subr.bf16.mxu0 0
          %3626 = vmatpush1.bf16.msra.mxu0 %v3441
          %3627 = vmatprep.subr.bf16.mxu0 0
          %3628 = vmatpush2.bf16.msra.mxu0 0
          %3629 = vmatprep.subr.bf16.mxu0 0
          %3630 = vmatpush2.bf16.msra.mxu0 0
          %3631 = vmatprep.subr.bf16.mxu0 0
          %3632 = vmatpush2.bf16.msra.mxu0 0
          %3633 = vmatprep.subr.bf16.mxu0 0
          %3634 = vmatpush2.bf16.msra.mxu0 0
          %3635 = vmatprep.subr.bf16.mxu0 0
          %3636 = vmatpush2.bf16.msra.mxu0 0
          %3637 = vmatprep.subr.bf16.mxu0 0
          %3638 = vmatpush2.bf16.msra.mxu0 0
          %3639 = vmatprep.subr.bf16.mxu0 0
          %3640 = vmatpush2.bf16.msra.mxu0 0
          %3641 = vmatprep.subr.bf16.mxu0 0
          %3642 = vmatpush2.bf16.msra.mxu0 0
          %3643 = vmatprep.mubr.bf16.mxu0 0
          %3644 = vmatmul.mubr.bf16.gmra.mxu0 %v3609
          %v3645 = vpop.f32.mrf.mxu0
          %v3646 = vadd.f32 %v3104, %v3645
          %v3647 = vpop.f32.mrf.mxu0
          %v3648 = vpop.f32.mrf.mxu0
          %v3649 = vpop.f32.mrf.mxu0
          %3650 = vdwg.mxu0
          %v3651 = vadd.f32 %v3603, %v3646
          %v3652 = vxor.u32 %v3651, 2147483648
          %v3653 = vmul.f32 %v3652, 1.442695
          %v3654 = vpow.pop %v3653
          %v3655 = vadd.f32 %v3654, 1.0
          %v3656 = vrcp.pop %v3655
          %v3657 = vmul.f32 1.0, %v3656
          %3659 = vrot.lane.b32.xlu0 %v3646, 64
          %v3660 = vpop.permute.xlu0 %3659
          %v3662 = vmul.f32 %v3657, %v3660
          %3664 = vrot.lane.b32.xlu0 %v3662, 64
          %v3665 = vpop.permute.xlu0 %3664
          %v3667 = vadd.f32 %v3603, %v3665
          %v3668 = vtanh.pop %v3667
          %v3669 = vsub.f32 1.0, %v3657
          %3671 = vrot.lane.b32.xlu0 %v3668, 96
          %v3672 = vpop.permute.xlu0 %3671
          %v3674 = vmul.f32 %v3669, %v3672
          %v3675 = vmul.f32 %v3657, %v3595
          %v3676 = vadd.f32 %v3674, %v3675
          %3678 = vrot.lane.b32.xlu0 %v3676, 96
          %v3679 = vpop.permute.xlu0 %3678
          %s3681 = scalar_lea.vmem [#allocation5], 8
          %3682 = vst.msk [vmem:[%s3681] sm:$0xf] %vm3519, %v3679
          %s3683 = scalar_lea.vmem [#allocation4], 12
          %v3684 = vld [vmem:[%s3683] sm:$0xf]
          %v3685 = vpack.c.bf16 %v3676, %v3676
          %3687 = vrot.lane.b32.xlu0 %v3685, 96
          %v3688 = vpop.permute.xlu0 %3687
          %v3690 = vsel %vm3445, %v3688, 0
          %3692 = vmatprep.subr.bf16.mxu0 0
          %3693 = vmatpush1.bf16.msra.mxu0 0
          %3694 = vmatprep.subr.bf16.mxu0 0
          %3695 = vmatpush1.bf16.msra.mxu0 0
          %3696 = vmatprep.subr.bf16.mxu0 0
          %3697 = vmatpush1.bf16.msra.mxu0 0
          %3698 = vmatprep.subr.bf16.mxu0 0
          %3699 = vmatpush1.bf16.msra.mxu0 0
          %3700 = vmatprep.subr.bf16.mxu0 0
          %3701 = vmatpush1.bf16.msra.mxu0 0
          %3702 = vmatprep.subr.bf16.mxu0 0
          %3703 = vmatpush1.bf16.msra.mxu0 0
          %3704 = vmatprep.subr.bf16.mxu0 0
          %3705 = vmatpush1.bf16.msra.mxu0 %v3442
          %3706 = vmatprep.subr.bf16.mxu0 0
          %3707 = vmatpush1.bf16.msra.mxu0 %v3441
          %3708 = vmatprep.subr.bf16.mxu0 0
          %3709 = vmatpush2.bf16.msra.mxu0 0
          %3710 = vmatprep.subr.bf16.mxu0 0
          %3711 = vmatpush2.bf16.msra.mxu0 0
          %3712 = vmatprep.subr.bf16.mxu0 0
          %3713 = vmatpush2.bf16.msra.mxu0 0
          %3714 = vmatprep.subr.bf16.mxu0 0
          %3715 = vmatpush2.bf16.msra.mxu0 0
          %3716 = vmatprep.subr.bf16.mxu0 0
          %3717 = vmatpush2.bf16.msra.mxu0 0
          %3718 = vmatprep.subr.bf16.mxu0 0
          %3719 = vmatpush2.bf16.msra.mxu0 0
          %3720 = vmatprep.subr.bf16.mxu0 0
          %3721 = vmatpush2.bf16.msra.mxu0 0
          %3722 = vmatprep.subr.bf16.mxu0 0
          %3723 = vmatpush2.bf16.msra.mxu0 0
          %3724 = vmatprep.mubr.bf16.mxu0 0
          %3725 = vmatmul.mubr.bf16.gmra.mxu0 %v3690
          %v3726 = vpop.f32.mrf.mxu0
          %v3727 = vadd.f32 %v3104, %v3726
          %v3728 = vpop.f32.mrf.mxu0
          %v3729 = vpop.f32.mrf.mxu0
          %v3730 = vpop.f32.mrf.mxu0
          %3731 = vdwg.mxu0
          %v3732 = vadd.f32 %v3684, %v3727
          %v3733 = vxor.u32 %v3732, 2147483648
          %v3734 = vmul.f32 %v3733, 1.442695
          %v3735 = vpow.pop %v3734
          %v3736 = vadd.f32 %v3735, 1.0
          %v3737 = vrcp.pop %v3736
          %v3738 = vmul.f32 1.0, %v3737
          %3740 = vrot.lane.b32.xlu0 %v3727, 64
          %v3741 = vpop.permute.xlu0 %3740
          %v3743 = vmul.f32 %v3738, %v3741
          %3745 = vrot.lane.b32.xlu0 %v3743, 64
          %v3746 = vpop.permute.xlu0 %3745
          %v3748 = vadd.f32 %v3684, %v3746
          %v3749 = vtanh.pop %v3748
          %v3750 = vsub.f32 1.0, %v3738
          %3752 = vrot.lane.b32.xlu0 %v3749, 96
          %v3753 = vpop.permute.xlu0 %3752
          %v3755 = vmul.f32 %v3750, %v3753
          %v3756 = vmul.f32 %v3738, %v3676
          %v3757 = vadd.f32 %v3755, %v3756
          %3759 = vrot.lane.b32.xlu0 %v3757, 96
          %v3760 = vpop.permute.xlu0 %3759
          %s3762 = scalar_lea.vmem [#allocation5], 12
          %3763 = vst.msk [vmem:[%s3762] sm:$0xf] %vm3519, %v3760
          %s3764 = scalar_lea.vmem [#allocation4], 16
          %v3765 = vld [vmem:[%s3764] sm:$0xf]
          %v3766 = vpack.c.bf16 %v3757, %v3757
          %3768 = vrot.lane.b32.xlu0 %v3766, 96
          %v3769 = vpop.permute.xlu0 %3768
          %v3771 = vsel %vm3445, %v3769, 0
          %3773 = vmatprep.subr.bf16.mxu0 0
          %3774 = vmatpush1.bf16.msra.mxu0 0
          %3775 = vmatprep.subr.bf16.mxu0 0
          %3776 = vmatpush1.bf16.msra.mxu0 0
          %3777 = vmatprep.subr.bf16.mxu0 0
          %3778 = vmatpush1.bf16.msra.mxu0 0
          %3779 = vmatprep.subr.bf16.mxu0 0
          %3780 = vmatpush1.bf16.msra.mxu0 0
          %3781 = vmatprep.subr.bf16.mxu0 0
          %3782 = vmatpush1.bf16.msra.mxu0 0
          %3783 = vmatprep.subr.bf16.mxu0 0
          %3784 = vmatpush1.bf16.msra.mxu0 0
          %3785 = vmatprep.subr.bf16.mxu0 0
          %3786 = vmatpush1.bf16.msra.mxu0 %v3442
          %3787 = vmatprep.subr.bf16.mxu0 0
          %3788 = vmatpush1.bf16.msra.mxu0 %v3441
          %3789 = vmatprep.subr.bf16.mxu0 0
          %3790 = vmatpush2.bf16.msra.mxu0 0
          %3791 = vmatprep.subr.bf16.mxu0 0
          %3792 = vmatpush2.bf16.msra.mxu0 0
          %3793 = vmatprep.subr.bf16.mxu0 0
          %3794 = vmatpush2.bf16.msra.mxu0 0
          %3795 = vmatprep.subr.bf16.mxu0 0
          %3796 = vmatpush2.bf16.msra.mxu0 0
          %3797 = vmatprep.subr.bf16.mxu0 0
          %3798 = vmatpush2.bf16.msra.mxu0 0
          %3799 = vmatprep.subr.bf16.mxu0 0
          %3800 = vmatpush2.bf16.msra.mxu0 0
          %3801 = vmatprep.subr.bf16.mxu0 0
          %3802 = vmatpush2.bf16.msra.mxu0 0
          %3803 = vmatprep.subr.bf16.mxu0 0
          %3804 = vmatpush2.bf16.msra.mxu0 0
          %3805 = vmatprep.mubr.bf16.mxu0 0
          %3806 = vmatmul.mubr.bf16.gmra.mxu0 %v3771
          %v3807 = vpop.f32.mrf.mxu0
          %v3808 = vadd.f32 %v3104, %v3807
          %v3809 = vpop.f32.mrf.mxu0
          %v3810 = vpop.f32.mrf.mxu0
          %v3811 = vpop.f32.mrf.mxu0
          %3812 = vdwg.mxu0
          %v3813 = vadd.f32 %v3765, %v3808
          %v3814 = vxor.u32 %v3813, 2147483648
          %v3815 = vmul.f32 %v3814, 1.442695
          %v3816 = vpow.pop %v3815
          %v3817 = vadd.f32 %v3816, 1.0
          %v3818 = vrcp.pop %v3817
          %v3819 = vmul.f32 1.0, %v3818
          %3821 = vrot.lane.b32.xlu0 %v3808, 64
          %v3822 = vpop.permute.xlu0 %3821
          %v3824 = vmul.f32 %v3819, %v3822
          %3826 = vrot.lane.b32.xlu0 %v3824, 64
          %v3827 = vpop.permute.xlu0 %3826
          %v3829 = vadd.f32 %v3765, %v3827
          %v3830 = vtanh.pop %v3829
          %v3831 = vsub.f32 1.0, %v3819
          %3833 = vrot.lane.b32.xlu0 %v3830, 96
          %v3834 = vpop.permute.xlu0 %3833
          %v3836 = vmul.f32 %v3831, %v3834
          %v3837 = vmul.f32 %v3819, %v3757
          %v3838 = vadd.f32 %v3836, %v3837
          %3840 = vrot.lane.b32.xlu0 %v3838, 96
          %v3841 = vpop.permute.xlu0 %3840
          %s3843 = scalar_lea.vmem [#allocation5], 16
          %3844 = vst.msk [vmem:[%s3843] sm:$0xf] %vm3519, %v3841
          %s3845 = scalar_lea.vmem [#allocation4], 20
          %v3846 = vld [vmem:[%s3845] sm:$0xf]
          %v3847 = vpack.c.bf16 %v3838, %v3838
          %3849 = vrot.lane.b32.xlu0 %v3847, 96
          %v3850 = vpop.permute.xlu0 %3849
          %v3852 = vsel %vm3445, %v3850, 0
          %3854 = vmatprep.subr.bf16.mxu0 0
          %3855 = vmatpush1.bf16.msra.mxu0 0
          %3856 = vmatprep.subr.bf16.mxu0 0
          %3857 = vmatpush1.bf16.msra.mxu0 0
          %3858 = vmatprep.subr.bf16.mxu0 0
          %3859 = vmatpush1.bf16.msra.mxu0 0
          %3860 = vmatprep.subr.bf16.mxu0 0
          %3861 = vmatpush1.bf16.msra.mxu0 0
          %3862 = vmatprep.subr.bf16.mxu0 0
          %3863 = vmatpush1.bf16.msra.mxu0 0
          %3864 = vmatprep.subr.bf16.mxu0 0
          %3865 = vmatpush1.bf16.msra.mxu0 0
          %3866 = vmatprep.subr.bf16.mxu0 0
          %3867 = vmatpush1.bf16.msra.mxu0 %v3442
          %3868 = vmatprep.subr.bf16.mxu0 0
          %3869 = vmatpush1.bf16.msra.mxu0 %v3441
          %3870 = vmatprep.subr.bf16.mxu0 0
          %3871 = vmatpush2.bf16.msra.mxu0 0
          %3872 = vmatprep.subr.bf16.mxu0 0
          %3873 = vmatpush2.bf16.msra.mxu0 0
          %3874 = vmatprep.subr.bf16.mxu0 0
          %3875 = vmatpush2.bf16.msra.mxu0 0
          %3876 = vmatprep.subr.bf16.mxu0 0
          %3877 = vmatpush2.bf16.msra.mxu0 0
          %3878 = vmatprep.subr.bf16.mxu0 0
          %3879 = vmatpush2.bf16.msra.mxu0 0
          %3880 = vmatprep.subr.bf16.mxu0 0
          %3881 = vmatpush2.bf16.msra.mxu0 0
          %3882 = vmatprep.subr.bf16.mxu0 0
          %3883 = vmatpush2.bf16.msra.mxu0 0
          %3884 = vmatprep.subr.bf16.mxu0 0
          %3885 = vmatpush2.bf16.msra.mxu0 0
          %3886 = vmatprep.mubr.bf16.mxu0 0
          %3887 = vmatmul.mubr.bf16.gmra.mxu0 %v3852
          %v3888 = vpop.f32.mrf.mxu0
          %v3889 = vadd.f32 %v3104, %v3888
          %v3890 = vpop.f32.mrf.mxu0
          %v3891 = vpop.f32.mrf.mxu0
          %v3892 = vpop.f32.mrf.mxu0
          %3893 = vdwg.mxu0
          %v3894 = vadd.f32 %v3846, %v3889
          %v3895 = vxor.u32 %v3894, 2147483648
          %v3896 = vmul.f32 %v3895, 1.442695
          %v3897 = vpow.pop %v3896
          %v3898 = vadd.f32 %v3897, 1.0
          %v3899 = vrcp.pop %v3898
          %v3900 = vmul.f32 1.0, %v3899
          %3902 = vrot.lane.b32.xlu0 %v3889, 64
          %v3903 = vpop.permute.xlu0 %3902
          %v3905 = vmul.f32 %v3900, %v3903
          %3907 = vrot.lane.b32.xlu0 %v3905, 64
          %v3908 = vpop.permute.xlu0 %3907
          %v3910 = vadd.f32 %v3846, %v3908
          %v3911 = vtanh.pop %v3910
          %v3912 = vsub.f32 1.0, %v3900
          %3914 = vrot.lane.b32.xlu0 %v3911, 96
          %v3915 = vpop.permute.xlu0 %3914
          %v3917 = vmul.f32 %v3912, %v3915
          %v3918 = vmul.f32 %v3900, %v3838
          %v3919 = vadd.f32 %v3917, %v3918
          %3921 = vrot.lane.b32.xlu0 %v3919, 96
          %v3922 = vpop.permute.xlu0 %3921
          %s3924 = scalar_lea.vmem [#allocation5], 20
          %3925 = vst.msk [vmem:[%s3924] sm:$0xf] %vm3519, %v3922
          %s3926 = scalar_lea.vmem [#allocation4], 24
          %v3927 = vld [vmem:[%s3926] sm:$0xf]
          %v3928 = vpack.c.bf16 %v3919, %v3919
          %3930 = vrot.lane.b32.xlu0 %v3928, 96
          %v3931 = vpop.permute.xlu0 %3930
          %v3933 = vsel %vm3445, %v3931, 0
          %3935 = vmatprep.subr.bf16.mxu0 0
          %3936 = vmatpush1.bf16.msra.mxu0 0
          %3937 = vmatprep.subr.bf16.mxu0 0
          %3938 = vmatpush1.bf16.msra.mxu0 0
          %3939 = vmatprep.subr.bf16.mxu0 0
          %3940 = vmatpush1.bf16.msra.mxu0 0
          %3941 = vmatprep.subr.bf16.mxu0 0
          %3942 = vmatpush1.bf16.msra.mxu0 0
          %3943 = vmatprep.subr.bf16.mxu0 0
          %3944 = vmatpush1.bf16.msra.mxu0 0
          %3945 = vmatprep.subr.bf16.mxu0 0
          %3946 = vmatpush1.bf16.msra.mxu0 0
          %3947 = vmatprep.subr.bf16.mxu0 0
          %3948 = vmatpush1.bf16.msra.mxu0 %v3442
          %3949 = vmatprep.subr.bf16.mxu0 0
          %3950 = vmatpush1.bf16.msra.mxu0 %v3441
          %3951 = vmatprep.subr.bf16.mxu0 0
          %3952 = vmatpush2.bf16.msra.mxu0 0
          %3953 = vmatprep.subr.bf16.mxu0 0
          %3954 = vmatpush2.bf16.msra.mxu0 0
          %3955 = vmatprep.subr.bf16.mxu0 0
          %3956 = vmatpush2.bf16.msra.mxu0 0
          %3957 = vmatprep.subr.bf16.mxu0 0
          %3958 = vmatpush2.bf16.msra.mxu0 0
          %3959 = vmatprep.subr.bf16.mxu0 0
          %3960 = vmatpush2.bf16.msra.mxu0 0
          %3961 = vmatprep.subr.bf16.mxu0 0
          %3962 = vmatpush2.bf16.msra.mxu0 0
          %3963 = vmatprep.subr.bf16.mxu0 0
          %3964 = vmatpush2.bf16.msra.mxu0 0
          %3965 = vmatprep.subr.bf16.mxu0 0
          %3966 = vmatpush2.bf16.msra.mxu0 0
          %3967 = vmatprep.mubr.bf16.mxu0 0
          %3968 = vmatmul.mubr.bf16.gmra.mxu0 %v3933
          %v3969 = vpop.f32.mrf.mxu0
          %v3970 = vadd.f32 %v3104, %v3969
          %v3971 = vpop.f32.mrf.mxu0
          %v3972 = vpop.f32.mrf.mxu0
          %v3973 = vpop.f32.mrf.mxu0
          %3974 = vdwg.mxu0
          %v3975 = vadd.f32 %v3927, %v3970
          %v3976 = vxor.u32 %v3975, 2147483648
          %v3977 = vmul.f32 %v3976, 1.442695
          %v3978 = vpow.pop %v3977
          %v3979 = vadd.f32 %v3978, 1.0
          %v3980 = vrcp.pop %v3979
          %v3981 = vmul.f32 1.0, %v3980
          %3983 = vrot.lane.b32.xlu0 %v3970, 64
          %v3984 = vpop.permute.xlu0 %3983
          %v3986 = vmul.f32 %v3981, %v3984
          %3988 = vrot.lane.b32.xlu0 %v3986, 64
          %v3989 = vpop.permute.xlu0 %3988
          %v3991 = vadd.f32 %v3927, %v3989
          %v3992 = vtanh.pop %v3991
          %v3993 = vsub.f32 1.0, %v3981
          %3995 = vrot.lane.b32.xlu0 %v3992, 96
          %v3996 = vpop.permute.xlu0 %3995
          %v3998 = vmul.f32 %v3993, %v3996
          %v3999 = vmul.f32 %v3981, %v3919
          %v4000 = vadd.f32 %v3998, %v3999
          %4002 = vrot.lane.b32.xlu0 %v4000, 96
          %v4003 = vpop.permute.xlu0 %4002
          %s4005 = scalar_lea.vmem [#allocation5], 24
          %4006 = vst.msk [vmem:[%s4005] sm:$0xf] %vm3519, %v4003
          %s4007 = scalar_lea.vmem [#allocation4], 28
          %v4008 = vld [vmem:[%s4007] sm:$0xf]
          %v4009 = vpack.c.bf16 %v4000, %v4000
          %4011 = vrot.lane.b32.xlu0 %v4009, 96
          %v4012 = vpop.permute.xlu0 %4011
          %v4014 = vsel %vm3445, %v4012, 0
          %4016 = vmatprep.subr.bf16.mxu0 0
          %4017 = vmatpush1.bf16.msra.mxu0 0
          %4018 = vmatprep.subr.bf16.mxu0 0
          %4019 = vmatpush1.bf16.msra.mxu0 0
          %4020 = vmatprep.subr.bf16.mxu0 0
          %4021 = vmatpush1.bf16.msra.mxu0 0
          %4022 = vmatprep.subr.bf16.mxu0 0
          %4023 = vmatpush1.bf16.msra.mxu0 0
          %4024 = vmatprep.subr.bf16.mxu0 0
          %4025 = vmatpush1.bf16.msra.mxu0 0
          %4026 = vmatprep.subr.bf16.mxu0 0
          %4027 = vmatpush1.bf16.msra.mxu0 0
          %4028 = vmatprep.subr.bf16.mxu0 0
          %4029 = vmatpush1.bf16.msra.mxu0 %v3442
          %4030 = vmatprep.subr.bf16.mxu0 0
          %4031 = vmatpush1.bf16.msra.mxu0 %v3441
          %4032 = vmatprep.subr.bf16.mxu0 0
          %4033 = vmatpush2.bf16.msra.mxu0 0
          %4034 = vmatprep.subr.bf16.mxu0 0
          %4035 = vmatpush2.bf16.msra.mxu0 0
          %4036 = vmatprep.subr.bf16.mxu0 0
          %4037 = vmatpush2.bf16.msra.mxu0 0
          %4038 = vmatprep.subr.bf16.mxu0 0
          %4039 = vmatpush2.bf16.msra.mxu0 0
          %4040 = vmatprep.subr.bf16.mxu0 0
          %4041 = vmatpush2.bf16.msra.mxu0 0
          %4042 = vmatprep.subr.bf16.mxu0 0
          %4043 = vmatpush2.bf16.msra.mxu0 0
          %4044 = vmatprep.subr.bf16.mxu0 0
          %4045 = vmatpush2.bf16.msra.mxu0 0
          %4046 = vmatprep.subr.bf16.mxu0 0
          %4047 = vmatpush2.bf16.msra.mxu0 0
          %4048 = vmatprep.mubr.bf16.mxu0 0
          %4049 = vmatmul.mubr.bf16.gmra.mxu0 %v4014
          %v4050 = vpop.f32.mrf.mxu0
          %v4051 = vadd.f32 %v3104, %v4050
          %v4052 = vpop.f32.mrf.mxu0
          %v4053 = vpop.f32.mrf.mxu0
          %v4054 = vpop.f32.mrf.mxu0
          %4055 = vdwg.mxu0
          %v4056 = vadd.f32 %v4008, %v4051
          %v4057 = vxor.u32 %v4056, 2147483648
          %v4058 = vmul.f32 %v4057, 1.442695
          %v4059 = vpow.pop %v4058
          %v4060 = vadd.f32 %v4059, 1.0
          %v4061 = vrcp.pop %v4060
          %v4062 = vmul.f32 1.0, %v4061
          %4064 = vrot.lane.b32.xlu0 %v4051, 64
          %v4065 = vpop.permute.xlu0 %4064
          %v4067 = vmul.f32 %v4062, %v4065
          %4069 = vrot.lane.b32.xlu0 %v4067, 64
          %v4070 = vpop.permute.xlu0 %4069
          %v4072 = vadd.f32 %v4008, %v4070
          %v4073 = vtanh.pop %v4072
          %v4074 = vsub.f32 1.0, %v4062
          %4076 = vrot.lane.b32.xlu0 %v4073, 96
          %v4077 = vpop.permute.xlu0 %4076
          %v4079 = vmul.f32 %v4074, %v4077
          %v4080 = vmul.f32 %v4062, %v4000
          %v4081 = vadd.f32 %v4079, %v4080
          %4083 = vrot.lane.b32.xlu0 %v4081, 96
          %v4084 = vpop.permute.xlu0 %4083
          %s4086 = scalar_lea.vmem [#allocation5], 28
          %4087 = vst.msk [vmem:[%s4086] sm:$0xf] %vm3519, %v4084
          %v4088 = vld [vmem:[#allocation5] sm:$0xf]
          %v4089 = vld [vmem:[#allocation5 + $0x4] sm:$0xf]
          %v4090 = vld [vmem:[#allocation5 + $0x8] sm:$0xf]
          %v4091 = vld [vmem:[#allocation5 + $0xc] sm:$0xf]
          %v4092 = vld [vmem:[#allocation5 + $0x10] sm:$0xf]
          %v4093 = vld [vmem:[#allocation5 + $0x14] sm:$0xf]
          %v4094 = vld [vmem:[#allocation5 + $0x18] sm:$0xf]
          %v4095 = vld [vmem:[#allocation5 + $0x1c] sm:$0xf]
          %4097 = vset.pattern.permute.xlu0 0
          %4098 = vperm.xlu0 %4097, %v3107
          %v4099 = vpop.permute.xlu0 %4098
          %v4101 = vmul.f32 %v4099, %v4088
          %v4102 = vmul.f32 %v4099, %v4089
          %v4103 = vmul.f32 %v4099, %v4090
          %v4104 = vmul.f32 %v4099, %v4091
          %v4105 = vmul.f32 %v4099, %v4092
          %v4106 = vmul.f32 %v4099, %v4093
          %v4107 = vmul.f32 %v4099, %v4094
          %v4108 = vmul.f32 %v4099, %v4095
          %4109 = vset.pattern.permute.xlu0 1
          %4110 = vperm.xlu0 %4109, %v3107
          %v4111 = vpop.permute.xlu0 %4110
          %v4113 = vmul.f32 %v4111, %v4088
          %v4114 = vmul.f32 %v4111, %v4089
          %v4115 = vmul.f32 %v4111, %v4090
          %v4116 = vmul.f32 %v4111, %v4091
          %v4117 = vmul.f32 %v4111, %v4092
          %v4118 = vmul.f32 %v4111, %v4093
          %v4119 = vmul.f32 %v4111, %v4094
          %v4120 = vmul.f32 %v4111, %v4095
          %4129 = vrot.lane.b32.xlu0 %v4113, 112
          %v4130 = vpop.permute.xlu0 %4129
          %4131 = vrot.lane.b32.xlu0 %v4114, 112
          %v4132 = vpop.permute.xlu0 %4131
          %4133 = vrot.lane.b32.xlu0 %v4115, 112
          %v4134 = vpop.permute.xlu0 %4133
          %4135 = vrot.lane.b32.xlu0 %v4116, 112
          %v4136 = vpop.permute.xlu0 %4135
          %4137 = vrot.lane.b32.xlu0 %v4117, 112
          %v4138 = vpop.permute.xlu0 %4137
          %4139 = vrot.lane.b32.xlu0 %v4118, 112
          %v4140 = vpop.permute.xlu0 %4139
          %4141 = vrot.lane.b32.xlu0 %v4119, 112
          %v4142 = vpop.permute.xlu0 %4141
          %4143 = vrot.lane.b32.xlu0 %v4120, 112
          %v4144 = vpop.permute.xlu0 %4143
          %v4153 = vadd.f32 %v4101, %v4130
          %v4154 = vadd.f32 %v4102, %v4132
          %v4155 = vadd.f32 %v4103, %v4134
          %v4156 = vadd.f32 %v4104, %v4136
          %v4157 = vadd.f32 %v4105, %v4138
          %v4158 = vadd.f32 %v4106, %v4140
          %v4159 = vadd.f32 %v4107, %v4142
          %v4160 = vadd.f32 %v4108, %v4144
          %s4161 = scalar_lea.vmem %s514, %s3116 [#allocation6]
          %4162 = vst.msk [vmem:[%s4161] sm:$0xf] %vm1772, %v4153
          %4163 = vst.msk [vmem:[%s4161 + $0x4] sm:$0xf] %vm1772, %v4154
          %4164 = vst.msk [vmem:[%s4161 + $0x8] sm:$0xf] %vm1772, %v4155
          %4165 = vst.msk [vmem:[%s4161 + $0xc] sm:$0xf] %vm1772, %v4156
          %4166 = vst.msk [vmem:[%s4161 + $0x10] sm:$0xf] %vm1772, %v4157
          %4167 = vst.msk [vmem:[%s4161 + $0x14] sm:$0xf] %vm1772, %v4158
          %4168 = vst.msk [vmem:[%s4161 + $0x18] sm:$0xf] %vm1772, %v4159
          %4169 = vst.msk [vmem:[%s4161 + $0x1c] sm:$0xf] %vm1772, %v4160
        $region96: #{tpu_custom_call.1} parent=83 // loop_footer
          %s3113 = sadd.s32 1, %s3109
        $region97: #{tpu_custom_call.1} parent=83 // loop_footer_branch
          %3108 = sbr.rel target = $region93
        $region98: #{tpu_custom_call.1} parent=83 // loop_exit
          _
        %v4170 = vld [vmem:[%s514] sm:$0xf]
        %v4171 = vld [vmem:[%s514 + $0x4] sm:$0xf]
        %v4172 = vld [vmem:[%s514 + $0x8] sm:$0xf]
        %v4173 = vld [vmem:[%s514 + $0xc] sm:$0xf]
        %v4174 = vld [vmem:[%s514 + $0x10] sm:$0xf]
        %v4175 = vld [vmem:[%s514 + $0x14] sm:$0xf]
        %v4176 = vld [vmem:[%s514 + $0x18] sm:$0xf]
        %v4177 = vld [vmem:[%s514 + $0x1c] sm:$0xf]
        %v4178 = vld [vmem:[%s514 + $0x20] sm:$0xf]
        %v4179 = vld [vmem:[%s514 + $0x24] sm:$0xf]
        %v4180 = vld [vmem:[%s514 + $0x28] sm:$0xf]
        %v4181 = vld [vmem:[%s514 + $0x2c] sm:$0xf]
        %v4182 = vld [vmem:[%s514 + $0x30] sm:$0xf]
        %v4183 = vld [vmem:[%s514 + $0x34] sm:$0xf]
        %v4184 = vld [vmem:[%s514 + $0x38] sm:$0xf]
        %v4185 = vld [vmem:[%s514 + $0x3c] sm:$0xf]
        %v4186 = vld [vmem:[#allocation2] sm:$0xf]
        %v4187 = vld [vmem:[#allocation2 + $0x4] sm:$0xf]
        %v4188 = vld [vmem:[#allocation2 + $0x8] sm:$0xf]
        %v4189 = vld [vmem:[#allocation2 + $0xc] sm:$0xf]
        %v4190 = vld [vmem:[#allocation2 + $0x10] sm:$0xf]
        %v4191 = vld [vmem:[#allocation2 + $0x14] sm:$0xf]
        %v4192 = vld [vmem:[#allocation2 + $0x18] sm:$0xf]
        %v4193 = vld [vmem:[#allocation2 + $0x1c] sm:$0xf]
        %v4194 = vld [vmem:[#allocation2 + $0x20] sm:$0xf]
        %v4195 = vld [vmem:[#allocation2 + $0x24] sm:$0xf]
        %v4196 = vld [vmem:[#allocation2 + $0x28] sm:$0xf]
        %v4197 = vld [vmem:[#allocation2 + $0x2c] sm:$0xf]
        %v4198 = vld [vmem:[#allocation2 + $0x30] sm:$0xf]
        %v4199 = vld [vmem:[#allocation2 + $0x34] sm:$0xf]
        %v4200 = vld [vmem:[#allocation2 + $0x38] sm:$0xf]
        %v4201 = vld [vmem:[#allocation2 + $0x3c] sm:$0xf]
        %v4202 = vadd.f32 %v4170, %v4186
        %v4203 = vadd.f32 %v4171, %v4187
        %v4204 = vadd.f32 %v4172, %v4188
        %v4205 = vadd.f32 %v4173, %v4189
        %v4206 = vadd.f32 %v4174, %v4190
        %v4207 = vadd.f32 %v4175, %v4191
        %v4208 = vadd.f32 %v4176, %v4192
        %v4209 = vadd.f32 %v4177, %v4193
        %v4210 = vadd.f32 %v4178, %v4194
        %v4211 = vadd.f32 %v4179, %v4195
        %v4212 = vadd.f32 %v4180, %v4196
        %v4213 = vadd.f32 %v4181, %v4197
        %v4214 = vadd.f32 %v4182, %v4198
        %v4215 = vadd.f32 %v4183, %v4199
        %v4216 = vadd.f32 %v4184, %v4200
        %v4217 = vadd.f32 %v4185, %v4201
        %4218 = vst.msk [vmem:[%s514] sm:$0xf] %vm1772, %v4202
        %4219 = vst.msk [vmem:[%s514 + $0x4] sm:$0xf] %vm1772, %v4203
        %4220 = vst.msk [vmem:[%s514 + $0x8] sm:$0xf] %vm1772, %v4204
        %4221 = vst.msk [vmem:[%s514 + $0xc] sm:$0xf] %vm1772, %v4205
        %4222 = vst.msk [vmem:[%s514 + $0x10] sm:$0xf] %vm1772, %v4206
        %4223 = vst.msk [vmem:[%s514 + $0x14] sm:$0xf] %vm1772, %v4207
        %4224 = vst.msk [vmem:[%s514 + $0x18] sm:$0xf] %vm1772, %v4208
        %4225 = vst.msk [vmem:[%s514 + $0x1c] sm:$0xf] %vm1772, %v4209
        %4226 = vst.msk [vmem:[%s514 + $0x20] sm:$0xf] %vm1772, %v4210
        %4227 = vst.msk [vmem:[%s514 + $0x24] sm:$0xf] %vm1772, %v4211
        %4228 = vst.msk [vmem:[%s514 + $0x28] sm:$0xf] %vm1772, %v4212
        %4229 = vst.msk [vmem:[%s514 + $0x2c] sm:$0xf] %vm1772, %v4213
        %4230 = vst.msk [vmem:[%s514 + $0x30] sm:$0xf] %vm1772, %v4214
        %4231 = vst.msk [vmem:[%s514 + $0x34] sm:$0xf] %vm1772, %v4215
        %4232 = vst.msk [vmem:[%s514 + $0x38] sm:$0xf] %vm1772, %v4216
        %4233 = vst.msk [vmem:[%s514 + $0x3c] sm:$0xf] %vm1772, %v4217
        %s4234 = sand.u32 %s379, 1
        %s4235 = scalar_lea.sflag [#allocation7], %s4234
        %s4236 = sand.u32 %s379, 1
        %s4237 = smul.addr %s4236, 64
        %s4238 = scalar_lea.vmem [#allocation6], %s4237
        // Predicated region
        $region99: #{tpu_custom_call.1} parent=83 // pred_check
          %p4239 = pneg %p389
        $region100: #{tpu_custom_call.1} parent=83 // pred_check_branch
          %4241 = sbr.rel (%p4239) target = $region102
        $region101: #{tpu_custom_call.1} parent=83 // pred_region
          %s4243 = ssub.s32 1024, 1024
          %4244 = vsyncadd %s4235, %s4243
          %s4245 = smul.addr %s30, 16
          %s4246 = smul.addr %s4245, 64
          %s4247 = scalar_lea.hbm %s16, %s4246
          %s4248 = sshll.u32 %s4238, 4
          %s4249 = int_to_ptr.vmem [resolvable:$true] %s4248
          %4254 = dma.vmem_to_hbm [thread:$0]  %s4249, 1024, %s4247, %s4235, 64, 64, 4
        $region102: #{tpu_custom_call.1} parent=83 // pred_fallthru
          _
      $region84: #{tpu_custom_call.1} parent=5 // pred_fallthru
        _
      %p4255 = scmp.le.s32.totalorder 2, %s25
      // Predicated region
      $region103: #{tpu_custom_call.1} parent=5 // pred_check
        %p4256 = pneg %p4255
      $region104: #{tpu_custom_call.1} parent=5 // pred_check_branch
        %4258 = sbr.rel (%p4256) target = $region106
      $region105: #{tpu_custom_call.1} parent=5 // pred_region
        %s4259 = ssub.s32 %s25, 2
        // Predicated region
        $region107: #{tpu_custom_call.1} parent=105 // pred_check
          %p4260 = pneg %p395
        $region108: #{tpu_custom_call.1} parent=105 // pred_check_branch
          %4262 = sbr.rel (%p4260) target = $region110
        $region109: #{tpu_custom_call.1} parent=105 // pred_region
          %s4263 = sand.u32 %s380, 1
          %s4264 = scalar_lea.sflag [#allocation7], %s4263
          %s4265 = sand.u32 %s380, 1
          %s4266 = smul.addr %s4265, 64
          %s4267 = scalar_lea.vmem [#allocation6], %s4266
          %4268 = dma.done %s4264, 1024
        $region110: #{tpu_custom_call.1} parent=105 // pred_fallthru
          _
      $region106: #{tpu_custom_call.1} parent=5 // pred_fallthru
        _
    $region6: #{tpu_custom_call.1} parent=1 // loop_footer
      %s29 = sadd.s32 1, %s25
    $region7: #{tpu_custom_call.1} parent=1 // loop_footer_branch
      %24 = sbr.rel target = $region3
    $region8: #{tpu_custom_call.1} parent=1 // loop_exit
      _
    %4269 = vsyncpa [#allocation7], 1
    %s4270 = scalar_lea.sflag [#allocation7], 1
    %4271 = vsyncpa %s4270, 1

</llo_original>
